<compile_context>
chip_gen: v6e
topology: v6e:2x2x1
jax: 0.10.0
libtpu: 0.0.40
codegen_flags: <defaults>
</compile_context>

<pallas_src>
import math
from functools import partial

import jax
import jax.numpy as jnp
from jax.experimental import pallas as pl
from jax.experimental.pallas import tpu as pltpu


# ----------------------------------------------------------------------------
# Fused encoder-stack kernel: grid=(nlayers,), activation resident in o_ref.
# ----------------------------------------------------------------------------
def _fused_layers_kernel(x0_ref, wqkv_ref, wo_ref, w1_ref, w2_ref, sml_ref,
                         o_ref, *, nhead):
    """One post-norm nn.TransformerEncoderLayer (relu, eval mode) per grid step.

    Weight layouts (pre-transposed on host, bf16):
      wqkv: [D, 3D]   (Q columns pre-scaled by 1/sqrt(head_dim))
      wo  : [D, D]
      w1  : [D, nhid], w2: [nhid, D]
    Packed small params sml (f32, [8, padW]):
      row 0: bqkv[3D], 1: bo[D], 2: b1[nhid], 3: b2[D],
      row 4: ln1 gamma, 5: ln1 beta, 6: ln2 gamma, 7: ln2 beta.
    Activations / LayerNorm / softmax math stays in f32; all MXU contractions
    take bf16 operands with f32 accumulation.
    """
    layer = pl.program_id(0)

    # Load the (pre-scaled-embedding + positional-encoding) input once; o_ref
    # (constant output block index) stays resident in VMEM across all layers.
    @pl.when(layer == 0)
    def _():
        o_ref[...] = x0_ref[...]

    x = o_ref[...]                                   # [S, D] f32 (resident)
    S, D = x.shape
    hd = D // nhead
    nhid = w1_ref.shape[-1]
    cdt = wqkv_ref.dtype                             # bf16 compute dtype

    sml = sml_ref[...]                               # [8, padW] f32
    bqkv = sml[0:1, :3 * D]
    bo = sml[1:2, :D]
    b1 = sml[2:3, :nhid]
    b2 = sml[3:4, :D]
    g1 = sml[4:5, :D]
    be1 = sml[5:6, :D]
    g2 = sml[6:7, :D]
    be2 = sml[7:8, :D]

    # ---- QKV projection: one full-depth bf16 MXU matmul (f32 acc) ----
    qkv = jnp.dot(x.astype(cdt), wqkv_ref[...],
                  preferred_element_type=jnp.float32) + bqkv          # [S, 3D]

    # Head split: lane slices + leading-axis stack, cast to bf16 for the MXU.
    # TODO(synk): replace with a single head-major relayout once a
    # reshape+transpose lowering is profiled for these shapes.
    def split_heads(t):
        return jnp.stack([t[:, h * hd:(h + 1) * hd] for h in range(nhead)],
                         axis=0).astype(cdt)                          # [H,S,hd]

    qh = split_heads(qkv[:, :D])
    kh = split_heads(qkv[:, D:2 * D])
    vh = split_heads(qkv[:, 2 * D:])

    # ---- attention scores: head-batched bf16 MXU contraction ----
    # (1/sqrt(head_dim) already folded into the Q weights on the host.)
    s = jnp.einsum('hqd,hkd->hqk', qh, kh,
                   preferred_element_type=jnp.float32)                # [H,S,S]

    # Causal mask generated in-kernel (cheap VPU compare, no HBM traffic).
    row = jax.lax.broadcasted_iota(jnp.int32, (S, S), 0)
    col = jax.lax.broadcasted_iota(jnp.int32, (S, S), 1)
    s = jnp.where((col <= row)[None, :, :], s, -1e30)                 # finite

    # ---- softmax (max-subtracted; reciprocal on the EUP) ----
    s = s - jnp.max(s, axis=-1, keepdims=True)
    p = jnp.exp(s)
    p = p * pl.reciprocal(jnp.sum(p, axis=-1, keepdims=True), approx=True)

    # ---- P @ V: head-batched bf16 contraction ----
    ctx = jnp.einsum('hqk,hkd->hqd', p.astype(cdt), vh,
                     preferred_element_type=jnp.float32)              # [H,S,hd]

    # ---- output projection: concat heads (lane concat) -> single K=D matmul
    ctx2 = jnp.concatenate([ctx[h] for h in range(nhead)], axis=-1)   # [S, D]
    attn = jnp.dot(ctx2.astype(cdt), wo_ref[...],
                   preferred_element_type=jnp.float32) + bo           # [S, D]

    # ---- residual + LayerNorm1 (f32) ----
    y = x + attn
    mu = jnp.mean(y, axis=-1, keepdims=True)
    var = jnp.mean(jnp.square(y - mu), axis=-1, keepdims=True)
    y = (y - mu) * jax.lax.rsqrt(var + 1e-5) * g1 + be1

    # ---- feed-forward (relu) + residual + LayerNorm2; bf16 MXU operands ----
    h1 = jnp.dot(y.astype(cdt), w1_ref[...],
                 preferred_element_type=jnp.float32) + b1
    h1 = jnp.maximum(h1, 0.0)
    h2 = jnp.dot(h1.astype(cdt), w2_ref[...],
                 preferred_element_type=jnp.float32) + b2
    z = y + h2
    mu2 = jnp.mean(z, axis=-1, keepdims=True)
    var2 = jnp.mean(jnp.square(z - mu2), axis=-1, keepdims=True)
    z = (z - mu2) * jax.lax.rsqrt(var2 + 1e-5) * g2 + be2

    # keep the activation resident for the next layer (final HBM writeback
    # happens once, after the last grid step, since the block index is const)
    o_ref[...] = z.astype(o_ref.dtype)


# ----------------------------------------------------------------------------
# Wrapper
# ----------------------------------------------------------------------------
def trans_encoder_forward(tokens, params, pe, *, nhead):
    """Equivalent of TransEncoder.forward(src) with src a 1-D token sequence.

    Returns [S, 1, D] like the PyTorch module (batch=1).
    """
    S = tokens.shape[0]
    # Embedding gather is glue; sqrt(ninp) is pre-folded into the table.
    x0 = jnp.take(params["emb_scaled"], tokens, axis=0) + pe[:S]      # [S, D]
    D = x0.shape[-1]
    L = params["wqkv"].shape[0]
    nhid = params["w1"].shape[-1]
    padw = params["smalls"].shape[-1]

    const_map = lambda l: (0, 0)
    layer_map = lambda l: (l, 0, 0)

    grid_spec = pltpu.PrefetchScalarGridSpec(
        num_scalar_prefetch=0,
        grid=(L,),
        in_specs=[
            pl.BlockSpec((S, D), const_map),                      # x0
            pl.BlockSpec((None, D, 3 * D), layer_map),            # wqkv
            pl.BlockSpec((None, D, D), layer_map),                # wo
            pl.BlockSpec((None, D, nhid), layer_map),             # w1
            pl.BlockSpec((None, nhid, D), layer_map),             # w2
            pl.BlockSpec((None, 8, padw), layer_map),             # packed smalls
        ],
        out_specs=pl.BlockSpec((S, D), const_map),
    )

    out = pl.pallas_call(
        partial(_fused_layers_kernel, nhead=nhead),
        out_shape=jax.ShapeDtypeStruct((S, D), jnp.float32),
        grid_spec=grid_spec,
        compiler_params=pltpu.CompilerParams(
            dimension_semantics=("arbitrary",),       # layer chain is sequential
            vmem_limit_bytes=64 * 1024 * 1024,
        ),
    )(x0,
      params["wqkv"], params["wo"], params["w1"], params["w2"],
      params["smalls"])

    return out[:, None, :]                                        # [S, 1, D]


def make_positional_encoding(max_len, d_model):
    position = jnp.arange(max_len, dtype=jnp.float32)[:, None]
    div_term = jnp.exp(jnp.arange(0, d_model, 2, dtype=jnp.float32)
                       * (-math.log(10000.0) / d_model))
    pe_sin = jnp.sin(position * div_term)                   # even columns
    pe_cos = jnp.cos(position * div_term)                   # odd columns
    pe = jnp.stack([pe_sin, pe_cos], axis=-1).reshape(max_len, d_model)
    return pe


def init_params(key, ntoken, ninp, nhead, nhid, nlayers,
                param_dtype=jnp.bfloat16):
    """Host-side parameter construction with all layout/scale transforms folded in."""
    hd = ninp // nhead
    pad_w = ((max(3 * ninp, nhid, ninp) + 127) // 128) * 128
    keys = jax.random.split(key, 1 + nlayers)

    # embedding.weight.uniform_(-0.1, 0.1) as in init_weights(); fold sqrt(ninp).
    emb = jax.random.uniform(keys[0], (ntoken, ninp), jnp.float32, -0.1, 0.1)
    emb_scaled = emb * math.sqrt(ninp)

    def u(k, shape, fan_in):
        bound = 1.0 / math.sqrt(fan_in)
        return jax.random.uniform(k, shape, jnp.float32, -bound, bound)

    q_scale = 1.0 / math.sqrt(hd)
    wqkv_l, wo_l, w1_l, w2_l, sml_l = [], [], [], [], []
    for l in range(nlayers):
        ks = jax.random.split(keys[1 + l], 6)
        w_qkv = u(ks[0], (3 * ninp, ninp), ninp)         # torch layout [out, in]
        w_qkv = w_qkv.at[:ninp].multiply(q_scale)        # fold 1/sqrt(hd) into Q
        b_qkv = jnp.zeros((3 * ninp,), jnp.float32)      # in_proj_bias = 0
        w_o = u(ks[1], (ninp, ninp), ninp)               # out_proj [out, in]
        b_o = jnp.zeros((ninp,), jnp.float32)
        w_1 = u(ks[2], (nhid, ninp), ninp)
        b_1 = u(ks[3], (nhid,), ninp)
        w_2 = u(ks[4], (ninp, nhid), nhid)
        b_2 = u(ks[5], (ninp,), nhid)

        wqkv_l.append(w_qkv.T)                           # [D, 3D]
        wo_l.append(w_o.T)                               # [D, D]
        w1_l.append(w_1.T)                               # [D, nhid]
        w2_l.append(w_2.T)                               # [nhid, D]

        sml = jnp.zeros((8, pad_w), jnp.float32)
        sml = sml.at[0, :3 * ninp].set(b_qkv)            # bqkv
        sml = sml.at[1, :ninp].set(b_o)                  # bo
        sml = sml.at[2, :nhid].set(b_1)                  # b1
        sml = sml.at[3, :ninp].set(b_2)                  # b2
        sml = sml.at[4, :ninp].set(1.0)                  # ln1 gamma
        sml = sml.at[6, :ninp].set(1.0)                  # ln2 gamma
        # rows 5 / 7 (ln betas) stay zero
        sml_l.append(sml)

    return {
        "emb_scaled": emb_scaled,
        "wqkv": jnp.stack(wqkv_l).astype(param_dtype),   # bf16 streamed weights
        "wo": jnp.stack(wo_l).astype(param_dtype),
        "w1": jnp.stack(w1_l).astype(param_dtype),
        "w2": jnp.stack(w2_l).astype(param_dtype),
        "smalls": jnp.stack(sml_l),                      # f32 packed biases/LN
    }


# ----------------------------------------------------------------------------
if __name__ == "__main__":
    # Tile-aligned demo shapes: D multiple of 128, nhid multiple of 128,
    # S = 128 so every matmul has a full M=128 row block and the softmax last
    # dim is lane-dense.
    ntoken, ninp, nhead, nhid, nlayers = 64, 128, 4, 256, 2
    seq_len, max_len = 128, 256

    key = jax.random.PRNGKey(0)
    k_param, k_tok = jax.random.split(key)

    params = init_params(k_param, ntoken, ninp, nhead, nhid, nlayers)
    pe = make_positional_encoding(max_len, ninp)
    tokens = jax.random.randint(k_tok, (seq_len,), 0, ntoken, dtype=jnp.int32)

    fwd = jax.jit(partial(trans_encoder_forward, nhead=nhead))
    out = fwd(tokens, params, pe)
    out = jax.block_until_ready(out)

    assert out.shape == (seq_len, 1, ninp)
    assert bool(jnp.all(jnp.isfinite(out)))
    print("KERNEL_OK")
</pallas_src>

<mosaic_0001>
module attributes {stable_mosaic.version = 11 : i64} {
  func.func @_fused_layers_kernel(%arg0: i32, %arg1: memref<128x128xf32, #tpu.memory_space<vmem>>, %arg2: memref<1x128x384xbf16, #tpu.memory_space<vmem>>, %arg3: memref<1x128x128xbf16, #tpu.memory_space<vmem>>, %arg4: memref<1x128x256xbf16, #tpu.memory_space<vmem>>, %arg5: memref<1x256x128xbf16, #tpu.memory_space<vmem>>, %arg6: memref<1x8x384xf32, #tpu.memory_space<vmem>>, %arg7: memref<128x128xf32, #tpu.memory_space<vmem>>) attributes {dimension_semantics = [#tpu.dimension_semantics<arbitrary>], iteration_bounds = array<i64: 2>, scalar_prefetch = 0 : i64, scratch_operands = 0 : i64, tpu.core_type = #tpu.core_type<tc>, window_params = [{pipeline_mode = #tpu.pipeline_mode<synchronous>, transform_indices = @transform_0, window_bounds = array<i64: 128, 128>}, {transform_indices = @transform_1, window_bounds = array<i64: 1, 128, 384>}, {transform_indices = @transform_2, window_bounds = array<i64: 1, 128, 128>}, {transform_indices = @transform_3, window_bounds = array<i64: 1, 128, 256>}, {transform_indices = @transform_4, window_bounds = array<i64: 1, 256, 128>}, {transform_indices = @transform_5, window_bounds = array<i64: 1, 8, 384>}, {pipeline_mode = #tpu.pipeline_mode<synchronous>, transform_indices = @transform_6, window_bounds = array<i64: 128, 128>}]} {
    %c0_i32 = arith.constant 0 : i32
    %0 = arith.cmpi eq, %arg0, %c0_i32 : i32
    %1 = arith.extui %0 : i1 to i32
    %c0_i32_0 = arith.constant 0 : i32
    %2 = arith.cmpi ne, %1, %c0_i32_0 : i32
    scf.if %2 {
      %c0_38 = arith.constant 0 : index
      %c0_39 = arith.constant 0 : index
      %150 = vector.load %arg1[%c0_38, %c0_39] : memref<128x128xf32, #tpu.memory_space<vmem>>, vector<128x128xf32>
      %c0_40 = arith.constant 0 : index
      %c0_41 = arith.constant 0 : index
      %151 = vector.load %arg7[%c0_40, %c0_41] : memref<128x128xf32, #tpu.memory_space<vmem>>, vector<128x128xf32>
      tpu.vector_store %arg7[%c0_40, %c0_41], %150 {strides = array<i32>} : memref<128x128xf32, #tpu.memory_space<vmem>>, vector<128x128xf32>,
    } else {
    }
    %c0 = arith.constant 0 : index
    %c0_1 = arith.constant 0 : index
    %3 = vector.load %arg7[%c0, %c0_1] : memref<128x128xf32, #tpu.memory_space<vmem>>, vector<128x128xf32>
    %c0_2 = arith.constant 0 : index
    %c0_3 = arith.constant 0 : index
    %c0_4 = arith.constant 0 : index
    %4 = vector.load %arg6[%c0_2, %c0_3, %c0_4] : memref<1x8x384xf32, #tpu.memory_space<vmem>>, vector<1x8x384xf32>
    %5 = vector.shape_cast %4 : vector<1x8x384xf32> to vector<8x384xf32>
    %6 = vector.extract_strided_slice %5 {offsets = [0, 0], sizes = [1, 384], strides = [1, 1]} : vector<8x384xf32> to vector<1x384xf32>
    %7 = vector.extract_strided_slice %5 {offsets = [1, 0], sizes = [1, 128], strides = [1, 1]} : vector<8x384xf32> to vector<1x128xf32>
    %8 = vector.extract_strided_slice %5 {offsets = [2, 0], sizes = [1, 256], strides = [1, 1]} : vector<8x384xf32> to vector<1x256xf32>
    %9 = vector.extract_strided_slice %5 {offsets = [3, 0], sizes = [1, 128], strides = [1, 1]} : vector<8x384xf32> to vector<1x128xf32>
    %10 = vector.extract_strided_slice %5 {offsets = [4, 0], sizes = [1, 128], strides = [1, 1]} : vector<8x384xf32> to vector<1x128xf32>
    %11 = vector.extract_strided_slice %5 {offsets = [5, 0], sizes = [1, 128], strides = [1, 1]} : vector<8x384xf32> to vector<1x128xf32>
    %12 = vector.extract_strided_slice %5 {offsets = [6, 0], sizes = [1, 128], strides = [1, 1]} : vector<8x384xf32> to vector<1x128xf32>
    %13 = vector.extract_strided_slice %5 {offsets = [7, 0], sizes = [1, 128], strides = [1, 1]} : vector<8x384xf32> to vector<1x128xf32>
    %14 = arith.truncf %3 : vector<128x128xf32> to vector<128x128xbf16>
    %c0_5 = arith.constant 0 : index
    %c0_6 = arith.constant 0 : index
    %c0_7 = arith.constant 0 : index
    %15 = vector.load %arg2[%c0_5, %c0_6, %c0_7] : memref<1x128x384xbf16, #tpu.memory_space<vmem>>, vector<1x128x384xbf16>
    %16 = vector.shape_cast %15 : vector<1x128x384xbf16> to vector<128x384xbf16>
    %cst = arith.constant dense<0.000000e+00> : vector<128x384xf32>
    %17 = tpu.matmul %14, %16, %cst {dimension_numbers = #tpu.dot_dimension_numbers<[1], [0], [0], [1], [0, 0, 1, 1], [], []>} : vector<128x128xbf16>, vector<128x384xbf16>, vector<128x384xf32> -> vector<128x384xf32>
    %18 = vector.broadcast %6 : vector<1x384xf32> to vector<128x384xf32>
    %19 = arith.addf %17, %18 : vector<128x384xf32>
    %20 = vector.extract_strided_slice %19 {offsets = [0, 0], sizes = [128, 128], strides = [1, 1]} : vector<128x384xf32> to vector<128x128xf32>
    %21 = vector.extract_strided_slice %20 {offsets = [0, 0], sizes = [128, 32], strides = [1, 1]} : vector<128x128xf32> to vector<128x32xf32>
    %22 = vector.extract_strided_slice %20 {offsets = [0, 32], sizes = [128, 32], strides = [1, 1]} : vector<128x128xf32> to vector<128x32xf32>
    %23 = vector.extract_strided_slice %20 {offsets = [0, 64], sizes = [128, 32], strides = [1, 1]} : vector<128x128xf32> to vector<128x32xf32>
    %24 = vector.extract_strided_slice %20 {offsets = [0, 96], sizes = [128, 32], strides = [1, 1]} : vector<128x128xf32> to vector<128x32xf32>
    %25 = vector.shape_cast %21 : vector<128x32xf32> to vector<1x128x32xf32>
    %26 = vector.shape_cast %22 : vector<128x32xf32> to vector<1x128x32xf32>
    %27 = vector.shape_cast %23 : vector<128x32xf32> to vector<1x128x32xf32>
    %28 = vector.shape_cast %24 : vector<128x32xf32> to vector<1x128x32xf32>
    %29 = tpu.concatenate %25, %26, %27, %28 in 0 : vector<1x128x32xf32>, vector<1x128x32xf32>, vector<1x128x32xf32>, vector<1x128x32xf32> -> vector<4x128x32xf32>
    %30 = arith.truncf %29 : vector<4x128x32xf32> to vector<4x128x32xbf16>
    %31 = vector.extract_strided_slice %19 {offsets = [0, 128], sizes = [128, 128], strides = [1, 1]} : vector<128x384xf32> to vector<128x128xf32>
    %32 = vector.extract_strided_slice %31 {offsets = [0, 0], sizes = [128, 32], strides = [1, 1]} : vector<128x128xf32> to vector<128x32xf32>
    %33 = vector.extract_strided_slice %31 {offsets = [0, 32], sizes = [128, 32], strides = [1, 1]} : vector<128x128xf32> to vector<128x32xf32>
    %34 = vector.extract_strided_slice %31 {offsets = [0, 64], sizes = [128, 32], strides = [1, 1]} : vector<128x128xf32> to vector<128x32xf32>
    %35 = vector.extract_strided_slice %31 {offsets = [0, 96], sizes = [128, 32], strides = [1, 1]} : vector<128x128xf32> to vector<128x32xf32>
    %36 = vector.shape_cast %32 : vector<128x32xf32> to vector<1x128x32xf32>
    %37 = vector.shape_cast %33 : vector<128x32xf32> to vector<1x128x32xf32>
    %38 = vector.shape_cast %34 : vector<128x32xf32> to vector<1x128x32xf32>
    %39 = vector.shape_cast %35 : vector<128x32xf32> to vector<1x128x32xf32>
    %40 = tpu.concatenate %36, %37, %38, %39 in 0 : vector<1x128x32xf32>, vector<1x128x32xf32>, vector<1x128x32xf32>, vector<1x128x32xf32> -> vector<4x128x32xf32>
    %41 = arith.truncf %40 : vector<4x128x32xf32> to vector<4x128x32xbf16>
    %42 = vector.extract_strided_slice %19 {offsets = [0, 256], sizes = [128, 128], strides = [1, 1]} : vector<128x384xf32> to vector<128x128xf32>
    %43 = vector.extract_strided_slice %42 {offsets = [0, 0], sizes = [128, 32], strides = [1, 1]} : vector<128x128xf32> to vector<128x32xf32>
    %44 = vector.extract_strided_slice %42 {offsets = [0, 32], sizes = [128, 32], strides = [1, 1]} : vector<128x128xf32> to vector<128x32xf32>
    %45 = vector.extract_strided_slice %42 {offsets = [0, 64], sizes = [128, 32], strides = [1, 1]} : vector<128x128xf32> to vector<128x32xf32>
    %46 = vector.extract_strided_slice %42 {offsets = [0, 96], sizes = [128, 32], strides = [1, 1]} : vector<128x128xf32> to vector<128x32xf32>
    %47 = vector.shape_cast %43 : vector<128x32xf32> to vector<1x128x32xf32>
    %48 = vector.shape_cast %44 : vector<128x32xf32> to vector<1x128x32xf32>
    %49 = vector.shape_cast %45 : vector<128x32xf32> to vector<1x128x32xf32>
    %50 = vector.shape_cast %46 : vector<128x32xf32> to vector<1x128x32xf32>
    %51 = tpu.concatenate %47, %48, %49, %50 in 0 : vector<1x128x32xf32>, vector<1x128x32xf32>, vector<1x128x32xf32>, vector<1x128x32xf32> -> vector<4x128x32xf32>
    %52 = arith.truncf %51 : vector<4x128x32xf32> to vector<4x128x32xbf16>
    "tpu.trace_start"() <{level = 10 : i32, message = "hqd,hkd->hqk"}> : () -> ()
    %cst_8 = arith.constant dense<0.000000e+00> : vector<4x128x128xf32>
    %53 = tpu.matmul %30, %41, %cst_8 {dimension_numbers = #tpu.dot_dimension_numbers<[2], [2], [1], [1], [0, 0, 0, 1, 1, 1], [0], [0]>} : vector<4x128x32xbf16>, vector<4x128x32xbf16>, vector<4x128x128xf32> -> vector<4x128x128xf32>
    "tpu.trace_stop"() : () -> ()
    %54 = tpu.iota {dimensions = array<i32: 0>} : vector<128x128xi32>
    %55 = tpu.iota {dimensions = array<i32: 1>} : vector<128x128xi32>
    %56 = arith.cmpi sle, %55, %54 : vector<128x128xi32>
    %57 = vector.shape_cast %56 : vector<128x128xi1> to vector<1x128x128xi1>
    %cst_9 = arith.constant -1.000000e+30 : f32
    %58 = vector.shape_cast %57 : vector<1x128x128xi1> to vector<1x128x128xi1>
    %59 = vector.broadcast %58 : vector<1x128x128xi1> to vector<4x128x128xi1>
    %60 = vector.broadcast %cst_9 : f32 to vector<4x128x128xf32>
    %61 = arith.select %59, %53, %60 : vector<4x128x128xi1>, vector<4x128x128xf32>
    %cst_10 = arith.constant dense<0xFF800000> : vector<4x128xf32>
    %62 = vector.multi_reduction <maximumf>, %61, %cst_10 [2] : vector<4x128x128xf32> to vector<4x128xf32>
    %63 = vector.shape_cast %62 : vector<4x128xf32> to vector<4x128x1xf32>
    %64 = vector.broadcast %63 : vector<4x128x1xf32> to vector<4x128x128xf32>
    %65 = arith.subf %61, %64 : vector<4x128x128xf32>
    %66 = math.exp %65 : vector<4x128x128xf32>
    %cst_11 = arith.constant dense<0.000000e+00> : vector<4x128xf32>
    %67 = vector.multi_reduction <add>, %66, %cst_11 [2] : vector<4x128x128xf32> to vector<4x128xf32>
    %68 = vector.shape_cast %67 : vector<4x128xf32> to vector<4x128x1xf32>
    %69 = tpu.reciprocal %68 {approx = true} : vector<4x128x1xf32> -> vector<4x128x1xf32>
    %70 = vector.broadcast %69 : vector<4x128x1xf32> to vector<4x128x128xf32>
    %71 = arith.mulf %66, %70 : vector<4x128x128xf32>
    %72 = arith.truncf %71 : vector<4x128x128xf32> to vector<4x128x128xbf16>
    "tpu.trace_start"() <{level = 10 : i32, message = "hqk,hkd->hqd"}> : () -> ()
    %cst_12 = arith.constant dense<0.000000e+00> : vector<4x128x32xf32>
    %73 = tpu.matmul %72, %52, %cst_12 {dimension_numbers = #tpu.dot_dimension_numbers<[2], [1], [1], [2], [0, 0, 0, 1, 1, 2], [0], [0]>} : vector<4x128x128xbf16>, vector<4x128x32xbf16>, vector<4x128x32xf32> -> vector<4x128x32xf32>
    "tpu.trace_stop"() : () -> ()
    %74 = vector.extract_strided_slice %73 {offsets = [0, 0, 0], sizes = [1, 128, 32], strides = [1, 1, 1]} : vector<4x128x32xf32> to vector<1x128x32xf32>
    %75 = vector.shape_cast %74 : vector<1x128x32xf32> to vector<128x32xf32>
    %76 = vector.extract_strided_slice %73 {offsets = [1, 0, 0], sizes = [1, 128, 32], strides = [1, 1, 1]} : vector<4x128x32xf32> to vector<1x128x32xf32>
    %77 = vector.shape_cast %76 : vector<1x128x32xf32> to vector<128x32xf32>
    %78 = vector.extract_strided_slice %73 {offsets = [2, 0, 0], sizes = [1, 128, 32], strides = [1, 1, 1]} : vector<4x128x32xf32> to vector<1x128x32xf32>
    %79 = vector.shape_cast %78 : vector<1x128x32xf32> to vector<128x32xf32>
    %80 = vector.extract_strided_slice %73 {offsets = [3, 0, 0], sizes = [1, 128, 32], strides = [1, 1, 1]} : vector<4x128x32xf32> to vector<1x128x32xf32>
    %81 = vector.shape_cast %80 : vector<1x128x32xf32> to vector<128x32xf32>
    %82 = tpu.concatenate %75, %77, %79, %81 in 1 : vector<128x32xf32>, vector<128x32xf32>, vector<128x32xf32>, vector<128x32xf32> -> vector<128x128xf32>
    %83 = arith.truncf %82 : vector<128x128xf32> to vector<128x128xbf16>
    %c0_13 = arith.constant 0 : index
    %c0_14 = arith.constant 0 : index
    %c0_15 = arith.constant 0 : index
    %84 = vector.load %arg3[%c0_13, %c0_14, %c0_15] : memref<1x128x128xbf16, #tpu.memory_space<vmem>>, vector<1x128x128xbf16>
    %85 = vector.shape_cast %84 : vector<1x128x128xbf16> to vector<128x128xbf16>
    %cst_16 = arith.constant dense<0.000000e+00> : vector<128x128xf32>
    %86 = tpu.matmul %83, %85, %cst_16 {dimension_numbers = #tpu.dot_dimension_numbers<[1], [0], [0], [1], [0, 0, 1, 1], [], []>} : vector<128x128xbf16>, vector<128x128xbf16>, vector<128x128xf32> -> vector<128x128xf32>
    %87 = vector.broadcast %7 : vector<1x128xf32> to vector<128x128xf32>
    %88 = arith.addf %86, %87 : vector<128x128xf32>
    %89 = arith.addf %3, %88 : vector<128x128xf32>
    %cst_17 = arith.constant dense<0.000000e+00> : vector<128xf32>
    %90 = vector.multi_reduction <add>, %89, %cst_17 [1] : vector<128x128xf32> to vector<128xf32>
    %91 = vector.shape_cast %90 : vector<128xf32> to vector<128x1xf32>
    %cst_18 = arith.constant 1.280000e+02 : f32
    %92 = vector.broadcast %cst_18 : f32 to vector<128x1xf32>
    %93 = arith.divf %91, %92 : vector<128x1xf32>
    %94 = vector.broadcast %93 : vector<128x1xf32> to vector<128x128xf32>
    %95 = arith.subf %89, %94 : vector<128x128xf32>
    %96 = arith.mulf %95, %95 : vector<128x128xf32>
    %cst_19 = arith.constant dense<0.000000e+00> : vector<128xf32>
    %97 = vector.multi_reduction <add>, %96, %cst_19 [1] : vector<128x128xf32> to vector<128xf32>
    %98 = vector.shape_cast %97 : vector<128xf32> to vector<128x1xf32>
    %cst_20 = arith.constant 1.280000e+02 : f32
    %99 = vector.broadcast %cst_20 : f32 to vector<128x1xf32>
    %100 = arith.divf %98, %99 : vector<128x1xf32>
    %101 = vector.broadcast %93 : vector<128x1xf32> to vector<128x128xf32>
    %102 = arith.subf %89, %101 : vector<128x128xf32>
    %cst_21 = arith.constant 9.99999974E-6 : f32
    %103 = vector.broadcast %cst_21 : f32 to vector<128x1xf32>
    %104 = arith.addf %100, %103 : vector<128x1xf32>
    %105 = math.rsqrt %104 : vector<128x1xf32>
    %106 = vector.broadcast %105 : vector<128x1xf32> to vector<128x128xf32>
    %107 = arith.mulf %102, %106 : vector<128x128xf32>
    %108 = vector.broadcast %10 : vector<1x128xf32> to vector<128x128xf32>
    %109 = arith.mulf %107, %108 : vector<128x128xf32>
    %110 = vector.broadcast %11 : vector<1x128xf32> to vector<128x128xf32>
    %111 = arith.addf %109, %110 : vector<128x128xf32>
    %112 = arith.truncf %111 : vector<128x128xf32> to vector<128x128xbf16>
    %c0_22 = arith.constant 0 : index
    %c0_23 = arith.constant 0 : index
    %c0_24 = arith.constant 0 : index
    %113 = vector.load %arg4[%c0_22, %c0_23, %c0_24] : memref<1x128x256xbf16, #tpu.memory_space<vmem>>, vector<1x128x256xbf16>
    %114 = vector.shape_cast %113 : vector<1x128x256xbf16> to vector<128x256xbf16>
    %cst_25 = arith.constant dense<0.000000e+00> : vector<128x256xf32>
    %115 = tpu.matmul %112, %114, %cst_25 {dimension_numbers = #tpu.dot_dimension_numbers<[1], [0], [0], [1], [0, 0, 1, 1], [], []>} : vector<128x128xbf16>, vector<128x256xbf16>, vector<128x256xf32> -> vector<128x256xf32>
    %116 = vector.broadcast %8 : vector<1x256xf32> to vector<128x256xf32>
    %117 = arith.addf %115, %116 : vector<128x256xf32>
    %cst_26 = arith.constant 0.000000e+00 : f32
    %118 = vector.broadcast %cst_26 : f32 to vector<128x256xf32>
    %119 = arith.maximumf %117, %118 : vector<128x256xf32>
    %120 = arith.truncf %119 : vector<128x256xf32> to vector<128x256xbf16>
    %c0_27 = arith.constant 0 : index
    %c0_28 = arith.constant 0 : index
    %c0_29 = arith.constant 0 : index
    %121 = vector.load %arg5[%c0_27, %c0_28, %c0_29] : memref<1x256x128xbf16, #tpu.memory_space<vmem>>, vector<1x256x128xbf16>
    %122 = vector.shape_cast %121 : vector<1x256x128xbf16> to vector<256x128xbf16>
    %cst_30 = arith.constant dense<0.000000e+00> : vector<128x128xf32>
    %123 = tpu.matmul %120, %122, %cst_30 {dimension_numbers = #tpu.dot_dimension_numbers<[1], [0], [0], [1], [0, 0, 1, 1], [], []>} : vector<128x256xbf16>, vector<256x128xbf16>, vector<128x128xf32> -> vector<128x128xf32>
    %124 = vector.broadcast %9 : vector<1x128xf32> to vector<128x128xf32>
    %125 = arith.addf %123, %124 : vector<128x128xf32>
    %126 = arith.addf %111, %125 : vector<128x128xf32>
    %cst_31 = arith.constant dense<0.000000e+00> : vector<128xf32>
    %127 = vector.multi_reduction <add>, %126, %cst_31 [1] : vector<128x128xf32> to vector<128xf32>
    %128 = vector.shape_cast %127 : vector<128xf32> to vector<128x1xf32>
    %cst_32 = arith.constant 1.280000e+02 : f32
    %129 = vector.broadcast %cst_32 : f32 to vector<128x1xf32>
    %130 = arith.divf %128, %129 : vector<128x1xf32>
    %131 = vector.broadcast %130 : vector<128x1xf32> to vector<128x128xf32>
    %132 = arith.subf %126, %131 : vector<128x128xf32>
    %133 = arith.mulf %132, %132 : vector<128x128xf32>
    %cst_33 = arith.constant dense<0.000000e+00> : vector<128xf32>
    %134 = vector.multi_reduction <add>, %133, %cst_33 [1] : vector<128x128xf32> to vector<128xf32>
    %135 = vector.shape_cast %134 : vector<128xf32> to vector<128x1xf32>
    %cst_34 = arith.constant 1.280000e+02 : f32
    %136 = vector.broadcast %cst_34 : f32 to vector<128x1xf32>
    %137 = arith.divf %135, %136 : vector<128x1xf32>
    %138 = vector.broadcast %130 : vector<128x1xf32> to vector<128x128xf32>
    %139 = arith.subf %126, %138 : vector<128x128xf32>
    %cst_35 = arith.constant 9.99999974E-6 : f32
    %140 = vector.broadcast %cst_35 : f32 to vector<128x1xf32>
    %141 = arith.addf %137, %140 : vector<128x1xf32>
    %142 = math.rsqrt %141 : vector<128x1xf32>
    %143 = vector.broadcast %142 : vector<128x1xf32> to vector<128x128xf32>
    %144 = arith.mulf %139, %143 : vector<128x128xf32>
    %145 = vector.broadcast %12 : vector<1x128xf32> to vector<128x128xf32>
    %146 = arith.mulf %144, %145 : vector<128x128xf32>
    %147 = vector.broadcast %13 : vector<1x128xf32> to vector<128x128xf32>
    %148 = arith.addf %146, %147 : vector<128x128xf32>
    %c0_36 = arith.constant 0 : index
    %c0_37 = arith.constant 0 : index
    %149 = vector.load %arg7[%c0_36, %c0_37] : memref<128x128xf32, #tpu.memory_space<vmem>>, vector<128x128xf32>
    tpu.vector_store %arg7[%c0_36, %c0_37], %148 {strides = array<i32>} : memref<128x128xf32, #tpu.memory_space<vmem>>, vector<128x128xf32>,
    return
  }
  func.func @transform_0(%arg0: i32) -> (i32, i32) {
    %c0_i32 = arith.constant 0 : i32
    %c0_i32_0 = arith.constant 0 : i32
    %c0_i32_1 = arith.constant 0 : i32
    return %c0_i32, %c0_i32_0 : i32, i32
  }
  func.func @transform_1(%arg0: i32) -> (i32, i32, i32) {
    %c0_i32 = arith.constant 0 : i32
    %c0_i32_0 = arith.constant 0 : i32
    %c0_i32_1 = arith.constant 0 : i32
    return %arg0, %c0_i32, %c0_i32_0 : i32, i32, i32
  }
  func.func @transform_2(%arg0: i32) -> (i32, i32, i32) {
    %c0_i32 = arith.constant 0 : i32
    %c0_i32_0 = arith.constant 0 : i32
    %c0_i32_1 = arith.constant 0 : i32
    return %arg0, %c0_i32, %c0_i32_0 : i32, i32, i32
  }
  func.func @transform_3(%arg0: i32) -> (i32, i32, i32) {
    %c0_i32 = arith.constant 0 : i32
    %c0_i32_0 = arith.constant 0 : i32
    %c0_i32_1 = arith.constant 0 : i32
    return %arg0, %c0_i32, %c0_i32_0 : i32, i32, i32
  }
  func.func @transform_4(%arg0: i32) -> (i32, i32, i32) {
    %c0_i32 = arith.constant 0 : i32
    %c0_i32_0 = arith.constant 0 : i32
    %c0_i32_1 = arith.constant 0 : i32
    return %arg0, %c0_i32, %c0_i32_0 : i32, i32, i32
  }
  func.func @transform_5(%arg0: i32) -> (i32, i32, i32) {
    %c0_i32 = arith.constant 0 : i32
    %c0_i32_0 = arith.constant 0 : i32
    %c0_i32_1 = arith.constant 0 : i32
    return %arg0, %c0_i32, %c0_i32_0 : i32, i32, i32
  }
  func.func @transform_6(%arg0: i32) -> (i32, i32) {
    %c0_i32 = arith.constant 0 : i32
    %c0_i32_0 = arith.constant 0 : i32
    %c0_i32_1 = arith.constant 0 : i32
    return %c0_i32, %c0_i32_0 : i32, i32
  }
}

</mosaic_0001>

<llo_original>
// kernel: trans_encoder_forward.1
$region0: #{trans_encoder_forward.1}
  #allocation0 [shape = 'u32[]', space=smem, size = 0x4, offset = 0x4, fixed_abs, tag = 'smem constant byte address 0x4 - core index']
  #allocation1 [shape = 'u32[144,128]{1,0:T(1,128)}', space=vmem, size = 0x12000, scoped, tag = 'internal scratch']
  %s0 = inlined_call_operand.vmem [shape: f32[128,128], index: 0, kind: input, shape index: {}]
  %s1 = inlined_call_operand.vmem [shape: bf16[2,128,384], index: 1, kind: input, shape index: {}]
  %s2 = inlined_call_operand.vmem [shape: bf16[2,128,128], index: 2, kind: input, shape index: {}]
  %s3 = inlined_call_operand.vmem [shape: bf16[2,128,256], index: 3, kind: input, shape index: {}]
  %s4 = inlined_call_operand.vmem [shape: bf16[2,256,128], index: 4, kind: input, shape index: {}]
  %s5 = inlined_call_operand.vmem [shape: f32[2,8,384], index: 5, kind: input, shape index: {}]
  %s6 = inlined_call_operand.hbm [shape: f32[128,128], index: 6, kind: output, shape index: {}]
  %s7 = sld [smem:[#allocation0]]
  $region61: #{trans_encoder_forward.1} parent=0
    _
  %s9 = ssub.s32 1, %s7
  %s10 = scalar_select 0, %s9, %s7
  $region1: #{trans_encoder_forward.1} parent=0
    #allocation2 [shape = 'u8[65536]{0}', space=vmem, size = 0x10000, scoped, tag = 'output window, operand 0, single buffered']
    #allocation3 [shape = 's32[2]{0}', space=sflag, size = 0x8, scoped, tag = 'scoped memory for trans_encoder_forward.1']
    %11 = vsyncpa [#allocation3], 0
    loop: start=0, step=1, limit=4
    $region2: #{trans_encoder_forward.1} parent=1 // loop_pre_header
      _
    $region3: #{trans_encoder_forward.1} parent=1 // loop_header
      %s13 = sphi 0, %s17
      %p14 = scmp.ge.s32.totalorder %s13, 4
      %s21 = sphi 0, %s21
      %s23 = sphi 0, %s21
      %s24 = sphi 0, %s23
      %s38 = sphi 0, %s24
      %s44 = sphi 0, %s46
      %s47 = sphi 0, %s44
      %s48 = sphi 0, %s47
      %s64 = sphi 0, %s48
      %s70 = sphi 0, %s72
      %s73 = sphi 0, %s70
      %s74 = sphi 0, %s73
      %s90 = sphi 0, %s74
      %s96 = sphi 0, %s98
      %s99 = sphi 0, %s96
      %s100 = sphi 0, %s99
      %s116 = sphi 0, %s100
      %s122 = sphi 0, %s124
      %s125 = sphi 0, %s122
      %s126 = sphi 0, %s125
      %s142 = sphi 0, %s126
      %s148 = sphi 0, %s150
      %s151 = sphi 0, %s148
      %s152 = sphi 0, %s151
      %s168 = sphi 0, %s152
      %s172 = sphi 0, %s172
      %s174 = sphi 0, %s172
      %s175 = sphi 0, %s174
      %s189 = sphi 0, %s175
    $region4: #{trans_encoder_forward.1} parent=1 // loop_header_branch
      %16 = sbr.rel (%p14) target = $region8
    $region5: #{trans_encoder_forward.1} parent=1 // loop_body
      %s18 = ssub.s32 %s13, 1
      %s19 = ssub.s32 %s13, 2
      %s20 = sadd.s32 %s13, 1
      %s22 = sadd.s32 %s21, 1
      %p25 = scmp.eq.s32.totalorder %s13, 1
      %p26 = scmp.ne.s32.totalorder %s21, %s23
      %p27 = scmp.eq.s32.totalorder %s13, 0
      %p28 = por %p26, %p27
      %p29 = scmp.ne.s32.totalorder %s21, %s23
      %p30 = scmp.eq.s32.totalorder %s18, 1
      %p31 = por %p29, %p30
      %p32 = scmp.ne.s32.totalorder %s23, %s24
      %p33 = scmp.eq.s32.totalorder %s18, 0
      %p34 = por %p32, %p33
      %p35 = scmp.ne.s32.totalorder %s23, %s24
      %p36 = scmp.eq.s32.totalorder %s19, 1
      %p37 = por %p35, %p36
      %p39 = scmp.ne.s32.totalorder %s24, %s38
      %p40 = scmp.eq.s32.totalorder %s19, 0
      %p41 = por %p39, %p40
      %s42 = ssub.s32 %s13, %s20
      %p43 = scmp.eq.s32.totalorder %s42, 0
      %s45 = sadd.s32 %s44, 1
      %s46 = scalar_select %p43, %s44, %s45
      %p49 = pneg %p43
      %p50 = scmp.eq.s32.totalorder %s13, 1
      %p51 = por %p49, %p50
      %p52 = scmp.ne.s32.totalorder %s44, %s47
      %p53 = scmp.eq.s32.totalorder %s13, 0
      %p54 = por %p52, %p53
      %p55 = scmp.ne.s32.totalorder %s44, %s47
      %p56 = scmp.eq.s32.totalorder %s18, 1
      %p57 = por %p55, %p56
      %p58 = scmp.ne.s32.totalorder %s47, %s48
      %p59 = scmp.eq.s32.totalorder %s18, 0
      %p60 = por %p58, %p59
      %p61 = scmp.ne.s32.totalorder %s47, %s48
      %p62 = scmp.eq.s32.totalorder %s19, 1
      %p63 = por %p61, %p62
      %p65 = scmp.ne.s32.totalorder %s48, %s64
      %p66 = scmp.eq.s32.totalorder %s19, 0
      %p67 = por %p65, %p66
      %s68 = ssub.s32 %s13, %s20
      %p69 = scmp.eq.s32.totalorder %s68, 0
      %s71 = sadd.s32 %s70, 1
      %s72 = scalar_select %p69, %s70, %s71
      %p75 = pneg %p69
      %p76 = scmp.eq.s32.totalorder %s13, 1
      %p77 = por %p75, %p76
      %p78 = scmp.ne.s32.totalorder %s70, %s73
      %p79 = scmp.eq.s32.totalorder %s13, 0
      %p80 = por %p78, %p79
      %p81 = scmp.ne.s32.totalorder %s70, %s73
      %p82 = scmp.eq.s32.totalorder %s18, 1
      %p83 = por %p81, %p82
      %p84 = scmp.ne.s32.totalorder %s73, %s74
      %p85 = scmp.eq.s32.totalorder %s18, 0
      %p86 = por %p84, %p85
      %p87 = scmp.ne.s32.totalorder %s73, %s74
      %p88 = scmp.eq.s32.totalorder %s19, 1
      %p89 = por %p87, %p88
      %p91 = scmp.ne.s32.totalorder %s74, %s90
      %p92 = scmp.eq.s32.totalorder %s19, 0
      %p93 = por %p91, %p92
      %s94 = ssub.s32 %s13, %s20
      %p95 = scmp.eq.s32.totalorder %s94, 0
      %s97 = sadd.s32 %s96, 1
      %s98 = scalar_select %p95, %s96, %s97
      %p101 = pneg %p95
      %p102 = scmp.eq.s32.totalorder %s13, 1
      %p103 = por %p101, %p102
      %p104 = scmp.ne.s32.totalorder %s96, %s99
      %p105 = scmp.eq.s32.totalorder %s13, 0
      %p106 = por %p104, %p105
      %p107 = scmp.ne.s32.totalorder %s96, %s99
      %p108 = scmp.eq.s32.totalorder %s18, 1
      %p109 = por %p107, %p108
      %p110 = scmp.ne.s32.totalorder %s99, %s100
      %p111 = scmp.eq.s32.totalorder %s18, 0
      %p112 = por %p110, %p111
      %p113 = scmp.ne.s32.totalorder %s99, %s100
      %p114 = scmp.eq.s32.totalorder %s19, 1
      %p115 = por %p113, %p114
      %p117 = scmp.ne.s32.totalorder %s100, %s116
      %p118 = scmp.eq.s32.totalorder %s19, 0
      %p119 = por %p117, %p118
      %s120 = ssub.s32 %s13, %s20
      %p121 = scmp.eq.s32.totalorder %s120, 0
      %s123 = sadd.s32 %s122, 1
      %s124 = scalar_select %p121, %s122, %s123
      %p127 = pneg %p121
      %p128 = scmp.eq.s32.totalorder %s13, 1
      %p129 = por %p127, %p128
      %p130 = scmp.ne.s32.totalorder %s122, %s125
      %p131 = scmp.eq.s32.totalorder %s13, 0
      %p132 = por %p130, %p131
      %p133 = scmp.ne.s32.totalorder %s122, %s125
      %p134 = scmp.eq.s32.totalorder %s18, 1
      %p135 = por %p133, %p134
      %p136 = scmp.ne.s32.totalorder %s125, %s126
      %p137 = scmp.eq.s32.totalorder %s18, 0
      %p138 = por %p136, %p137
      %p139 = scmp.ne.s32.totalorder %s125, %s126
      %p140 = scmp.eq.s32.totalorder %s19, 1
      %p141 = por %p139, %p140
      %p143 = scmp.ne.s32.totalorder %s126, %s142
      %p144 = scmp.eq.s32.totalorder %s19, 0
      %p145 = por %p143, %p144
      %s146 = ssub.s32 %s13, %s20
      %p147 = scmp.eq.s32.totalorder %s146, 0
      %s149 = sadd.s32 %s148, 1
      %s150 = scalar_select %p147, %s148, %s149
      %p153 = pneg %p147
      %p154 = scmp.eq.s32.totalorder %s13, 1
      %p155 = por %p153, %p154
      %p156 = scmp.ne.s32.totalorder %s148, %s151
      %p157 = scmp.eq.s32.totalorder %s13, 0
      %p158 = por %p156, %p157
      %p159 = scmp.ne.s32.totalorder %s148, %s151
      %p160 = scmp.eq.s32.totalorder %s18, 1
      %p161 = por %p159, %p160
      %p162 = scmp.ne.s32.totalorder %s151, %s152
      %p163 = scmp.eq.s32.totalorder %s18, 0
      %p164 = por %p162, %p163
      %p165 = scmp.ne.s32.totalorder %s151, %s152
      %p166 = scmp.eq.s32.totalorder %s19, 1
      %p167 = por %p165, %p166
      %p169 = scmp.ne.s32.totalorder %s152, %s168
      %p170 = scmp.eq.s32.totalorder %s19, 0
      %p171 = por %p169, %p170
      %s173 = sadd.s32 %s172, 1
      %p176 = scmp.eq.s32.totalorder %s13, 1
      %p177 = scmp.ne.s32.totalorder %s172, %s174
      %p178 = scmp.eq.s32.totalorder %s13, 0
      %p179 = por %p177, %p178
      %p180 = scmp.ne.s32.totalorder %s172, %s174
      %p181 = scmp.eq.s32.totalorder %s18, 1
      %p182 = por %p180, %p181
      %p183 = scmp.ne.s32.totalorder %s174, %s175
      %p184 = scmp.eq.s32.totalorder %s18, 0
      %p185 = por %p183, %p184
      %p186 = scmp.ne.s32.totalorder %s174, %s175
      %p187 = scmp.eq.s32.totalorder %s19, 1
      %p188 = por %p186, %p187
      %p190 = scmp.ne.s32.totalorder %s175, %s189
      %p191 = scmp.eq.s32.totalorder %s19, 0
      %p192 = por %p190, %p191
      %p193 = scmp.le.s32.totalorder 1, %s13
      %p194 = scmp.lt.s32.totalorder %s13, 3
      %p195 = pnand %p193, %p194
      %p196 = pneg %p195
      // Predicated region
      $region9: #{trans_encoder_forward.1} parent=5 // pred_check
        _
      $region10: #{trans_encoder_forward.1} parent=5 // pred_check_branch
        %198 = sbr.rel (%p195) target = $region12
      $region11: #{trans_encoder_forward.1} parent=5 // pred_region
        %s199 = ssub.s32 %s13, 1
        // Predicated region
        $region13: #{trans_encoder_forward.1} parent=11 // pred_check
          %p200 = pneg %p34
        $region14: #{trans_encoder_forward.1} parent=11 // pred_check_branch
          %202 = sbr.rel (%p200) target = $region16
        $region15: #{trans_encoder_forward.1} parent=11 // pred_region
          _
        $region16: #{trans_encoder_forward.1} parent=11 // pred_fallthru
          _
      $region12: #{trans_encoder_forward.1} parent=5 // pred_fallthru
        _
      %p203 = scmp.lt.s32.totalorder %s13, 2
      // Predicated region
      $region17: #{trans_encoder_forward.1} parent=5 // pred_check
        %p204 = pneg %p203
      $region18: #{trans_encoder_forward.1} parent=5 // pred_check_branch
        %206 = sbr.rel (%p204) target = $region20
      $region19: #{trans_encoder_forward.1} parent=5 // pred_region
        // Predicated region
        $region21: #{trans_encoder_forward.1} parent=19 // pred_check
          %p207 = pneg %p54
        $region22: #{trans_encoder_forward.1} parent=19 // pred_check_branch
          %209 = sbr.rel (%p207) target = $region24
        $region23: #{trans_encoder_forward.1} parent=19 // pred_region
          %p210 = scmp.lt.s32.totalorder %s13, 1
          %s211 = scalar_select %p210, %s13, 1
          %s212 = smul.addr %s211, 48
          %s213 = smul.addr %s212, 4
          %s214 = scalar_lea.vmem %s1, %s213
        $region24: #{trans_encoder_forward.1} parent=19 // pred_fallthru
          _
        // Predicated region
        $region25: #{trans_encoder_forward.1} parent=19 // pred_check
          %p215 = pneg %p80
        $region26: #{trans_encoder_forward.1} parent=19 // pred_check_branch
          %217 = sbr.rel (%p215) target = $region28
        $region27: #{trans_encoder_forward.1} parent=19 // pred_region
          %p218 = scmp.lt.s32.totalorder %s13, 1
          %s219 = scalar_select %p218, %s13, 1
          %s220 = smul.addr %s219, 16
          %s221 = smul.addr %s220, 4
          %s222 = scalar_lea.vmem %s2, %s221
        $region28: #{trans_encoder_forward.1} parent=19 // pred_fallthru
          _
        // Predicated region
        $region29: #{trans_encoder_forward.1} parent=19 // pred_check
          %p223 = pneg %p106
        $region30: #{trans_encoder_forward.1} parent=19 // pred_check_branch
          %225 = sbr.rel (%p223) target = $region32
        $region31: #{trans_encoder_forward.1} parent=19 // pred_region
          %p226 = scmp.lt.s32.totalorder %s13, 1
          %s227 = scalar_select %p226, %s13, 1
          %s228 = smul.addr %s227, 32
          %s229 = smul.addr %s228, 4
          %s230 = scalar_lea.vmem %s3, %s229
        $region32: #{trans_encoder_forward.1} parent=19 // pred_fallthru
          _
        // Predicated region
        $region33: #{trans_encoder_forward.1} parent=19 // pred_check
          %p231 = pneg %p132
        $region34: #{trans_encoder_forward.1} parent=19 // pred_check_branch
          %233 = sbr.rel (%p231) target = $region36
        $region35: #{trans_encoder_forward.1} parent=19 // pred_region
          %p234 = scmp.lt.s32.totalorder %s13, 1
          %s235 = scalar_select %p234, %s13, 1
          %s236 = smul.addr %s235, 32
          %s237 = smul.addr %s236, 4
          %s238 = scalar_lea.vmem %s4, %s237
        $region36: #{trans_encoder_forward.1} parent=19 // pred_fallthru
          _
        // Predicated region
        $region37: #{trans_encoder_forward.1} parent=19 // pred_check
          %p239 = pneg %p158
        $region38: #{trans_encoder_forward.1} parent=19 // pred_check_branch
          %241 = sbr.rel (%p239) target = $region40
        $region39: #{trans_encoder_forward.1} parent=19 // pred_region
          %p242 = scmp.lt.s32.totalorder %s13, 1
          %s243 = scalar_select %p242, %s13, 1
          %s244 = smul.addr %s243, 3
          %s245 = smul.addr %s244, 8
          %s246 = scalar_lea.vmem %s5, %s245
        $region40: #{trans_encoder_forward.1} parent=19 // pred_fallthru
          _
      $region20: #{trans_encoder_forward.1} parent=5 // pred_fallthru
        _
      %p247 = scmp.le.s32.totalorder 1, %s13
      %p248 = scmp.lt.s32.totalorder %s13, 3
      %p249 = pnand %p247, %p248
      %p250 = pneg %p249
      // Predicated region
      $region41: #{trans_encoder_forward.1} parent=5 // pred_check
        _
      $region42: #{trans_encoder_forward.1} parent=5 // pred_check_branch
        %252 = sbr.rel (%p249) target = $region44
      $region43: #{trans_encoder_forward.1} parent=5 // pred_region
        %s253 = ssub.s32 %s13, 1
        %p254 = pneg %p34
        %p255 = pneg %p31
        %p256 = scmp.lt.s32.totalorder %s18, 1
        %s257 = scalar_select %p256, %s18, 1
        %s258 = smul.addr %s257, 48
        %s259 = smul.addr %s258, 4
        %s260 = scalar_lea.vmem %s1, %s259
        %p261 = pneg %p60
        %p262 = pneg %p57
        %p263 = scmp.lt.s32.totalorder %s18, 1
        %s264 = scalar_select %p263, %s18, 1
        %s265 = smul.addr %s264, 16
        %s266 = smul.addr %s265, 4
        %s267 = scalar_lea.vmem %s2, %s266
        %p268 = pneg %p86
        %p269 = pneg %p83
        %p270 = scmp.lt.s32.totalorder %s18, 1
        %s271 = scalar_select %p270, %s18, 1
        %s272 = smul.addr %s271, 32
        %s273 = smul.addr %s272, 4
        %s274 = scalar_lea.vmem %s3, %s273
        %p275 = pneg %p112
        %p276 = pneg %p109
        %p277 = scmp.lt.s32.totalorder %s18, 1
        %s278 = scalar_select %p277, %s18, 1
        %s279 = smul.addr %s278, 32
        %s280 = smul.addr %s279, 4
        %s281 = scalar_lea.vmem %s4, %s280
        %p282 = pneg %p138
        %p283 = pneg %p135
        %p284 = scmp.lt.s32.totalorder %s18, 1
        %s285 = scalar_select %p284, %s18, 1
        %s286 = smul.addr %s285, 3
        %s287 = smul.addr %s286, 8
        %s288 = scalar_lea.vmem %s5, %s287
        %p289 = pneg %p164
        %p290 = pneg %p161
        %p291 = pneg %p185
        %p292 = pneg %p182
        %p293 = scmp.lt.s32.totalorder %s18, 1
        %s294 = scalar_select %p293, %s18, 1
        %s295 = smul.addr %s294, 48
        %s296 = smul.addr %s295, 4
        %s297 = scalar_lea.vmem %s1, %s296
        %p298 = scmp.lt.s32.totalorder %s18, 1
        %s299 = scalar_select %p298, %s18, 1
        %s300 = smul.addr %s299, 16
        %s301 = smul.addr %s300, 4
        %s302 = scalar_lea.vmem %s2, %s301
        %p303 = scmp.lt.s32.totalorder %s18, 1
        %s304 = scalar_select %p303, %s18, 1
        %s305 = smul.addr %s304, 32
        %s306 = smul.addr %s305, 4
        %s307 = scalar_lea.vmem %s3, %s306
        %p308 = scmp.lt.s32.totalorder %s18, 1
        %s309 = scalar_select %p308, %s18, 1
        %s310 = smul.addr %s309, 32
        %s311 = smul.addr %s310, 4
        %s312 = scalar_lea.vmem %s4, %s311
        %p313 = scmp.lt.s32.totalorder %s18, 1
        %s314 = scalar_select %p313, %s18, 1
        %s315 = smul.addr %s314, 3
        %s316 = smul.addr %s315, 8
        %s317 = scalar_lea.vmem %s5, %s316
        %p319 = scmp.eq.s32.totalorder %s18, 0
        // Predicated region
        $region45: #{trans_encoder_forward.1} parent=43 // pred_check
          %p320 = pneg %p319
        $region46: #{trans_encoder_forward.1} parent=43 // pred_check_branch
          %322 = sbr.rel (%p320) target = $region48
        $region47: #{trans_encoder_forward.1} parent=43 // pred_region
          %v323 = vld [vmem:[%s0] sm:$0xff]
          %v324 = vld [vmem:[%s0 + $0x8] sm:$0xff]
          %v325 = vld [vmem:[%s0 + $0x10] sm:$0xff]
          %v326 = vld [vmem:[%s0 + $0x18] sm:$0xff]
          %v327 = vld [vmem:[%s0 + $0x20] sm:$0xff]
          %v328 = vld [vmem:[%s0 + $0x28] sm:$0xff]
          %v329 = vld [vmem:[%s0 + $0x30] sm:$0xff]
          %v330 = vld [vmem:[%s0 + $0x38] sm:$0xff]
          %v331 = vld [vmem:[%s0 + $0x40] sm:$0xff]
          %v332 = vld [vmem:[%s0 + $0x48] sm:$0xff]
          %v333 = vld [vmem:[%s0 + $0x50] sm:$0xff]
          %v334 = vld [vmem:[%s0 + $0x58] sm:$0xff]
          %v335 = vld [vmem:[%s0 + $0x60] sm:$0xff]
          %v336 = vld [vmem:[%s0 + $0x68] sm:$0xff]
          %v337 = vld [vmem:[%s0 + $0x70] sm:$0xff]
          %v338 = vld [vmem:[%s0 + $0x78] sm:$0xff]
          %339 = vst [vmem:[#allocation2] sm:$0xff] %v323
          %340 = vst [vmem:[#allocation2 + $0x8] sm:$0xff] %v324
          %341 = vst [vmem:[#allocation2 + $0x10] sm:$0xff] %v325
          %342 = vst [vmem:[#allocation2 + $0x18] sm:$0xff] %v326
          %343 = vst [vmem:[#allocation2 + $0x20] sm:$0xff] %v327
          %344 = vst [vmem:[#allocation2 + $0x28] sm:$0xff] %v328
          %345 = vst [vmem:[#allocation2 + $0x30] sm:$0xff] %v329
          %346 = vst [vmem:[#allocation2 + $0x38] sm:$0xff] %v330
          %347 = vst [vmem:[#allocation2 + $0x40] sm:$0xff] %v331
          %348 = vst [vmem:[#allocation2 + $0x48] sm:$0xff] %v332
          %349 = vst [vmem:[#allocation2 + $0x50] sm:$0xff] %v333
          %350 = vst [vmem:[#allocation2 + $0x58] sm:$0xff] %v334
          %351 = vst [vmem:[#allocation2 + $0x60] sm:$0xff] %v335
          %352 = vst [vmem:[#allocation2 + $0x68] sm:$0xff] %v336
          %353 = vst [vmem:[#allocation2 + $0x70] sm:$0xff] %v337
          %354 = vst [vmem:[#allocation2 + $0x78] sm:$0xff] %v338
        $region48: #{trans_encoder_forward.1} parent=43 // pred_fallthru
          _
        %v355 = vld [vmem:[#allocation2] sm:$0xff]
        %v356 = vld [vmem:[#allocation2 + $0x8] sm:$0xff]
        %v357 = vld [vmem:[#allocation2 + $0x10] sm:$0xff]
        %v358 = vld [vmem:[#allocation2 + $0x18] sm:$0xff]
        %v359 = vld [vmem:[#allocation2 + $0x20] sm:$0xff]
        %v360 = vld [vmem:[#allocation2 + $0x28] sm:$0xff]
        %v361 = vld [vmem:[#allocation2 + $0x30] sm:$0xff]
        %v362 = vld [vmem:[#allocation2 + $0x38] sm:$0xff]
        %v363 = vld [vmem:[#allocation2 + $0x40] sm:$0xff]
        %v364 = vld [vmem:[#allocation2 + $0x48] sm:$0xff]
        %v365 = vld [vmem:[#allocation2 + $0x50] sm:$0xff]
        %v366 = vld [vmem:[#allocation2 + $0x58] sm:$0xff]
        %v367 = vld [vmem:[#allocation2 + $0x60] sm:$0xff]
        %v368 = vld [vmem:[#allocation2 + $0x68] sm:$0xff]
        %v369 = vld [vmem:[#allocation2 + $0x70] sm:$0xff]
        %v370 = vld [vmem:[#allocation2 + $0x78] sm:$0xff]
        %v371 = vld [vmem:[%s317] sm:$0xff]
        %v372 = vld [vmem:[%s317 + $0x8] sm:$0xff]
        %v373 = vld [vmem:[%s317 + $0x10] sm:$0xff]
        %v374 = vpack.c.bf16 %v356, %v355
        %v375 = vpack.c.bf16 %v358, %v357
        %v376 = vpack.c.bf16 %v360, %v359
        %v377 = vpack.c.bf16 %v362, %v361
        %v378 = vpack.c.bf16 %v364, %v363
        %v379 = vpack.c.bf16 %v366, %v365
        %v380 = vpack.c.bf16 %v368, %v367
        %v381 = vpack.c.bf16 %v370, %v369
        %v382 = vld [vmem:[%s297] sm:$0xff]
        %v383 = vld [vmem:[%s297 + $0x8] sm:$0xf]
        %v384 = vld [vmem:[%s297 + $0xc] sm:$0xff]
        %v385 = vld [vmem:[%s297 + $0x14] sm:$0xf]
        %v386 = vld [vmem:[%s297 + $0x18] sm:$0xff]
        %v387 = vld [vmem:[%s297 + $0x20] sm:$0xf]
        %v388 = vld [vmem:[%s297 + $0x24] sm:$0xff]
        %v389 = vld [vmem:[%s297 + $0x2c] sm:$0xf]
        %v390 = vld [vmem:[%s297 + $0x30] sm:$0xff]
        %v391 = vld [vmem:[%s297 + $0x38] sm:$0xf]
        %v392 = vld [vmem:[%s297 + $0x3c] sm:$0xff]
        %v393 = vld [vmem:[%s297 + $0x44] sm:$0xf]
        %v394 = vld [vmem:[%s297 + $0x48] sm:$0xff]
        %v395 = vld [vmem:[%s297 + $0x50] sm:$0xf]
        %v396 = vld [vmem:[%s297 + $0x54] sm:$0xff]
        %v397 = vld [vmem:[%s297 + $0x5c] sm:$0xf]
        %v398 = vld [vmem:[%s297 + $0x60] sm:$0xff]
        %v399 = vld [vmem:[%s297 + $0x68] sm:$0xf]
        %v400 = vld [vmem:[%s297 + $0x6c] sm:$0xff]
        %v401 = vld [vmem:[%s297 + $0x74] sm:$0xf]
        %v402 = vld [vmem:[%s297 + $0x78] sm:$0xff]
        %v403 = vld [vmem:[%s297 + $0x80] sm:$0xf]
        %v404 = vld [vmem:[%s297 + $0x84] sm:$0xff]
        %v405 = vld [vmem:[%s297 + $0x8c] sm:$0xf]
        %v406 = vld [vmem:[%s297 + $0x90] sm:$0xff]
        %v407 = vld [vmem:[%s297 + $0x98] sm:$0xf]
        %v408 = vld [vmem:[%s297 + $0x9c] sm:$0xff]
        %v409 = vld [vmem:[%s297 + $0xa4] sm:$0xf]
        %v410 = vld [vmem:[%s297 + $0xa8] sm:$0xff]
        %v411 = vld [vmem:[%s297 + $0xb0] sm:$0xf]
        %v412 = vld [vmem:[%s297 + $0xb4] sm:$0xff]
        %v413 = vld [vmem:[%s297 + $0xbc] sm:$0xf]
        %v414 = vlaneseq
        %v415 = vshrl.u32 %v414, 7
        %v416 = vsub.s32 0, %v415
        %v417 = vrot.slane %v371, %v416
        %v418 = vlaneseq
        %v419 = vshrl.u32 %v418, 7
        %v420 = vsub.s32 0, %v419
        %v421 = vrot.slane %v372, %v420
        %v422 = vlaneseq
        %v423 = vshrl.u32 %v422, 7
        %v424 = vsub.s32 0, %v423
        %v425 = vrot.slane %v373, %v424
        %v458 = vunpack.c.l.b16 %v382
        %v459 = vunpack.c.h.b16 %v382
        %v460 = vunpack.c.l.b16 %v383
        %v461 = vunpack.c.l.b16 %v384
        %v462 = vunpack.c.h.b16 %v384
        %v463 = vunpack.c.l.b16 %v385
        %v464 = vunpack.c.l.b16 %v386
        %v465 = vunpack.c.h.b16 %v386
        %v466 = vunpack.c.l.b16 %v387
        %v467 = vunpack.c.l.b16 %v388
        %v468 = vunpack.c.h.b16 %v388
        %v469 = vunpack.c.l.b16 %v389
        %v470 = vunpack.c.l.b16 %v390
        %v471 = vunpack.c.h.b16 %v390
        %v472 = vunpack.c.l.b16 %v391
        %v473 = vunpack.c.l.b16 %v392
        %v474 = vunpack.c.h.b16 %v392
        %v475 = vunpack.c.l.b16 %v393
        %v476 = vunpack.c.l.b16 %v394
        %v477 = vunpack.c.h.b16 %v394
        %v478 = vunpack.c.l.b16 %v395
        %v479 = vunpack.c.l.b16 %v396
        %v480 = vunpack.c.h.b16 %v396
        %v481 = vunpack.c.l.b16 %v397
        %v482 = vunpack.c.l.b16 %v398
        %v483 = vunpack.c.h.b16 %v398
        %v484 = vunpack.c.l.b16 %v399
        %v485 = vunpack.c.l.b16 %v400
        %v486 = vunpack.c.h.b16 %v400
        %v487 = vunpack.c.l.b16 %v401
        %v488 = vunpack.c.l.b16 %v402
        %v489 = vunpack.c.h.b16 %v402
        %v490 = vunpack.c.l.b16 %v403
        %v491 = vunpack.c.l.b16 %v404
        %v492 = vunpack.c.h.b16 %v404
        %v493 = vunpack.c.l.b16 %v405
        %v494 = vunpack.c.l.b16 %v406
        %v495 = vunpack.c.h.b16 %v406
        %v496 = vunpack.c.l.b16 %v407
        %v497 = vunpack.c.l.b16 %v408
        %v498 = vunpack.c.h.b16 %v408
        %v499 = vunpack.c.l.b16 %v409
        %v500 = vunpack.c.l.b16 %v410
        %v501 = vunpack.c.h.b16 %v410
        %v502 = vunpack.c.l.b16 %v411
        %v503 = vunpack.c.l.b16 %v412
        %v504 = vunpack.c.h.b16 %v412
        %v505 = vunpack.c.l.b16 %v413
        %v506 = vpack.c.b16 %v461, %v458
        %v507 = vpack.c.b16 %v462, %v459
        %v508 = vpack.c.b16 %v463, %v460
        %v509 = vpack.c.b16 %v467, %v464
        %v510 = vpack.c.b16 %v468, %v465
        %v511 = vpack.c.b16 %v469, %v466
        %v512 = vpack.c.b16 %v473, %v470
        %v513 = vpack.c.b16 %v474, %v471
        %v514 = vpack.c.b16 %v475, %v472
        %v515 = vpack.c.b16 %v479, %v476
        %v516 = vpack.c.b16 %v480, %v477
        %v517 = vpack.c.b16 %v481, %v478
        %v518 = vpack.c.b16 %v485, %v482
        %v519 = vpack.c.b16 %v486, %v483
        %v520 = vpack.c.b16 %v487, %v484
        %v521 = vpack.c.b16 %v491, %v488
        %v522 = vpack.c.b16 %v492, %v489
        %v523 = vpack.c.b16 %v493, %v490
        %v524 = vpack.c.b16 %v497, %v494
        %v525 = vpack.c.b16 %v498, %v495
        %v526 = vpack.c.b16 %v499, %v496
        %v527 = vpack.c.b16 %v503, %v500
        %v528 = vpack.c.b16 %v504, %v501
        %v529 = vpack.c.b16 %v505, %v502
        %554 = vmatprep.subr.bf16.mxu0 %v528
        %555 = vmatpush1.bf16.msra.mxu0 %v527
        %556 = vmatprep.subr.bf16.mxu0 %v525
        %557 = vmatpush1.bf16.msra.mxu0 %v524
        %558 = vmatprep.subr.bf16.mxu0 %v522
        %559 = vmatpush1.bf16.msra.mxu0 %v521
        %560 = vmatprep.subr.bf16.mxu0 %v519
        %561 = vmatpush1.bf16.msra.mxu0 %v518
        %562 = vmatprep.subr.bf16.mxu0 %v516
        %563 = vmatpush1.bf16.msra.mxu0 %v515
        %564 = vmatprep.subr.bf16.mxu0 %v513
        %565 = vmatpush1.bf16.msra.mxu0 %v512
        %566 = vmatprep.subr.bf16.mxu0 %v510
        %567 = vmatpush1.bf16.msra.mxu0 %v509
        %568 = vmatprep.subr.bf16.mxu0 %v507
        %569 = vmatpush1.bf16.msra.mxu0 %v506
        %570 = vmatprep.subr.bf16.mxu0 0
        %571 = vmatpush2.bf16.msra.mxu0 0
        %572 = vmatprep.subr.bf16.mxu0 0
        %573 = vmatpush2.bf16.msra.mxu0 0
        %574 = vmatprep.subr.bf16.mxu0 0
        %575 = vmatpush2.bf16.msra.mxu0 0
        %576 = vmatprep.subr.bf16.mxu0 0
        %577 = vmatpush2.bf16.msra.mxu0 0
        %578 = vmatprep.subr.bf16.mxu0 0
        %579 = vmatpush2.bf16.msra.mxu0 0
        %580 = vmatprep.subr.bf16.mxu0 0
        %581 = vmatpush2.bf16.msra.mxu0 0
        %582 = vmatprep.subr.bf16.mxu0 0
        %583 = vmatpush2.bf16.msra.mxu0 0
        %584 = vmatprep.subr.bf16.mxu0 0
        %585 = vmatpush2.bf16.msra.mxu0 0
        %586 = vmatprep.mubr.bf16.mxu0 0
        %587 = vmatmul.mubr.bf16.gmra.mxu0 %v374
        %v588 = vpop.f32.mrf.mxu0
        %v589 = vadd.f32 %v417, %v588
        %v590 = vpop.f32.mrf.mxu0
        %v591 = vadd.f32 %v421, %v590
        %v592 = vpop.f32.mrf.mxu0
        %v593 = vadd.f32 %v417, %v592
        %v594 = vpop.f32.mrf.mxu0
        %v595 = vadd.f32 %v421, %v594
        %596 = vmatprep.mubr.bf16.mxu0 0
        %597 = vmatmul.mubr.bf16.gmra.mxu0 %v375
        %v598 = vpop.f32.mrf.mxu0
        %v599 = vadd.f32 %v417, %v598
        %v600 = vpop.f32.mrf.mxu0
        %v601 = vadd.f32 %v421, %v600
        %v602 = vpop.f32.mrf.mxu0
        %v603 = vadd.f32 %v417, %v602
        %v604 = vpop.f32.mrf.mxu0
        %v605 = vadd.f32 %v421, %v604
        %606 = vmatprep.mubr.bf16.mxu0 0
        %607 = vmatmul.mubr.bf16.gmra.mxu0 %v376
        %v608 = vpop.f32.mrf.mxu0
        %v609 = vadd.f32 %v417, %v608
        %v610 = vpop.f32.mrf.mxu0
        %v611 = vadd.f32 %v421, %v610
        %v612 = vpop.f32.mrf.mxu0
        %v613 = vadd.f32 %v417, %v612
        %v614 = vpop.f32.mrf.mxu0
        %v615 = vadd.f32 %v421, %v614
        %616 = vmatprep.mubr.bf16.mxu0 0
        %617 = vmatmul.mubr.bf16.gmra.mxu0 %v377
        %v618 = vpop.f32.mrf.mxu0
        %v619 = vadd.f32 %v417, %v618
        %v620 = vpop.f32.mrf.mxu0
        %v621 = vadd.f32 %v421, %v620
        %v622 = vpop.f32.mrf.mxu0
        %v623 = vadd.f32 %v417, %v622
        %v624 = vpop.f32.mrf.mxu0
        %v625 = vadd.f32 %v421, %v624
        %626 = vmatprep.mubr.bf16.mxu0 0
        %627 = vmatmul.mubr.bf16.gmra.mxu0 %v378
        %v628 = vpop.f32.mrf.mxu0
        %v629 = vadd.f32 %v417, %v628
        %v630 = vpop.f32.mrf.mxu0
        %v631 = vadd.f32 %v421, %v630
        %v632 = vpop.f32.mrf.mxu0
        %v633 = vadd.f32 %v417, %v632
        %v634 = vpop.f32.mrf.mxu0
        %v635 = vadd.f32 %v421, %v634
        %636 = vmatprep.mubr.bf16.mxu0 0
        %637 = vmatmul.mubr.bf16.gmra.mxu0 %v379
        %v638 = vpop.f32.mrf.mxu0
        %v639 = vadd.f32 %v417, %v638
        %v640 = vpop.f32.mrf.mxu0
        %v641 = vadd.f32 %v421, %v640
        %v642 = vpop.f32.mrf.mxu0
        %v643 = vadd.f32 %v417, %v642
        %v644 = vpop.f32.mrf.mxu0
        %v645 = vadd.f32 %v421, %v644
        %646 = vmatprep.mubr.bf16.mxu0 0
        %647 = vmatmul.mubr.bf16.gmra.mxu0 %v380
        %v648 = vpop.f32.mrf.mxu0
        %v649 = vadd.f32 %v417, %v648
        %v650 = vpop.f32.mrf.mxu0
        %v651 = vadd.f32 %v421, %v650
        %v652 = vpop.f32.mrf.mxu0
        %v653 = vadd.f32 %v417, %v652
        %v654 = vpop.f32.mrf.mxu0
        %v655 = vadd.f32 %v421, %v654
        %656 = vmatprep.mubr.bf16.mxu0 0
        %657 = vmatmul.mubr.bf16.gmra.mxu0 %v381
        %v658 = vpop.f32.mrf.mxu0
        %v659 = vadd.f32 %v417, %v658
        %v660 = vpop.f32.mrf.mxu0
        %v661 = vadd.f32 %v421, %v660
        %v662 = vpop.f32.mrf.mxu0
        %v663 = vadd.f32 %v417, %v662
        %v664 = vpop.f32.mrf.mxu0
        %v665 = vadd.f32 %v421, %v664
        %666 = vdwg.mxu0
        %667 = vmatprep.subr.bf16.mxu0 0
        %668 = vmatpush1.bf16.msra.mxu0 %v529
        %669 = vmatprep.subr.bf16.mxu0 0
        %670 = vmatpush1.bf16.msra.mxu0 %v526
        %671 = vmatprep.subr.bf16.mxu0 0
        %672 = vmatpush1.bf16.msra.mxu0 %v523
        %673 = vmatprep.subr.bf16.mxu0 0
        %674 = vmatpush1.bf16.msra.mxu0 %v520
        %675 = vmatprep.subr.bf16.mxu0 0
        %676 = vmatpush1.bf16.msra.mxu0 %v517
        %677 = vmatprep.subr.bf16.mxu0 0
        %678 = vmatpush1.bf16.msra.mxu0 %v514
        %679 = vmatprep.subr.bf16.mxu0 0
        %680 = vmatpush1.bf16.msra.mxu0 %v511
        %681 = vmatprep.subr.bf16.mxu0 0
        %682 = vmatpush1.bf16.msra.mxu0 %v508
        %683 = vmatprep.subr.bf16.mxu0 0
        %684 = vmatpush2.bf16.msra.mxu0 0
        %685 = vmatprep.subr.bf16.mxu0 0
        %686 = vmatpush2.bf16.msra.mxu0 0
        %687 = vmatprep.subr.bf16.mxu0 0
        %688 = vmatpush2.bf16.msra.mxu0 0
        %689 = vmatprep.subr.bf16.mxu0 0
        %690 = vmatpush2.bf16.msra.mxu0 0
        %691 = vmatprep.subr.bf16.mxu0 0
        %692 = vmatpush2.bf16.msra.mxu0 0
        %693 = vmatprep.subr.bf16.mxu0 0
        %694 = vmatpush2.bf16.msra.mxu0 0
        %695 = vmatprep.subr.bf16.mxu0 0
        %696 = vmatpush2.bf16.msra.mxu0 0
        %697 = vmatprep.subr.bf16.mxu0 0
        %698 = vmatpush2.bf16.msra.mxu0 0
        %699 = vmatprep.mubr.bf16.mxu0 0
        %700 = vmatmul.mubr.bf16.gmra.mxu0 %v374
        %v701 = vpop.f32.mrf.mxu0
        %v702 = vadd.f32 %v425, %v701
        %v703 = vpop.f32.mrf.mxu0
        %v704 = vpop.f32.mrf.mxu0
        %v705 = vadd.f32 %v425, %v704
        %v706 = vpop.f32.mrf.mxu0
        %707 = vmatprep.mubr.bf16.mxu0 0
        %708 = vmatmul.mubr.bf16.gmra.mxu0 %v375
        %v709 = vpop.f32.mrf.mxu0
        %v710 = vadd.f32 %v425, %v709
        %v711 = vpop.f32.mrf.mxu0
        %v712 = vpop.f32.mrf.mxu0
        %v713 = vadd.f32 %v425, %v712
        %v714 = vpop.f32.mrf.mxu0
        %715 = vmatprep.mubr.bf16.mxu0 0
        %716 = vmatmul.mubr.bf16.gmra.mxu0 %v376
        %v717 = vpop.f32.mrf.mxu0
        %v718 = vadd.f32 %v425, %v717
        %v719 = vpop.f32.mrf.mxu0
        %v720 = vpop.f32.mrf.mxu0
        %v721 = vadd.f32 %v425, %v720
        %v722 = vpop.f32.mrf.mxu0
        %723 = vmatprep.mubr.bf16.mxu0 0
        %724 = vmatmul.mubr.bf16.gmra.mxu0 %v377
        %v725 = vpop.f32.mrf.mxu0
        %v726 = vadd.f32 %v425, %v725
        %v727 = vpop.f32.mrf.mxu0
        %v728 = vpop.f32.mrf.mxu0
        %v729 = vadd.f32 %v425, %v728
        %v730 = vpop.f32.mrf.mxu0
        %731 = vmatprep.mubr.bf16.mxu0 0
        %732 = vmatmul.mubr.bf16.gmra.mxu0 %v378
        %v733 = vpop.f32.mrf.mxu0
        %v734 = vadd.f32 %v425, %v733
        %v735 = vpop.f32.mrf.mxu0
        %v736 = vpop.f32.mrf.mxu0
        %v737 = vadd.f32 %v425, %v736
        %v738 = vpop.f32.mrf.mxu0
        %739 = vmatprep.mubr.bf16.mxu0 0
        %740 = vmatmul.mubr.bf16.gmra.mxu0 %v379
        %v741 = vpop.f32.mrf.mxu0
        %v742 = vadd.f32 %v425, %v741
        %v743 = vpop.f32.mrf.mxu0
        %v744 = vpop.f32.mrf.mxu0
        %v745 = vadd.f32 %v425, %v744
        %v746 = vpop.f32.mrf.mxu0
        %747 = vmatprep.mubr.bf16.mxu0 0
        %748 = vmatmul.mubr.bf16.gmra.mxu0 %v380
        %v749 = vpop.f32.mrf.mxu0
        %v750 = vadd.f32 %v425, %v749
        %v751 = vpop.f32.mrf.mxu0
        %v752 = vpop.f32.mrf.mxu0
        %v753 = vadd.f32 %v425, %v752
        %v754 = vpop.f32.mrf.mxu0
        %755 = vmatprep.mubr.bf16.mxu0 0
        %756 = vmatmul.mubr.bf16.gmra.mxu0 %v381
        %v757 = vpop.f32.mrf.mxu0
        %v758 = vadd.f32 %v425, %v757
        %v759 = vpop.f32.mrf.mxu0
        %v760 = vpop.f32.mrf.mxu0
        %v761 = vadd.f32 %v425, %v760
        %v762 = vpop.f32.mrf.mxu0
        %763 = vdwg.mxu0
        %780 = vrot.lane.b32.xlu0 %v589, 96
        %v781 = vpop.permute.xlu0 %780
        %782 = vrot.lane.b32.xlu0 %v593, 96
        %v783 = vpop.permute.xlu0 %782
        %784 = vrot.lane.b32.xlu0 %v599, 96
        %v785 = vpop.permute.xlu0 %784
        %786 = vrot.lane.b32.xlu0 %v603, 96
        %v787 = vpop.permute.xlu0 %786
        %788 = vrot.lane.b32.xlu0 %v609, 96
        %v789 = vpop.permute.xlu0 %788
        %790 = vrot.lane.b32.xlu0 %v613, 96
        %v791 = vpop.permute.xlu0 %790
        %792 = vrot.lane.b32.xlu0 %v619, 96
        %v793 = vpop.permute.xlu0 %792
        %794 = vrot.lane.b32.xlu0 %v623, 96
        %v795 = vpop.permute.xlu0 %794
        %796 = vrot.lane.b32.xlu0 %v629, 96
        %v797 = vpop.permute.xlu0 %796
        %798 = vrot.lane.b32.xlu0 %v633, 96
        %v799 = vpop.permute.xlu0 %798
        %800 = vrot.lane.b32.xlu0 %v639, 96
        %v801 = vpop.permute.xlu0 %800
        %802 = vrot.lane.b32.xlu0 %v643, 96
        %v803 = vpop.permute.xlu0 %802
        %804 = vrot.lane.b32.xlu0 %v649, 96
        %v805 = vpop.permute.xlu0 %804
        %806 = vrot.lane.b32.xlu0 %v653, 96
        %v807 = vpop.permute.xlu0 %806
        %808 = vrot.lane.b32.xlu0 %v659, 96
        %v809 = vpop.permute.xlu0 %808
        %810 = vrot.lane.b32.xlu0 %v663, 96
        %v811 = vpop.permute.xlu0 %810
        %828 = vrot.lane.b32.xlu0 %v589, 64
        %v829 = vpop.permute.xlu0 %828
        %830 = vrot.lane.b32.xlu0 %v593, 64
        %v831 = vpop.permute.xlu0 %830
        %832 = vrot.lane.b32.xlu0 %v599, 64
        %v833 = vpop.permute.xlu0 %832
        %834 = vrot.lane.b32.xlu0 %v603, 64
        %v835 = vpop.permute.xlu0 %834
        %836 = vrot.lane.b32.xlu0 %v609, 64
        %v837 = vpop.permute.xlu0 %836
        %838 = vrot.lane.b32.xlu0 %v613, 64
        %v839 = vpop.permute.xlu0 %838
        %840 = vrot.lane.b32.xlu0 %v619, 64
        %v841 = vpop.permute.xlu0 %840
        %842 = vrot.lane.b32.xlu0 %v623, 64
        %v843 = vpop.permute.xlu0 %842
        %844 = vrot.lane.b32.xlu0 %v629, 64
        %v845 = vpop.permute.xlu0 %844
        %846 = vrot.lane.b32.xlu0 %v633, 64
        %v847 = vpop.permute.xlu0 %846
        %848 = vrot.lane.b32.xlu0 %v639, 64
        %v849 = vpop.permute.xlu0 %848
        %850 = vrot.lane.b32.xlu0 %v643, 64
        %v851 = vpop.permute.xlu0 %850
        %852 = vrot.lane.b32.xlu0 %v649, 64
        %v853 = vpop.permute.xlu0 %852
        %854 = vrot.lane.b32.xlu0 %v653, 64
        %v855 = vpop.permute.xlu0 %854
        %856 = vrot.lane.b32.xlu0 %v659, 64
        %v857 = vpop.permute.xlu0 %856
        %858 = vrot.lane.b32.xlu0 %v663, 64
        %v859 = vpop.permute.xlu0 %858
        %876 = vrot.lane.b32.xlu0 %v589, 32
        %v877 = vpop.permute.xlu0 %876
        %878 = vrot.lane.b32.xlu0 %v593, 32
        %v879 = vpop.permute.xlu0 %878
        %880 = vrot.lane.b32.xlu0 %v599, 32
        %v881 = vpop.permute.xlu0 %880
        %882 = vrot.lane.b32.xlu0 %v603, 32
        %v883 = vpop.permute.xlu0 %882
        %884 = vrot.lane.b32.xlu0 %v609, 32
        %v885 = vpop.permute.xlu0 %884
        %886 = vrot.lane.b32.xlu0 %v613, 32
        %v887 = vpop.permute.xlu0 %886
        %888 = vrot.lane.b32.xlu0 %v619, 32
        %v889 = vpop.permute.xlu0 %888
        %890 = vrot.lane.b32.xlu0 %v623, 32
        %v891 = vpop.permute.xlu0 %890
        %892 = vrot.lane.b32.xlu0 %v629, 32
        %v893 = vpop.permute.xlu0 %892
        %894 = vrot.lane.b32.xlu0 %v633, 32
        %v895 = vpop.permute.xlu0 %894
        %896 = vrot.lane.b32.xlu0 %v639, 32
        %v897 = vpop.permute.xlu0 %896
        %898 = vrot.lane.b32.xlu0 %v643, 32
        %v899 = vpop.permute.xlu0 %898
        %900 = vrot.lane.b32.xlu0 %v649, 32
        %v901 = vpop.permute.xlu0 %900
        %902 = vrot.lane.b32.xlu0 %v653, 32
        %v903 = vpop.permute.xlu0 %902
        %904 = vrot.lane.b32.xlu0 %v659, 32
        %v905 = vpop.permute.xlu0 %904
        %906 = vrot.lane.b32.xlu0 %v663, 32
        %v907 = vpop.permute.xlu0 %906
        %v924 = vpack.c.bf16 %v593, %v589
        %v925 = vpack.c.bf16 %v603, %v599
        %v926 = vpack.c.bf16 %v613, %v609
        %v927 = vpack.c.bf16 %v623, %v619
        %v928 = vpack.c.bf16 %v633, %v629
        %v929 = vpack.c.bf16 %v643, %v639
        %v930 = vpack.c.bf16 %v653, %v649
        %v931 = vpack.c.bf16 %v663, %v659
        %v932 = vpack.c.bf16 %v783, %v781
        %v933 = vpack.c.bf16 %v787, %v785
        %v934 = vpack.c.bf16 %v791, %v789
        %v935 = vpack.c.bf16 %v795, %v793
        %v936 = vpack.c.bf16 %v799, %v797
        %v937 = vpack.c.bf16 %v803, %v801
        %v938 = vpack.c.bf16 %v807, %v805
        %v939 = vpack.c.bf16 %v811, %v809
        %v940 = vpack.c.bf16 %v831, %v829
        %v941 = vpack.c.bf16 %v835, %v833
        %v942 = vpack.c.bf16 %v839, %v837
        %v943 = vpack.c.bf16 %v843, %v841
        %v944 = vpack.c.bf16 %v847, %v845
        %v945 = vpack.c.bf16 %v851, %v849
        %v946 = vpack.c.bf16 %v855, %v853
        %v947 = vpack.c.bf16 %v859, %v857
        %v948 = vpack.c.bf16 %v879, %v877
        %v949 = vpack.c.bf16 %v883, %v881
        %v950 = vpack.c.bf16 %v887, %v885
        %v951 = vpack.c.bf16 %v891, %v889
        %v952 = vpack.c.bf16 %v895, %v893
        %v953 = vpack.c.bf16 %v899, %v897
        %v954 = vpack.c.bf16 %v903, %v901
        %v955 = vpack.c.bf16 %v907, %v905
        %972 = vrot.lane.b32.xlu0 %v591, 96
        %v973 = vpop.permute.xlu0 %972
        %974 = vrot.lane.b32.xlu0 %v595, 96
        %v975 = vpop.permute.xlu0 %974
        %976 = vrot.lane.b32.xlu0 %v601, 96
        %v977 = vpop.permute.xlu0 %976
        %978 = vrot.lane.b32.xlu0 %v605, 96
        %v979 = vpop.permute.xlu0 %978
        %980 = vrot.lane.b32.xlu0 %v611, 96
        %v981 = vpop.permute.xlu0 %980
        %982 = vrot.lane.b32.xlu0 %v615, 96
        %v983 = vpop.permute.xlu0 %982
        %984 = vrot.lane.b32.xlu0 %v621, 96
        %v985 = vpop.permute.xlu0 %984
        %986 = vrot.lane.b32.xlu0 %v625, 96
        %v987 = vpop.permute.xlu0 %986
        %988 = vrot.lane.b32.xlu0 %v631, 96
        %v989 = vpop.permute.xlu0 %988
        %990 = vrot.lane.b32.xlu0 %v635, 96
        %v991 = vpop.permute.xlu0 %990
        %992 = vrot.lane.b32.xlu0 %v641, 96
        %v993 = vpop.permute.xlu0 %992
        %994 = vrot.lane.b32.xlu0 %v645, 96
        %v995 = vpop.permute.xlu0 %994
        %996 = vrot.lane.b32.xlu0 %v651, 96
        %v997 = vpop.permute.xlu0 %996
        %998 = vrot.lane.b32.xlu0 %v655, 96
        %v999 = vpop.permute.xlu0 %998
        %1000 = vrot.lane.b32.xlu0 %v661, 96
        %v1001 = vpop.permute.xlu0 %1000
        %1002 = vrot.lane.b32.xlu0 %v665, 96
        %v1003 = vpop.permute.xlu0 %1002
        %1020 = vrot.lane.b32.xlu0 %v591, 64
        %v1021 = vpop.permute.xlu0 %1020
        %1022 = vrot.lane.b32.xlu0 %v595, 64
        %v1023 = vpop.permute.xlu0 %1022
        %1024 = vrot.lane.b32.xlu0 %v601, 64
        %v1025 = vpop.permute.xlu0 %1024
        %1026 = vrot.lane.b32.xlu0 %v605, 64
        %v1027 = vpop.permute.xlu0 %1026
        %1028 = vrot.lane.b32.xlu0 %v611, 64
        %v1029 = vpop.permute.xlu0 %1028
        %1030 = vrot.lane.b32.xlu0 %v615, 64
        %v1031 = vpop.permute.xlu0 %1030
        %1032 = vrot.lane.b32.xlu0 %v621, 64
        %v1033 = vpop.permute.xlu0 %1032
        %1034 = vrot.lane.b32.xlu0 %v625, 64
        %v1035 = vpop.permute.xlu0 %1034
        %1036 = vrot.lane.b32.xlu0 %v631, 64
        %v1037 = vpop.permute.xlu0 %1036
        %1038 = vrot.lane.b32.xlu0 %v635, 64
        %v1039 = vpop.permute.xlu0 %1038
        %1040 = vrot.lane.b32.xlu0 %v641, 64
        %v1041 = vpop.permute.xlu0 %1040
        %1042 = vrot.lane.b32.xlu0 %v645, 64
        %v1043 = vpop.permute.xlu0 %1042
        %1044 = vrot.lane.b32.xlu0 %v651, 64
        %v1045 = vpop.permute.xlu0 %1044
        %1046 = vrot.lane.b32.xlu0 %v655, 64
        %v1047 = vpop.permute.xlu0 %1046
        %1048 = vrot.lane.b32.xlu0 %v661, 64
        %v1049 = vpop.permute.xlu0 %1048
        %1050 = vrot.lane.b32.xlu0 %v665, 64
        %v1051 = vpop.permute.xlu0 %1050
        %1068 = vrot.lane.b32.xlu0 %v591, 32
        %v1069 = vpop.permute.xlu0 %1068
        %1070 = vrot.lane.b32.xlu0 %v595, 32
        %v1071 = vpop.permute.xlu0 %1070
        %1072 = vrot.lane.b32.xlu0 %v601, 32
        %v1073 = vpop.permute.xlu0 %1072
        %1074 = vrot.lane.b32.xlu0 %v605, 32
        %v1075 = vpop.permute.xlu0 %1074
        %1076 = vrot.lane.b32.xlu0 %v611, 32
        %v1077 = vpop.permute.xlu0 %1076
        %1078 = vrot.lane.b32.xlu0 %v615, 32
        %v1079 = vpop.permute.xlu0 %1078
        %1080 = vrot.lane.b32.xlu0 %v621, 32
        %v1081 = vpop.permute.xlu0 %1080
        %1082 = vrot.lane.b32.xlu0 %v625, 32
        %v1083 = vpop.permute.xlu0 %1082
        %1084 = vrot.lane.b32.xlu0 %v631, 32
        %v1085 = vpop.permute.xlu0 %1084
        %1086 = vrot.lane.b32.xlu0 %v635, 32
        %v1087 = vpop.permute.xlu0 %1086
        %1088 = vrot.lane.b32.xlu0 %v641, 32
        %v1089 = vpop.permute.xlu0 %1088
        %1090 = vrot.lane.b32.xlu0 %v645, 32
        %v1091 = vpop.permute.xlu0 %1090
        %1092 = vrot.lane.b32.xlu0 %v651, 32
        %v1093 = vpop.permute.xlu0 %1092
        %1094 = vrot.lane.b32.xlu0 %v655, 32
        %v1095 = vpop.permute.xlu0 %1094
        %1096 = vrot.lane.b32.xlu0 %v661, 32
        %v1097 = vpop.permute.xlu0 %1096
        %1098 = vrot.lane.b32.xlu0 %v665, 32
        %v1099 = vpop.permute.xlu0 %1098
        %v1116 = vpack.c.bf16 %v595, %v591
        %v1117 = vpack.c.bf16 %v605, %v601
        %v1118 = vpack.c.bf16 %v615, %v611
        %v1119 = vpack.c.bf16 %v625, %v621
        %v1120 = vpack.c.bf16 %v635, %v631
        %v1121 = vpack.c.bf16 %v645, %v641
        %v1122 = vpack.c.bf16 %v655, %v651
        %v1123 = vpack.c.bf16 %v665, %v661
        %v1124 = vpack.c.bf16 %v975, %v973
        %v1125 = vpack.c.bf16 %v979, %v977
        %v1126 = vpack.c.bf16 %v983, %v981
        %v1127 = vpack.c.bf16 %v987, %v985
        %v1128 = vpack.c.bf16 %v991, %v989
        %v1129 = vpack.c.bf16 %v995, %v993
        %v1130 = vpack.c.bf16 %v999, %v997
        %v1131 = vpack.c.bf16 %v1003, %v1001
        %v1132 = vpack.c.bf16 %v1023, %v1021
        %v1133 = vpack.c.bf16 %v1027, %v1025
        %v1134 = vpack.c.bf16 %v1031, %v1029
        %v1135 = vpack.c.bf16 %v1035, %v1033
        %v1136 = vpack.c.bf16 %v1039, %v1037
        %v1137 = vpack.c.bf16 %v1043, %v1041
        %v1138 = vpack.c.bf16 %v1047, %v1045
        %v1139 = vpack.c.bf16 %v1051, %v1049
        %v1140 = vpack.c.bf16 %v1071, %v1069
        %v1141 = vpack.c.bf16 %v1075, %v1073
        %v1142 = vpack.c.bf16 %v1079, %v1077
        %v1143 = vpack.c.bf16 %v1083, %v1081
        %v1144 = vpack.c.bf16 %v1087, %v1085
        %v1145 = vpack.c.bf16 %v1091, %v1089
        %v1146 = vpack.c.bf16 %v1095, %v1093
        %v1147 = vpack.c.bf16 %v1099, %v1097
        %1164 = vrot.lane.b32.xlu0 %v702, 96
        %v1165 = vpop.permute.xlu0 %1164
        %1166 = vrot.lane.b32.xlu0 %v705, 96
        %v1167 = vpop.permute.xlu0 %1166
        %1168 = vrot.lane.b32.xlu0 %v710, 96
        %v1169 = vpop.permute.xlu0 %1168
        %1170 = vrot.lane.b32.xlu0 %v713, 96
        %v1171 = vpop.permute.xlu0 %1170
        %1172 = vrot.lane.b32.xlu0 %v718, 96
        %v1173 = vpop.permute.xlu0 %1172
        %1174 = vrot.lane.b32.xlu0 %v721, 96
        %v1175 = vpop.permute.xlu0 %1174
        %1176 = vrot.lane.b32.xlu0 %v726, 96
        %v1177 = vpop.permute.xlu0 %1176
        %1178 = vrot.lane.b32.xlu0 %v729, 96
        %v1179 = vpop.permute.xlu0 %1178
        %1180 = vrot.lane.b32.xlu0 %v734, 96
        %v1181 = vpop.permute.xlu0 %1180
        %1182 = vrot.lane.b32.xlu0 %v737, 96
        %v1183 = vpop.permute.xlu0 %1182
        %1184 = vrot.lane.b32.xlu0 %v742, 96
        %v1185 = vpop.permute.xlu0 %1184
        %1186 = vrot.lane.b32.xlu0 %v745, 96
        %v1187 = vpop.permute.xlu0 %1186
        %1188 = vrot.lane.b32.xlu0 %v750, 96
        %v1189 = vpop.permute.xlu0 %1188
        %1190 = vrot.lane.b32.xlu0 %v753, 96
        %v1191 = vpop.permute.xlu0 %1190
        %1192 = vrot.lane.b32.xlu0 %v758, 96
        %v1193 = vpop.permute.xlu0 %1192
        %1194 = vrot.lane.b32.xlu0 %v761, 96
        %v1195 = vpop.permute.xlu0 %1194
        %1212 = vrot.lane.b32.xlu0 %v702, 64
        %v1213 = vpop.permute.xlu0 %1212
        %1214 = vrot.lane.b32.xlu0 %v705, 64
        %v1215 = vpop.permute.xlu0 %1214
        %1216 = vrot.lane.b32.xlu0 %v710, 64
        %v1217 = vpop.permute.xlu0 %1216
        %1218 = vrot.lane.b32.xlu0 %v713, 64
        %v1219 = vpop.permute.xlu0 %1218
        %1220 = vrot.lane.b32.xlu0 %v718, 64
        %v1221 = vpop.permute.xlu0 %1220
        %1222 = vrot.lane.b32.xlu0 %v721, 64
        %v1223 = vpop.permute.xlu0 %1222
        %1224 = vrot.lane.b32.xlu0 %v726, 64
        %v1225 = vpop.permute.xlu0 %1224
        %1226 = vrot.lane.b32.xlu0 %v729, 64
        %v1227 = vpop.permute.xlu0 %1226
        %1228 = vrot.lane.b32.xlu0 %v734, 64
        %v1229 = vpop.permute.xlu0 %1228
        %1230 = vrot.lane.b32.xlu0 %v737, 64
        %v1231 = vpop.permute.xlu0 %1230
        %1232 = vrot.lane.b32.xlu0 %v742, 64
        %v1233 = vpop.permute.xlu0 %1232
        %1234 = vrot.lane.b32.xlu0 %v745, 64
        %v1235 = vpop.permute.xlu0 %1234
        %1236 = vrot.lane.b32.xlu0 %v750, 64
        %v1237 = vpop.permute.xlu0 %1236
        %1238 = vrot.lane.b32.xlu0 %v753, 64
        %v1239 = vpop.permute.xlu0 %1238
        %1240 = vrot.lane.b32.xlu0 %v758, 64
        %v1241 = vpop.permute.xlu0 %1240
        %1242 = vrot.lane.b32.xlu0 %v761, 64
        %v1243 = vpop.permute.xlu0 %1242
        %1260 = vrot.lane.b32.xlu0 %v702, 32
        %v1261 = vpop.permute.xlu0 %1260
        %1262 = vrot.lane.b32.xlu0 %v705, 32
        %v1263 = vpop.permute.xlu0 %1262
        %1264 = vrot.lane.b32.xlu0 %v710, 32
        %v1265 = vpop.permute.xlu0 %1264
        %1266 = vrot.lane.b32.xlu0 %v713, 32
        %v1267 = vpop.permute.xlu0 %1266
        %1268 = vrot.lane.b32.xlu0 %v718, 32
        %v1269 = vpop.permute.xlu0 %1268
        %1270 = vrot.lane.b32.xlu0 %v721, 32
        %v1271 = vpop.permute.xlu0 %1270
        %1272 = vrot.lane.b32.xlu0 %v726, 32
        %v1273 = vpop.permute.xlu0 %1272
        %1274 = vrot.lane.b32.xlu0 %v729, 32
        %v1275 = vpop.permute.xlu0 %1274
        %1276 = vrot.lane.b32.xlu0 %v734, 32
        %v1277 = vpop.permute.xlu0 %1276
        %1278 = vrot.lane.b32.xlu0 %v737, 32
        %v1279 = vpop.permute.xlu0 %1278
        %1280 = vrot.lane.b32.xlu0 %v742, 32
        %v1281 = vpop.permute.xlu0 %1280
        %1282 = vrot.lane.b32.xlu0 %v745, 32
        %v1283 = vpop.permute.xlu0 %1282
        %1284 = vrot.lane.b32.xlu0 %v750, 32
        %v1285 = vpop.permute.xlu0 %1284
        %1286 = vrot.lane.b32.xlu0 %v753, 32
        %v1287 = vpop.permute.xlu0 %1286
        %1288 = vrot.lane.b32.xlu0 %v758, 32
        %v1289 = vpop.permute.xlu0 %1288
        %1290 = vrot.lane.b32.xlu0 %v761, 32
        %v1291 = vpop.permute.xlu0 %1290
        %v1308 = vpack.c.bf16 %v705, %v702
        %v1309 = vpack.c.bf16 %v713, %v710
        %v1310 = vpack.c.bf16 %v721, %v718
        %v1311 = vpack.c.bf16 %v729, %v726
        %v1312 = vpack.c.bf16 %v737, %v734
        %v1313 = vpack.c.bf16 %v745, %v742
        %v1314 = vpack.c.bf16 %v753, %v750
        %v1315 = vpack.c.bf16 %v761, %v758
        %v1316 = vpack.c.bf16 %v1167, %v1165
        %v1317 = vpack.c.bf16 %v1171, %v1169
        %v1318 = vpack.c.bf16 %v1175, %v1173
        %v1319 = vpack.c.bf16 %v1179, %v1177
        %v1320 = vpack.c.bf16 %v1183, %v1181
        %v1321 = vpack.c.bf16 %v1187, %v1185
        %v1322 = vpack.c.bf16 %v1191, %v1189
        %v1323 = vpack.c.bf16 %v1195, %v1193
        %v1324 = vpack.c.bf16 %v1215, %v1213
        %v1325 = vpack.c.bf16 %v1219, %v1217
        %v1326 = vpack.c.bf16 %v1223, %v1221
        %v1327 = vpack.c.bf16 %v1227, %v1225
        %v1328 = vpack.c.bf16 %v1231, %v1229
        %v1329 = vpack.c.bf16 %v1235, %v1233
        %v1330 = vpack.c.bf16 %v1239, %v1237
        %v1331 = vpack.c.bf16 %v1243, %v1241
        %v1332 = vpack.c.bf16 %v1263, %v1261
        %v1333 = vpack.c.bf16 %v1267, %v1265
        %v1334 = vpack.c.bf16 %v1271, %v1269
        %v1335 = vpack.c.bf16 %v1275, %v1273
        %v1336 = vpack.c.bf16 %v1279, %v1277
        %v1337 = vpack.c.bf16 %v1283, %v1281
        %v1338 = vpack.c.bf16 %v1287, %v1285
        %v1339 = vpack.c.bf16 %v1291, %v1289
        %vm1340 = vcmask 261120
        %v1342 = vsel %vm1340, %v924, 0
        %v1345 = vsel %vm1340, %v925, 0
        %v1348 = vsel %vm1340, %v926, 0
        %v1351 = vsel %vm1340, %v927, 0
        %v1354 = vsel %vm1340, %v928, 0
        %v1357 = vsel %vm1340, %v929, 0
        %v1360 = vsel %vm1340, %v930, 0
        %v1363 = vsel %vm1340, %v931, 0
        %v1366 = vsel %vm1340, %v1116, 0
        %v1369 = vsel %vm1340, %v1117, 0
        %v1372 = vsel %vm1340, %v1118, 0
        %v1375 = vsel %vm1340, %v1119, 0
        %v1378 = vsel %vm1340, %v1120, 0
        %v1381 = vsel %vm1340, %v1121, 0
        %v1384 = vsel %vm1340, %v1122, 0
        %v1387 = vsel %vm1340, %v1123, 0
        %1389 = vmatprep.subr.bf16.mxu0 0
        %1390 = vmatpush1.bf16.xpose.msra.mxu0 %v1387
        %1391 = vmatprep.subr.bf16.mxu0 0
        %1392 = vmatpush1.bf16.xpose.msra.mxu0 %v1384
        %1393 = vmatprep.subr.bf16.mxu0 0
        %1394 = vmatpush1.bf16.xpose.msra.mxu0 %v1381
        %1395 = vmatprep.subr.bf16.mxu0 0
        %1396 = vmatpush1.bf16.xpose.msra.mxu0 %v1378
        %1397 = vmatprep.subr.bf16.mxu0 0
        %1398 = vmatpush1.bf16.xpose.msra.mxu0 %v1375
        %1399 = vmatprep.subr.bf16.mxu0 0
        %1400 = vmatpush1.bf16.xpose.msra.mxu0 %v1372
        %1401 = vmatprep.subr.bf16.mxu0 0
        %1402 = vmatpush1.bf16.xpose.msra.mxu0 %v1369
        %1403 = vmatprep.subr.bf16.mxu0 0
        %1404 = vmatpush1.bf16.xpose.msra.mxu0 %v1366
        %1405 = vmatprep.subr.bf16.mxu0 0
        %1406 = vmatpush2.bf16.xpose.msra.mxu0 0
        %1407 = vmatprep.subr.bf16.mxu0 0
        %1408 = vmatpush2.bf16.xpose.msra.mxu0 0
        %1409 = vmatprep.subr.bf16.mxu0 0
        %1410 = vmatpush2.bf16.xpose.msra.mxu0 0
        %1411 = vmatprep.subr.bf16.mxu0 0
        %1412 = vmatpush2.bf16.xpose.msra.mxu0 0
        %1413 = vmatprep.subr.bf16.mxu0 0
        %1414 = vmatpush2.bf16.xpose.msra.mxu0 0
        %1415 = vmatprep.subr.bf16.mxu0 0
        %1416 = vmatpush2.bf16.xpose.msra.mxu0 0
        %1417 = vmatprep.subr.bf16.mxu0 0
        %1418 = vmatpush2.bf16.xpose.msra.mxu0 0
        %1419 = vmatprep.subr.bf16.mxu0 0
        %1420 = vmatpush2.bf16.xpose.msra.mxu0 0
        %1421 = vmatprep.mubr.bf16.mxu0 0
        %1422 = vmatmul.mubr.bf16.gmra.mxu0 %v1342
        %v1423 = vpop.f32.mrf.mxu0
        %v1424 = vadd.f32 0.0, %v1423
        %v1425 = vpop.f32.mrf.mxu0
        %v1426 = vpop.f32.mrf.mxu0
        %v1427 = vadd.f32 0.0, %v1426
        %v1428 = vpop.f32.mrf.mxu0
        %1429 = vmatprep.mubr.bf16.mxu0 0
        %1430 = vmatmul.mubr.bf16.gmra.mxu0 %v1345
        %v1431 = vpop.f32.mrf.mxu0
        %v1432 = vadd.f32 0.0, %v1431
        %v1433 = vpop.f32.mrf.mxu0
        %v1434 = vpop.f32.mrf.mxu0
        %v1435 = vadd.f32 0.0, %v1434
        %v1436 = vpop.f32.mrf.mxu0
        %1437 = vmatprep.mubr.bf16.mxu0 0
        %1438 = vmatmul.mubr.bf16.gmra.mxu0 %v1348
        %v1439 = vpop.f32.mrf.mxu0
        %v1440 = vadd.f32 0.0, %v1439
        %v1441 = vpop.f32.mrf.mxu0
        %v1442 = vpop.f32.mrf.mxu0
        %v1443 = vadd.f32 0.0, %v1442
        %v1444 = vpop.f32.mrf.mxu0
        %1445 = vmatprep.mubr.bf16.mxu0 0
        %1446 = vmatmul.mubr.bf16.gmra.mxu0 %v1351
        %v1447 = vpop.f32.mrf.mxu0
        %v1448 = vadd.f32 0.0, %v1447
        %v1449 = vpop.f32.mrf.mxu0
        %v1450 = vpop.f32.mrf.mxu0
        %v1451 = vadd.f32 0.0, %v1450
        %v1452 = vpop.f32.mrf.mxu0
        %1453 = vmatprep.mubr.bf16.mxu0 0
        %1454 = vmatmul.mubr.bf16.gmra.mxu0 %v1354
        %v1455 = vpop.f32.mrf.mxu0
        %v1456 = vadd.f32 0.0, %v1455
        %v1457 = vpop.f32.mrf.mxu0
        %v1458 = vpop.f32.mrf.mxu0
        %v1459 = vadd.f32 0.0, %v1458
        %v1460 = vpop.f32.mrf.mxu0
        %1461 = vmatprep.mubr.bf16.mxu0 0
        %1462 = vmatmul.mubr.bf16.gmra.mxu0 %v1357
        %v1463 = vpop.f32.mrf.mxu0
        %v1464 = vadd.f32 0.0, %v1463
        %v1465 = vpop.f32.mrf.mxu0
        %v1466 = vpop.f32.mrf.mxu0
        %v1467 = vadd.f32 0.0, %v1466
        %v1468 = vpop.f32.mrf.mxu0
        %1469 = vmatprep.mubr.bf16.mxu0 0
        %1470 = vmatmul.mubr.bf16.gmra.mxu0 %v1360
        %v1471 = vpop.f32.mrf.mxu0
        %v1472 = vadd.f32 0.0, %v1471
        %v1473 = vpop.f32.mrf.mxu0
        %v1474 = vpop.f32.mrf.mxu0
        %v1475 = vadd.f32 0.0, %v1474
        %v1476 = vpop.f32.mrf.mxu0
        %1477 = vmatprep.mubr.bf16.mxu0 0
        %1478 = vmatmul.mubr.bf16.gmra.mxu0 %v1363
        %v1479 = vpop.f32.mrf.mxu0
        %v1480 = vadd.f32 0.0, %v1479
        %v1481 = vpop.f32.mrf.mxu0
        %v1482 = vpop.f32.mrf.mxu0
        %v1483 = vadd.f32 0.0, %v1482
        %v1484 = vpop.f32.mrf.mxu0
        %1485 = vdwg.mxu0
        %v1487 = vsel %vm1340, %v932, 0
        %v1490 = vsel %vm1340, %v933, 0
        %v1493 = vsel %vm1340, %v934, 0
        %v1496 = vsel %vm1340, %v935, 0
        %v1499 = vsel %vm1340, %v936, 0
        %v1502 = vsel %vm1340, %v937, 0
        %v1505 = vsel %vm1340, %v938, 0
        %v1508 = vsel %vm1340, %v939, 0
        %v1511 = vsel %vm1340, %v1124, 0
        %v1514 = vsel %vm1340, %v1125, 0
        %v1517 = vsel %vm1340, %v1126, 0
        %v1520 = vsel %vm1340, %v1127, 0
        %v1523 = vsel %vm1340, %v1128, 0
        %v1526 = vsel %vm1340, %v1129, 0
        %v1529 = vsel %vm1340, %v1130, 0
        %v1532 = vsel %vm1340, %v1131, 0
        %1534 = vmatprep.subr.bf16.mxu0 0
        %1535 = vmatpush1.bf16.xpose.msra.mxu0 %v1532
        %1536 = vmatprep.subr.bf16.mxu0 0
        %1537 = vmatpush1.bf16.xpose.msra.mxu0 %v1529
        %1538 = vmatprep.subr.bf16.mxu0 0
        %1539 = vmatpush1.bf16.xpose.msra.mxu0 %v1526
        %1540 = vmatprep.subr.bf16.mxu0 0
        %1541 = vmatpush1.bf16.xpose.msra.mxu0 %v1523
        %1542 = vmatprep.subr.bf16.mxu0 0
        %1543 = vmatpush1.bf16.xpose.msra.mxu0 %v1520
        %1544 = vmatprep.subr.bf16.mxu0 0
        %1545 = vmatpush1.bf16.xpose.msra.mxu0 %v1517
        %1546 = vmatprep.subr.bf16.mxu0 0
        %1547 = vmatpush1.bf16.xpose.msra.mxu0 %v1514
        %1548 = vmatprep.subr.bf16.mxu0 0
        %1549 = vmatpush1.bf16.xpose.msra.mxu0 %v1511
        %1550 = vmatprep.subr.bf16.mxu0 0
        %1551 = vmatpush2.bf16.xpose.msra.mxu0 0
        %1552 = vmatprep.subr.bf16.mxu0 0
        %1553 = vmatpush2.bf16.xpose.msra.mxu0 0
        %1554 = vmatprep.subr.bf16.mxu0 0
        %1555 = vmatpush2.bf16.xpose.msra.mxu0 0
        %1556 = vmatprep.subr.bf16.mxu0 0
        %1557 = vmatpush2.bf16.xpose.msra.mxu0 0
        %1558 = vmatprep.subr.bf16.mxu0 0
        %1559 = vmatpush2.bf16.xpose.msra.mxu0 0
        %1560 = vmatprep.subr.bf16.mxu0 0
        %1561 = vmatpush2.bf16.xpose.msra.mxu0 0
        %1562 = vmatprep.subr.bf16.mxu0 0
        %1563 = vmatpush2.bf16.xpose.msra.mxu0 0
        %1564 = vmatprep.subr.bf16.mxu0 0
        %1565 = vmatpush2.bf16.xpose.msra.mxu0 0
        %1566 = vmatprep.mubr.bf16.mxu0 0
        %1567 = vmatmul.mubr.bf16.gmra.mxu0 %v1487
        %v1568 = vpop.f32.mrf.mxu0
        %v1569 = vadd.f32 0.0, %v1568
        %v1570 = vpop.f32.mrf.mxu0
        %v1571 = vpop.f32.mrf.mxu0
        %v1572 = vadd.f32 0.0, %v1571
        %v1573 = vpop.f32.mrf.mxu0
        %1574 = vmatprep.mubr.bf16.mxu0 0
        %1575 = vmatmul.mubr.bf16.gmra.mxu0 %v1490
        %v1576 = vpop.f32.mrf.mxu0
        %v1577 = vadd.f32 0.0, %v1576
        %v1578 = vpop.f32.mrf.mxu0
        %v1579 = vpop.f32.mrf.mxu0
        %v1580 = vadd.f32 0.0, %v1579
        %v1581 = vpop.f32.mrf.mxu0
        %1582 = vmatprep.mubr.bf16.mxu0 0
        %1583 = vmatmul.mubr.bf16.gmra.mxu0 %v1493
        %v1584 = vpop.f32.mrf.mxu0
        %v1585 = vadd.f32 0.0, %v1584
        %v1586 = vpop.f32.mrf.mxu0
        %v1587 = vpop.f32.mrf.mxu0
        %v1588 = vadd.f32 0.0, %v1587
        %v1589 = vpop.f32.mrf.mxu0
        %1590 = vmatprep.mubr.bf16.mxu0 0
        %1591 = vmatmul.mubr.bf16.gmra.mxu0 %v1496
        %v1592 = vpop.f32.mrf.mxu0
        %v1593 = vadd.f32 0.0, %v1592
        %v1594 = vpop.f32.mrf.mxu0
        %v1595 = vpop.f32.mrf.mxu0
        %v1596 = vadd.f32 0.0, %v1595
        %v1597 = vpop.f32.mrf.mxu0
        %1598 = vmatprep.mubr.bf16.mxu0 0
        %1599 = vmatmul.mubr.bf16.gmra.mxu0 %v1499
        %v1600 = vpop.f32.mrf.mxu0
        %v1601 = vadd.f32 0.0, %v1600
        %v1602 = vpop.f32.mrf.mxu0
        %v1603 = vpop.f32.mrf.mxu0
        %v1604 = vadd.f32 0.0, %v1603
        %v1605 = vpop.f32.mrf.mxu0
        %1606 = vmatprep.mubr.bf16.mxu0 0
        %1607 = vmatmul.mubr.bf16.gmra.mxu0 %v1502
        %v1608 = vpop.f32.mrf.mxu0
        %v1609 = vadd.f32 0.0, %v1608
        %v1610 = vpop.f32.mrf.mxu0
        %v1611 = vpop.f32.mrf.mxu0
        %v1612 = vadd.f32 0.0, %v1611
        %v1613 = vpop.f32.mrf.mxu0
        %1614 = vmatprep.mubr.bf16.mxu0 0
        %1615 = vmatmul.mubr.bf16.gmra.mxu0 %v1505
        %v1616 = vpop.f32.mrf.mxu0
        %v1617 = vadd.f32 0.0, %v1616
        %v1618 = vpop.f32.mrf.mxu0
        %v1619 = vpop.f32.mrf.mxu0
        %v1620 = vadd.f32 0.0, %v1619
        %v1621 = vpop.f32.mrf.mxu0
        %1622 = vmatprep.mubr.bf16.mxu0 0
        %1623 = vmatmul.mubr.bf16.gmra.mxu0 %v1508
        %v1624 = vpop.f32.mrf.mxu0
        %v1625 = vadd.f32 0.0, %v1624
        %v1626 = vpop.f32.mrf.mxu0
        %v1627 = vpop.f32.mrf.mxu0
        %v1628 = vadd.f32 0.0, %v1627
        %v1629 = vpop.f32.mrf.mxu0
        %1630 = vdwg.mxu0
        %v1632 = vsel %vm1340, %v940, 0
        %v1635 = vsel %vm1340, %v941, 0
        %v1638 = vsel %vm1340, %v942, 0
        %v1641 = vsel %vm1340, %v943, 0
        %v1644 = vsel %vm1340, %v944, 0
        %v1647 = vsel %vm1340, %v945, 0
        %v1650 = vsel %vm1340, %v946, 0
        %v1653 = vsel %vm1340, %v947, 0
        %v1656 = vsel %vm1340, %v1132, 0
        %v1659 = vsel %vm1340, %v1133, 0
        %v1662 = vsel %vm1340, %v1134, 0
        %v1665 = vsel %vm1340, %v1135, 0
        %v1668 = vsel %vm1340, %v1136, 0
        %v1671 = vsel %vm1340, %v1137, 0
        %v1674 = vsel %vm1340, %v1138, 0
        %v1677 = vsel %vm1340, %v1139, 0
        %1679 = vmatprep.subr.bf16.mxu0 0
        %1680 = vmatpush1.bf16.xpose.msra.mxu0 %v1677
        %1681 = vmatprep.subr.bf16.mxu0 0
        %1682 = vmatpush1.bf16.xpose.msra.mxu0 %v1674
        %1683 = vmatprep.subr.bf16.mxu0 0
        %1684 = vmatpush1.bf16.xpose.msra.mxu0 %v1671
        %1685 = vmatprep.subr.bf16.mxu0 0
        %1686 = vmatpush1.bf16.xpose.msra.mxu0 %v1668
        %1687 = vmatprep.subr.bf16.mxu0 0
        %1688 = vmatpush1.bf16.xpose.msra.mxu0 %v1665
        %1689 = vmatprep.subr.bf16.mxu0 0
        %1690 = vmatpush1.bf16.xpose.msra.mxu0 %v1662
        %1691 = vmatprep.subr.bf16.mxu0 0
        %1692 = vmatpush1.bf16.xpose.msra.mxu0 %v1659
        %1693 = vmatprep.subr.bf16.mxu0 0
        %1694 = vmatpush1.bf16.xpose.msra.mxu0 %v1656
        %1695 = vmatprep.subr.bf16.mxu0 0
        %1696 = vmatpush2.bf16.xpose.msra.mxu0 0
        %1697 = vmatprep.subr.bf16.mxu0 0
        %1698 = vmatpush2.bf16.xpose.msra.mxu0 0
        %1699 = vmatprep.subr.bf16.mxu0 0
        %1700 = vmatpush2.bf16.xpose.msra.mxu0 0
        %1701 = vmatprep.subr.bf16.mxu0 0
        %1702 = vmatpush2.bf16.xpose.msra.mxu0 0
        %1703 = vmatprep.subr.bf16.mxu0 0
        %1704 = vmatpush2.bf16.xpose.msra.mxu0 0
        %1705 = vmatprep.subr.bf16.mxu0 0
        %1706 = vmatpush2.bf16.xpose.msra.mxu0 0
        %1707 = vmatprep.subr.bf16.mxu0 0
        %1708 = vmatpush2.bf16.xpose.msra.mxu0 0
        %1709 = vmatprep.subr.bf16.mxu0 0
        %1710 = vmatpush2.bf16.xpose.msra.mxu0 0
        %1711 = vmatprep.mubr.bf16.mxu0 0
        %1712 = vmatmul.mubr.bf16.gmra.mxu0 %v1632
        %v1713 = vpop.f32.mrf.mxu0
        %v1714 = vadd.f32 0.0, %v1713
        %v1715 = vpop.f32.mrf.mxu0
        %v1716 = vpop.f32.mrf.mxu0
        %v1717 = vadd.f32 0.0, %v1716
        %v1718 = vpop.f32.mrf.mxu0
        %1719 = vmatprep.mubr.bf16.mxu0 0
        %1720 = vmatmul.mubr.bf16.gmra.mxu0 %v1635
        %v1721 = vpop.f32.mrf.mxu0
        %v1722 = vadd.f32 0.0, %v1721
        %v1723 = vpop.f32.mrf.mxu0
        %v1724 = vpop.f32.mrf.mxu0
        %v1725 = vadd.f32 0.0, %v1724
        %v1726 = vpop.f32.mrf.mxu0
        %1727 = vmatprep.mubr.bf16.mxu0 0
        %1728 = vmatmul.mubr.bf16.gmra.mxu0 %v1638
        %v1729 = vpop.f32.mrf.mxu0
        %v1730 = vadd.f32 0.0, %v1729
        %v1731 = vpop.f32.mrf.mxu0
        %v1732 = vpop.f32.mrf.mxu0
        %v1733 = vadd.f32 0.0, %v1732
        %v1734 = vpop.f32.mrf.mxu0
        %1735 = vmatprep.mubr.bf16.mxu0 0
        %1736 = vmatmul.mubr.bf16.gmra.mxu0 %v1641
        %v1737 = vpop.f32.mrf.mxu0
        %v1738 = vadd.f32 0.0, %v1737
        %v1739 = vpop.f32.mrf.mxu0
        %v1740 = vpop.f32.mrf.mxu0
        %v1741 = vadd.f32 0.0, %v1740
        %v1742 = vpop.f32.mrf.mxu0
        %1743 = vmatprep.mubr.bf16.mxu0 0
        %1744 = vmatmul.mubr.bf16.gmra.mxu0 %v1644
        %v1745 = vpop.f32.mrf.mxu0
        %v1746 = vadd.f32 0.0, %v1745
        %v1747 = vpop.f32.mrf.mxu0
        %v1748 = vpop.f32.mrf.mxu0
        %v1749 = vadd.f32 0.0, %v1748
        %v1750 = vpop.f32.mrf.mxu0
        %1751 = vmatprep.mubr.bf16.mxu0 0
        %1752 = vmatmul.mubr.bf16.gmra.mxu0 %v1647
        %v1753 = vpop.f32.mrf.mxu0
        %v1754 = vadd.f32 0.0, %v1753
        %v1755 = vpop.f32.mrf.mxu0
        %v1756 = vpop.f32.mrf.mxu0
        %v1757 = vadd.f32 0.0, %v1756
        %v1758 = vpop.f32.mrf.mxu0
        %1759 = vmatprep.mubr.bf16.mxu0 0
        %1760 = vmatmul.mubr.bf16.gmra.mxu0 %v1650
        %v1761 = vpop.f32.mrf.mxu0
        %v1762 = vadd.f32 0.0, %v1761
        %v1763 = vpop.f32.mrf.mxu0
        %v1764 = vpop.f32.mrf.mxu0
        %v1765 = vadd.f32 0.0, %v1764
        %v1766 = vpop.f32.mrf.mxu0
        %1767 = vmatprep.mubr.bf16.mxu0 0
        %1768 = vmatmul.mubr.bf16.gmra.mxu0 %v1653
        %v1769 = vpop.f32.mrf.mxu0
        %v1770 = vadd.f32 0.0, %v1769
        %v1771 = vpop.f32.mrf.mxu0
        %v1772 = vpop.f32.mrf.mxu0
        %v1773 = vadd.f32 0.0, %v1772
        %v1774 = vpop.f32.mrf.mxu0
        %1775 = vdwg.mxu0
        %v1777 = vsel %vm1340, %v948, 0
        %v1780 = vsel %vm1340, %v949, 0
        %v1783 = vsel %vm1340, %v950, 0
        %v1786 = vsel %vm1340, %v951, 0
        %v1789 = vsel %vm1340, %v952, 0
        %v1792 = vsel %vm1340, %v953, 0
        %v1795 = vsel %vm1340, %v954, 0
        %v1798 = vsel %vm1340, %v955, 0
        %v1801 = vsel %vm1340, %v1140, 0
        %v1804 = vsel %vm1340, %v1141, 0
        %v1807 = vsel %vm1340, %v1142, 0
        %v1810 = vsel %vm1340, %v1143, 0
        %v1813 = vsel %vm1340, %v1144, 0
        %v1816 = vsel %vm1340, %v1145, 0
        %v1819 = vsel %vm1340, %v1146, 0
        %v1822 = vsel %vm1340, %v1147, 0
        %1824 = vmatprep.subr.bf16.mxu0 0
        %1825 = vmatpush1.bf16.xpose.msra.mxu0 %v1822
        %1826 = vmatprep.subr.bf16.mxu0 0
        %1827 = vmatpush1.bf16.xpose.msra.mxu0 %v1819
        %1828 = vmatprep.subr.bf16.mxu0 0
        %1829 = vmatpush1.bf16.xpose.msra.mxu0 %v1816
        %1830 = vmatprep.subr.bf16.mxu0 0
        %1831 = vmatpush1.bf16.xpose.msra.mxu0 %v1813
        %1832 = vmatprep.subr.bf16.mxu0 0
        %1833 = vmatpush1.bf16.xpose.msra.mxu0 %v1810
        %1834 = vmatprep.subr.bf16.mxu0 0
        %1835 = vmatpush1.bf16.xpose.msra.mxu0 %v1807
        %1836 = vmatprep.subr.bf16.mxu0 0
        %1837 = vmatpush1.bf16.xpose.msra.mxu0 %v1804
        %1838 = vmatprep.subr.bf16.mxu0 0
        %1839 = vmatpush1.bf16.xpose.msra.mxu0 %v1801
        %1840 = vmatprep.subr.bf16.mxu0 0
        %1841 = vmatpush2.bf16.xpose.msra.mxu0 0
        %1842 = vmatprep.subr.bf16.mxu0 0
        %1843 = vmatpush2.bf16.xpose.msra.mxu0 0
        %1844 = vmatprep.subr.bf16.mxu0 0
        %1845 = vmatpush2.bf16.xpose.msra.mxu0 0
        %1846 = vmatprep.subr.bf16.mxu0 0
        %1847 = vmatpush2.bf16.xpose.msra.mxu0 0
        %1848 = vmatprep.subr.bf16.mxu0 0
        %1849 = vmatpush2.bf16.xpose.msra.mxu0 0
        %1850 = vmatprep.subr.bf16.mxu0 0
        %1851 = vmatpush2.bf16.xpose.msra.mxu0 0
        %1852 = vmatprep.subr.bf16.mxu0 0
        %1853 = vmatpush2.bf16.xpose.msra.mxu0 0
        %1854 = vmatprep.subr.bf16.mxu0 0
        %1855 = vmatpush2.bf16.xpose.msra.mxu0 0
        %1856 = vmatprep.mubr.bf16.mxu0 0
        %1857 = vmatmul.mubr.bf16.gmra.mxu0 %v1777
        %v1858 = vpop.f32.mrf.mxu0
        %v1859 = vadd.f32 0.0, %v1858
        %v1860 = vpop.f32.mrf.mxu0
        %v1861 = vpop.f32.mrf.mxu0
        %v1862 = vadd.f32 0.0, %v1861
        %v1863 = vpop.f32.mrf.mxu0
        %1864 = vmatprep.mubr.bf16.mxu0 0
        %1865 = vmatmul.mubr.bf16.gmra.mxu0 %v1780
        %v1866 = vpop.f32.mrf.mxu0
        %v1867 = vadd.f32 0.0, %v1866
        %v1868 = vpop.f32.mrf.mxu0
        %v1869 = vpop.f32.mrf.mxu0
        %v1870 = vadd.f32 0.0, %v1869
        %v1871 = vpop.f32.mrf.mxu0
        %1872 = vmatprep.mubr.bf16.mxu0 0
        %1873 = vmatmul.mubr.bf16.gmra.mxu0 %v1783
        %v1874 = vpop.f32.mrf.mxu0
        %v1875 = vadd.f32 0.0, %v1874
        %v1876 = vpop.f32.mrf.mxu0
        %v1877 = vpop.f32.mrf.mxu0
        %v1878 = vadd.f32 0.0, %v1877
        %v1879 = vpop.f32.mrf.mxu0
        %1880 = vmatprep.mubr.bf16.mxu0 0
        %1881 = vmatmul.mubr.bf16.gmra.mxu0 %v1786
        %v1882 = vpop.f32.mrf.mxu0
        %v1883 = vadd.f32 0.0, %v1882
        %v1884 = vpop.f32.mrf.mxu0
        %v1885 = vpop.f32.mrf.mxu0
        %v1886 = vadd.f32 0.0, %v1885
        %v1887 = vpop.f32.mrf.mxu0
        %1888 = vmatprep.mubr.bf16.mxu0 0
        %1889 = vmatmul.mubr.bf16.gmra.mxu0 %v1789
        %v1890 = vpop.f32.mrf.mxu0
        %v1891 = vadd.f32 0.0, %v1890
        %v1892 = vpop.f32.mrf.mxu0
        %v1893 = vpop.f32.mrf.mxu0
        %v1894 = vadd.f32 0.0, %v1893
        %v1895 = vpop.f32.mrf.mxu0
        %1896 = vmatprep.mubr.bf16.mxu0 0
        %1897 = vmatmul.mubr.bf16.gmra.mxu0 %v1792
        %v1898 = vpop.f32.mrf.mxu0
        %v1899 = vadd.f32 0.0, %v1898
        %v1900 = vpop.f32.mrf.mxu0
        %v1901 = vpop.f32.mrf.mxu0
        %v1902 = vadd.f32 0.0, %v1901
        %v1903 = vpop.f32.mrf.mxu0
        %1904 = vmatprep.mubr.bf16.mxu0 0
        %1905 = vmatmul.mubr.bf16.gmra.mxu0 %v1795
        %v1906 = vpop.f32.mrf.mxu0
        %v1907 = vadd.f32 0.0, %v1906
        %v1908 = vpop.f32.mrf.mxu0
        %v1909 = vpop.f32.mrf.mxu0
        %v1910 = vadd.f32 0.0, %v1909
        %v1911 = vpop.f32.mrf.mxu0
        %1912 = vmatprep.mubr.bf16.mxu0 0
        %1913 = vmatmul.mubr.bf16.gmra.mxu0 %v1798
        %v1914 = vpop.f32.mrf.mxu0
        %v1915 = vadd.f32 0.0, %v1914
        %v1916 = vpop.f32.mrf.mxu0
        %v1917 = vpop.f32.mrf.mxu0
        %v1918 = vadd.f32 0.0, %v1917
        %v1919 = vpop.f32.mrf.mxu0
        %1920 = vdwg.mxu0
        %v1921 = vlaneseq
        %v1922 = vshrl.u32 %v1921, 7
        %v1923 = vadd.s32 %v1922, 8
        %v1924 = vadd.s32 %v1922, 16
        %v1925 = vadd.s32 %v1922, 24
        %v1926 = vadd.s32 %v1922, 32
        %v1927 = vadd.s32 %v1922, 40
        %v1928 = vadd.s32 %v1922, 48
        %v1929 = vadd.s32 %v1922, 56
        %v1930 = vadd.s32 %v1922, 64
        %v1931 = vadd.s32 %v1922, 72
        %v1932 = vadd.s32 %v1922, 80
        %v1933 = vadd.s32 %v1922, 88
        %v1934 = vadd.s32 %v1922, 96
        %v1935 = vadd.s32 %v1922, 104
        %v1936 = vadd.s32 %v1922, 112
        %v1937 = vadd.s32 %v1922, 120
        %v1938 = vlaneseq
        %v1939 = vand.u32 %v1938, 127
        %vm1940 = vcmp.le.s32.totalorder %v1939, %v1922
        %vm1941 = vcmp.le.s32.totalorder %v1939, %v1923
        %vm1942 = vcmp.le.s32.totalorder %v1939, %v1924
        %vm1943 = vcmp.le.s32.totalorder %v1939, %v1925
        %vm1944 = vcmp.le.s32.totalorder %v1939, %v1926
        %vm1945 = vcmp.le.s32.totalorder %v1939, %v1927
        %vm1946 = vcmp.le.s32.totalorder %v1939, %v1928
        %vm1947 = vcmp.le.s32.totalorder %v1939, %v1929
        %vm1948 = vcmp.le.s32.totalorder %v1939, %v1930
        %vm1949 = vcmp.le.s32.totalorder %v1939, %v1931
        %vm1950 = vcmp.le.s32.totalorder %v1939, %v1932
        %vm1951 = vcmp.le.s32.totalorder %v1939, %v1933
        %vm1952 = vcmp.le.s32.totalorder %v1939, %v1934
        %vm1953 = vcmp.le.s32.totalorder %v1939, %v1935
        %vm1954 = vcmp.le.s32.totalorder %v1939, %v1936
        %vm1955 = vcmp.le.s32.totalorder %v1939, %v1937
        %v1956 = vsel %vm1940, 1, 0
        %v1957 = vsel %vm1941, 1, 0
        %v1958 = vsel %vm1942, 1, 0
        %v1959 = vsel %vm1943, 1, 0
        %v1960 = vsel %vm1944, 1, 0
        %v1961 = vsel %vm1945, 1, 0
        %v1962 = vsel %vm1946, 1, 0
        %v1963 = vsel %vm1947, 1, 0
        %v1964 = vsel %vm1948, 1, 0
        %v1965 = vsel %vm1949, 1, 0
        %v1966 = vsel %vm1950, 1, 0
        %v1967 = vsel %vm1951, 1, 0
        %v1968 = vsel %vm1952, 1, 0
        %v1969 = vsel %vm1953, 1, 0
        %v1970 = vsel %vm1954, 1, 0
        %v1971 = vsel %vm1955, 1, 0
        %vm1972 = vcmp.eq.s32.totalorder %v1956, 1
        %vm1973 = vcmp.eq.s32.totalorder %v1957, 1
        %vm1974 = vcmp.eq.s32.totalorder %v1958, 1
        %vm1975 = vcmp.eq.s32.totalorder %v1959, 1
        %vm1976 = vcmp.eq.s32.totalorder %v1960, 1
        %vm1977 = vcmp.eq.s32.totalorder %v1961, 1
        %vm1978 = vcmp.eq.s32.totalorder %v1962, 1
        %vm1979 = vcmp.eq.s32.totalorder %v1963, 1
        %vm1980 = vcmp.eq.s32.totalorder %v1964, 1
        %vm1981 = vcmp.eq.s32.totalorder %v1965, 1
        %vm1982 = vcmp.eq.s32.totalorder %v1966, 1
        %vm1983 = vcmp.eq.s32.totalorder %v1967, 1
        %vm1984 = vcmp.eq.s32.totalorder %v1968, 1
        %vm1985 = vcmp.eq.s32.totalorder %v1969, 1
        %vm1986 = vcmp.eq.s32.totalorder %v1970, 1
        %vm1987 = vcmp.eq.s32.totalorder %v1971, 1
        %v1988 = vsel %vm1972, %v1424, -1e+30
        %v1989 = vsel %vm1973, %v1427, -1e+30
        %v1990 = vsel %vm1974, %v1432, -1e+30
        %v1991 = vsel %vm1975, %v1435, -1e+30
        %v1992 = vsel %vm1976, %v1440, -1e+30
        %v1993 = vsel %vm1977, %v1443, -1e+30
        %v1994 = vsel %vm1978, %v1448, -1e+30
        %v1995 = vsel %vm1979, %v1451, -1e+30
        %v1996 = vsel %vm1980, %v1456, -1e+30
        %v1997 = vsel %vm1981, %v1459, -1e+30
        %v1998 = vsel %vm1982, %v1464, -1e+30
        %v1999 = vsel %vm1983, %v1467, -1e+30
        %v2000 = vsel %vm1984, %v1472, -1e+30
        %v2001 = vsel %vm1985, %v1475, -1e+30
        %v2002 = vsel %vm1986, %v1480, -1e+30
        %v2003 = vsel %vm1987, %v1483, -1e+30
        %v2004 = vsel %vm1972, %v1569, -1e+30
        %v2005 = vsel %vm1973, %v1572, -1e+30
        %v2006 = vsel %vm1974, %v1577, -1e+30
        %v2007 = vsel %vm1975, %v1580, -1e+30
        %v2008 = vsel %vm1976, %v1585, -1e+30
        %v2009 = vsel %vm1977, %v1588, -1e+30
        %v2010 = vsel %vm1978, %v1593, -1e+30
        %v2011 = vsel %vm1979, %v1596, -1e+30
        %v2012 = vsel %vm1980, %v1601, -1e+30
        %v2013 = vsel %vm1981, %v1604, -1e+30
        %v2014 = vsel %vm1982, %v1609, -1e+30
        %v2015 = vsel %vm1983, %v1612, -1e+30
        %v2016 = vsel %vm1984, %v1617, -1e+30
        %v2017 = vsel %vm1985, %v1620, -1e+30
        %v2018 = vsel %vm1986, %v1625, -1e+30
        %v2019 = vsel %vm1987, %v1628, -1e+30
        %v2020 = vsel %vm1972, %v1714, -1e+30
        %v2021 = vsel %vm1973, %v1717, -1e+30
        %v2022 = vsel %vm1974, %v1722, -1e+30
        %v2023 = vsel %vm1975, %v1725, -1e+30
        %v2024 = vsel %vm1976, %v1730, -1e+30
        %v2025 = vsel %vm1977, %v1733, -1e+30
        %v2026 = vsel %vm1978, %v1738, -1e+30
        %v2027 = vsel %vm1979, %v1741, -1e+30
        %v2028 = vsel %vm1980, %v1746, -1e+30
        %v2029 = vsel %vm1981, %v1749, -1e+30
        %v2030 = vsel %vm1982, %v1754, -1e+30
        %v2031 = vsel %vm1983, %v1757, -1e+30
        %v2032 = vsel %vm1984, %v1762, -1e+30
        %v2033 = vsel %vm1985, %v1765, -1e+30
        %v2034 = vsel %vm1986, %v1770, -1e+30
        %v2035 = vsel %vm1987, %v1773, -1e+30
        %v2036 = vsel %vm1972, %v1859, -1e+30
        %v2037 = vsel %vm1973, %v1862, -1e+30
        %v2038 = vsel %vm1974, %v1867, -1e+30
        %v2039 = vsel %vm1975, %v1870, -1e+30
        %v2040 = vsel %vm1976, %v1875, -1e+30
        %v2041 = vsel %vm1977, %v1878, -1e+30
        %v2042 = vsel %vm1978, %v1883, -1e+30
        %v2043 = vsel %vm1979, %v1886, -1e+30
        %v2044 = vsel %vm1980, %v1891, -1e+30
        %v2045 = vsel %vm1981, %v1894, -1e+30
        %v2046 = vsel %vm1982, %v1899, -1e+30
        %v2047 = vsel %vm1983, %v1902, -1e+30
        %v2048 = vsel %vm1984, %v1907, -1e+30
        %v2049 = vsel %vm1985, %v1910, -1e+30
        %v2050 = vsel %vm1986, %v1915, -1e+30
        %v2051 = vsel %vm1987, %v1918, -1e+30
        %2052 = vmax.xlane.f32.xlu0 %v1988
        %v2053 = vpop.xlane.xlu0 %2052
        %2054 = vmax.xlane.f32.xlu0 %v1989
        %v2055 = vpop.xlane.xlu0 %2054
        %2056 = vmax.xlane.f32.xlu0 %v1990
        %v2057 = vpop.xlane.xlu0 %2056
        %2058 = vmax.xlane.f32.xlu0 %v1991
        %v2059 = vpop.xlane.xlu0 %2058
        %2060 = vmax.xlane.f32.xlu0 %v1992
        %v2061 = vpop.xlane.xlu0 %2060
        %2062 = vmax.xlane.f32.xlu0 %v1993
        %v2063 = vpop.xlane.xlu0 %2062
        %2064 = vmax.xlane.f32.xlu0 %v1994
        %v2065 = vpop.xlane.xlu0 %2064
        %2066 = vmax.xlane.f32.xlu0 %v1995
        %v2067 = vpop.xlane.xlu0 %2066
        %2068 = vmax.xlane.f32.xlu0 %v1996
        %v2069 = vpop.xlane.xlu0 %2068
        %2070 = vmax.xlane.f32.xlu0 %v1997
        %v2071 = vpop.xlane.xlu0 %2070
        %2072 = vmax.xlane.f32.xlu0 %v1998
        %v2073 = vpop.xlane.xlu0 %2072
        %2074 = vmax.xlane.f32.xlu0 %v1999
        %v2075 = vpop.xlane.xlu0 %2074
        %2076 = vmax.xlane.f32.xlu0 %v2000
        %v2077 = vpop.xlane.xlu0 %2076
        %2078 = vmax.xlane.f32.xlu0 %v2001
        %v2079 = vpop.xlane.xlu0 %2078
        %2080 = vmax.xlane.f32.xlu0 %v2002
        %v2081 = vpop.xlane.xlu0 %2080
        %2082 = vmax.xlane.f32.xlu0 %v2003
        %v2083 = vpop.xlane.xlu0 %2082
        %2084 = vmax.xlane.f32.xlu0 %v2004
        %v2085 = vpop.xlane.xlu0 %2084
        %2086 = vmax.xlane.f32.xlu0 %v2005
        %v2087 = vpop.xlane.xlu0 %2086
        %2088 = vmax.xlane.f32.xlu0 %v2006
        %v2089 = vpop.xlane.xlu0 %2088
        %2090 = vmax.xlane.f32.xlu0 %v2007
        %v2091 = vpop.xlane.xlu0 %2090
        %2092 = vmax.xlane.f32.xlu0 %v2008
        %v2093 = vpop.xlane.xlu0 %2092
        %2094 = vmax.xlane.f32.xlu0 %v2009
        %v2095 = vpop.xlane.xlu0 %2094
        %2096 = vmax.xlane.f32.xlu0 %v2010
        %v2097 = vpop.xlane.xlu0 %2096
        %2098 = vmax.xlane.f32.xlu0 %v2011
        %v2099 = vpop.xlane.xlu0 %2098
        %2100 = vmax.xlane.f32.xlu0 %v2012
        %v2101 = vpop.xlane.xlu0 %2100
        %2102 = vmax.xlane.f32.xlu0 %v2013
        %v2103 = vpop.xlane.xlu0 %2102
        %2104 = vmax.xlane.f32.xlu0 %v2014
        %v2105 = vpop.xlane.xlu0 %2104
        %2106 = vmax.xlane.f32.xlu0 %v2015
        %v2107 = vpop.xlane.xlu0 %2106
        %2108 = vmax.xlane.f32.xlu0 %v2016
        %v2109 = vpop.xlane.xlu0 %2108
        %2110 = vmax.xlane.f32.xlu0 %v2017
        %v2111 = vpop.xlane.xlu0 %2110
        %2112 = vmax.xlane.f32.xlu0 %v2018
        %v2113 = vpop.xlane.xlu0 %2112
        %2114 = vmax.xlane.f32.xlu0 %v2019
        %v2115 = vpop.xlane.xlu0 %2114
        %2116 = vmax.xlane.f32.xlu0 %v2020
        %v2117 = vpop.xlane.xlu0 %2116
        %2118 = vmax.xlane.f32.xlu0 %v2021
        %v2119 = vpop.xlane.xlu0 %2118
        %2120 = vmax.xlane.f32.xlu0 %v2022
        %v2121 = vpop.xlane.xlu0 %2120
        %2122 = vmax.xlane.f32.xlu0 %v2023
        %v2123 = vpop.xlane.xlu0 %2122
        %2124 = vmax.xlane.f32.xlu0 %v2024
        %v2125 = vpop.xlane.xlu0 %2124
        %2126 = vmax.xlane.f32.xlu0 %v2025
        %v2127 = vpop.xlane.xlu0 %2126
        %2128 = vmax.xlane.f32.xlu0 %v2026
        %v2129 = vpop.xlane.xlu0 %2128
        %2130 = vmax.xlane.f32.xlu0 %v2027
        %v2131 = vpop.xlane.xlu0 %2130
        %2132 = vmax.xlane.f32.xlu0 %v2028
        %v2133 = vpop.xlane.xlu0 %2132
        %2134 = vmax.xlane.f32.xlu0 %v2029
        %v2135 = vpop.xlane.xlu0 %2134
        %2136 = vmax.xlane.f32.xlu0 %v2030
        %v2137 = vpop.xlane.xlu0 %2136
        %2138 = vmax.xlane.f32.xlu0 %v2031
        %v2139 = vpop.xlane.xlu0 %2138
        %2140 = vmax.xlane.f32.xlu0 %v2032
        %v2141 = vpop.xlane.xlu0 %2140
        %2142 = vmax.xlane.f32.xlu0 %v2033
        %v2143 = vpop.xlane.xlu0 %2142
        %2144 = vmax.xlane.f32.xlu0 %v2034
        %v2145 = vpop.xlane.xlu0 %2144
        %2146 = vmax.xlane.f32.xlu0 %v2035
        %v2147 = vpop.xlane.xlu0 %2146
        %2148 = vmax.xlane.f32.xlu0 %v2036
        %v2149 = vpop.xlane.xlu0 %2148
        %2150 = vmax.xlane.f32.xlu0 %v2037
        %v2151 = vpop.xlane.xlu0 %2150
        %2152 = vmax.xlane.f32.xlu0 %v2038
        %v2153 = vpop.xlane.xlu0 %2152
        %2154 = vmax.xlane.f32.xlu0 %v2039
        %v2155 = vpop.xlane.xlu0 %2154
        %2156 = vmax.xlane.f32.xlu0 %v2040
        %v2157 = vpop.xlane.xlu0 %2156
        %2158 = vmax.xlane.f32.xlu0 %v2041
        %v2159 = vpop.xlane.xlu0 %2158
        %2160 = vmax.xlane.f32.xlu0 %v2042
        %v2161 = vpop.xlane.xlu0 %2160
        %2162 = vmax.xlane.f32.xlu0 %v2043
        %v2163 = vpop.xlane.xlu0 %2162
        %2164 = vmax.xlane.f32.xlu0 %v2044
        %v2165 = vpop.xlane.xlu0 %2164
        %2166 = vmax.xlane.f32.xlu0 %v2045
        %v2167 = vpop.xlane.xlu0 %2166
        %2168 = vmax.xlane.f32.xlu0 %v2046
        %v2169 = vpop.xlane.xlu0 %2168
        %2170 = vmax.xlane.f32.xlu0 %v2047
        %v2171 = vpop.xlane.xlu0 %2170
        %2172 = vmax.xlane.f32.xlu0 %v2048
        %v2173 = vpop.xlane.xlu0 %2172
        %2174 = vmax.xlane.f32.xlu0 %v2049
        %v2175 = vpop.xlane.xlu0 %2174
        %2176 = vmax.xlane.f32.xlu0 %v2050
        %v2177 = vpop.xlane.xlu0 %2176
        %2178 = vmax.xlane.f32.xlu0 %v2051
        %v2179 = vpop.xlane.xlu0 %2178
        %v2180 = vsub.f32 %v1988, %v2053
        %v2181 = vsub.f32 %v1989, %v2055
        %v2182 = vsub.f32 %v1990, %v2057
        %v2183 = vsub.f32 %v1991, %v2059
        %v2184 = vsub.f32 %v1992, %v2061
        %v2185 = vsub.f32 %v1993, %v2063
        %v2186 = vsub.f32 %v1994, %v2065
        %v2187 = vsub.f32 %v1995, %v2067
        %v2188 = vsub.f32 %v1996, %v2069
        %v2189 = vsub.f32 %v1997, %v2071
        %v2190 = vsub.f32 %v1998, %v2073
        %v2191 = vsub.f32 %v1999, %v2075
        %v2192 = vsub.f32 %v2000, %v2077
        %v2193 = vsub.f32 %v2001, %v2079
        %v2194 = vsub.f32 %v2002, %v2081
        %v2195 = vsub.f32 %v2003, %v2083
        %v2196 = vsub.f32 %v2004, %v2085
        %v2197 = vsub.f32 %v2005, %v2087
        %v2198 = vsub.f32 %v2006, %v2089
        %v2199 = vsub.f32 %v2007, %v2091
        %v2200 = vsub.f32 %v2008, %v2093
        %v2201 = vsub.f32 %v2009, %v2095
        %v2202 = vsub.f32 %v2010, %v2097
        %v2203 = vsub.f32 %v2011, %v2099
        %v2204 = vsub.f32 %v2012, %v2101
        %v2205 = vsub.f32 %v2013, %v2103
        %v2206 = vsub.f32 %v2014, %v2105
        %v2207 = vsub.f32 %v2015, %v2107
        %v2208 = vsub.f32 %v2016, %v2109
        %v2209 = vsub.f32 %v2017, %v2111
        %v2210 = vsub.f32 %v2018, %v2113
        %v2211 = vsub.f32 %v2019, %v2115
        %v2212 = vsub.f32 %v2020, %v2117
        %v2213 = vsub.f32 %v2021, %v2119
        %v2214 = vsub.f32 %v2022, %v2121
        %v2215 = vsub.f32 %v2023, %v2123
        %v2216 = vsub.f32 %v2024, %v2125
        %v2217 = vsub.f32 %v2025, %v2127
        %v2218 = vsub.f32 %v2026, %v2129
        %v2219 = vsub.f32 %v2027, %v2131
        %v2220 = vsub.f32 %v2028, %v2133
        %v2221 = vsub.f32 %v2029, %v2135
        %v2222 = vsub.f32 %v2030, %v2137
        %v2223 = vsub.f32 %v2031, %v2139
        %v2224 = vsub.f32 %v2032, %v2141
        %v2225 = vsub.f32 %v2033, %v2143
        %v2226 = vsub.f32 %v2034, %v2145
        %v2227 = vsub.f32 %v2035, %v2147
        %v2228 = vsub.f32 %v2036, %v2149
        %v2229 = vsub.f32 %v2037, %v2151
        %v2230 = vsub.f32 %v2038, %v2153
        %v2231 = vsub.f32 %v2039, %v2155
        %v2232 = vsub.f32 %v2040, %v2157
        %v2233 = vsub.f32 %v2041, %v2159
        %v2234 = vsub.f32 %v2042, %v2161
        %v2235 = vsub.f32 %v2043, %v2163
        %v2236 = vsub.f32 %v2044, %v2165
        %v2237 = vsub.f32 %v2045, %v2167
        %v2238 = vsub.f32 %v2046, %v2169
        %v2239 = vsub.f32 %v2047, %v2171
        %v2240 = vsub.f32 %v2048, %v2173
        %v2241 = vsub.f32 %v2049, %v2175
        %v2242 = vsub.f32 %v2050, %v2177
        %v2243 = vsub.f32 %v2051, %v2179
        %v2244 = vmul.f32 %v2180, 1.442695
        %v2245 = vpow.pop %v2244
        %v2246 = vmul.f32 %v2181, 1.442695
        %v2247 = vpow.pop %v2246
        %v2248 = vmul.f32 %v2182, 1.442695
        %v2249 = vpow.pop %v2248
        %v2250 = vmul.f32 %v2183, 1.442695
        %v2251 = vpow.pop %v2250
        %v2252 = vmul.f32 %v2184, 1.442695
        %v2253 = vpow.pop %v2252
        %v2254 = vmul.f32 %v2185, 1.442695
        %v2255 = vpow.pop %v2254
        %v2256 = vmul.f32 %v2186, 1.442695
        %v2257 = vpow.pop %v2256
        %v2258 = vmul.f32 %v2187, 1.442695
        %v2259 = vpow.pop %v2258
        %v2260 = vmul.f32 %v2188, 1.442695
        %v2261 = vpow.pop %v2260
        %v2262 = vmul.f32 %v2189, 1.442695
        %v2263 = vpow.pop %v2262
        %v2264 = vmul.f32 %v2190, 1.442695
        %v2265 = vpow.pop %v2264
        %v2266 = vmul.f32 %v2191, 1.442695
        %v2267 = vpow.pop %v2266
        %v2268 = vmul.f32 %v2192, 1.442695
        %v2269 = vpow.pop %v2268
        %v2270 = vmul.f32 %v2193, 1.442695
        %v2271 = vpow.pop %v2270
        %v2272 = vmul.f32 %v2194, 1.442695
        %v2273 = vpow.pop %v2272
        %v2274 = vmul.f32 %v2195, 1.442695
        %v2275 = vpow.pop %v2274
        %v2276 = vmul.f32 %v2196, 1.442695
        %v2277 = vpow.pop %v2276
        %v2278 = vmul.f32 %v2197, 1.442695
        %v2279 = vpow.pop %v2278
        %v2280 = vmul.f32 %v2198, 1.442695
        %v2281 = vpow.pop %v2280
        %v2282 = vmul.f32 %v2199, 1.442695
        %v2283 = vpow.pop %v2282
        %v2284 = vmul.f32 %v2200, 1.442695
        %v2285 = vpow.pop %v2284
        %v2286 = vmul.f32 %v2201, 1.442695
        %v2287 = vpow.pop %v2286
        %v2288 = vmul.f32 %v2202, 1.442695
        %v2289 = vpow.pop %v2288
        %v2290 = vmul.f32 %v2203, 1.442695
        %v2291 = vpow.pop %v2290
        %v2292 = vmul.f32 %v2204, 1.442695
        %v2293 = vpow.pop %v2292
        %v2294 = vmul.f32 %v2205, 1.442695
        %v2295 = vpow.pop %v2294
        %v2296 = vmul.f32 %v2206, 1.442695
        %v2297 = vpow.pop %v2296
        %v2298 = vmul.f32 %v2207, 1.442695
        %v2299 = vpow.pop %v2298
        %v2300 = vmul.f32 %v2208, 1.442695
        %v2301 = vpow.pop %v2300
        %v2302 = vmul.f32 %v2209, 1.442695
        %v2303 = vpow.pop %v2302
        %v2304 = vmul.f32 %v2210, 1.442695
        %v2305 = vpow.pop %v2304
        %v2306 = vmul.f32 %v2211, 1.442695
        %v2307 = vpow.pop %v2306
        %v2308 = vmul.f32 %v2212, 1.442695
        %v2309 = vpow.pop %v2308
        %v2310 = vmul.f32 %v2213, 1.442695
        %v2311 = vpow.pop %v2310
        %v2312 = vmul.f32 %v2214, 1.442695
        %v2313 = vpow.pop %v2312
        %v2314 = vmul.f32 %v2215, 1.442695
        %v2315 = vpow.pop %v2314
        %v2316 = vmul.f32 %v2216, 1.442695
        %v2317 = vpow.pop %v2316
        %v2318 = vmul.f32 %v2217, 1.442695
        %v2319 = vpow.pop %v2318
        %v2320 = vmul.f32 %v2218, 1.442695
        %v2321 = vpow.pop %v2320
        %v2322 = vmul.f32 %v2219, 1.442695
        %v2323 = vpow.pop %v2322
        %v2324 = vmul.f32 %v2220, 1.442695
        %v2325 = vpow.pop %v2324
        %v2326 = vmul.f32 %v2221, 1.442695
        %v2327 = vpow.pop %v2326
        %v2328 = vmul.f32 %v2222, 1.442695
        %v2329 = vpow.pop %v2328
        %v2330 = vmul.f32 %v2223, 1.442695
        %v2331 = vpow.pop %v2330
        %v2332 = vmul.f32 %v2224, 1.442695
        %v2333 = vpow.pop %v2332
        %v2334 = vmul.f32 %v2225, 1.442695
        %v2335 = vpow.pop %v2334
        %v2336 = vmul.f32 %v2226, 1.442695
        %v2337 = vpow.pop %v2336
        %v2338 = vmul.f32 %v2227, 1.442695
        %v2339 = vpow.pop %v2338
        %v2340 = vmul.f32 %v2228, 1.442695
        %v2341 = vpow.pop %v2340
        %v2342 = vmul.f32 %v2229, 1.442695
        %v2343 = vpow.pop %v2342
        %v2344 = vmul.f32 %v2230, 1.442695
        %v2345 = vpow.pop %v2344
        %v2346 = vmul.f32 %v2231, 1.442695
        %v2347 = vpow.pop %v2346
        %v2348 = vmul.f32 %v2232, 1.442695
        %v2349 = vpow.pop %v2348
        %v2350 = vmul.f32 %v2233, 1.442695
        %v2351 = vpow.pop %v2350
        %v2352 = vmul.f32 %v2234, 1.442695
        %v2353 = vpow.pop %v2352
        %v2354 = vmul.f32 %v2235, 1.442695
        %v2355 = vpow.pop %v2354
        %v2356 = vmul.f32 %v2236, 1.442695
        %v2357 = vpow.pop %v2356
        %v2358 = vmul.f32 %v2237, 1.442695
        %v2359 = vpow.pop %v2358
        %v2360 = vmul.f32 %v2238, 1.442695
        %v2361 = vpow.pop %v2360
        %v2362 = vmul.f32 %v2239, 1.442695
        %v2363 = vpow.pop %v2362
        %v2364 = vmul.f32 %v2240, 1.442695
        %v2365 = vpow.pop %v2364
        %v2366 = vmul.f32 %v2241, 1.442695
        %v2367 = vpow.pop %v2366
        %v2368 = vmul.f32 %v2242, 1.442695
        %v2369 = vpow.pop %v2368
        %v2370 = vmul.f32 %v2243, 1.442695
        %v2371 = vpow.pop %v2370
        %2372 = vadd.xlane.f32.xlu0 %v2245
        %v2373 = vpop.xlane.xlu0 %2372
        %2374 = vadd.xlane.f32.xlu0 %v2247
        %v2375 = vpop.xlane.xlu0 %2374
        %2376 = vadd.xlane.f32.xlu0 %v2249
        %v2377 = vpop.xlane.xlu0 %2376
        %2378 = vadd.xlane.f32.xlu0 %v2251
        %v2379 = vpop.xlane.xlu0 %2378
        %2380 = vadd.xlane.f32.xlu0 %v2253
        %v2381 = vpop.xlane.xlu0 %2380
        %2382 = vadd.xlane.f32.xlu0 %v2255
        %v2383 = vpop.xlane.xlu0 %2382
        %2384 = vadd.xlane.f32.xlu0 %v2257
        %v2385 = vpop.xlane.xlu0 %2384
        %2386 = vadd.xlane.f32.xlu0 %v2259
        %v2387 = vpop.xlane.xlu0 %2386
        %2388 = vadd.xlane.f32.xlu0 %v2261
        %v2389 = vpop.xlane.xlu0 %2388
        %2390 = vadd.xlane.f32.xlu0 %v2263
        %v2391 = vpop.xlane.xlu0 %2390
        %2392 = vadd.xlane.f32.xlu0 %v2265
        %v2393 = vpop.xlane.xlu0 %2392
        %2394 = vadd.xlane.f32.xlu0 %v2267
        %v2395 = vpop.xlane.xlu0 %2394
        %2396 = vadd.xlane.f32.xlu0 %v2269
        %v2397 = vpop.xlane.xlu0 %2396
        %2398 = vadd.xlane.f32.xlu0 %v2271
        %v2399 = vpop.xlane.xlu0 %2398
        %2400 = vadd.xlane.f32.xlu0 %v2273
        %v2401 = vpop.xlane.xlu0 %2400
        %2402 = vadd.xlane.f32.xlu0 %v2275
        %v2403 = vpop.xlane.xlu0 %2402
        %2404 = vadd.xlane.f32.xlu0 %v2277
        %v2405 = vpop.xlane.xlu0 %2404
        %2406 = vadd.xlane.f32.xlu0 %v2279
        %v2407 = vpop.xlane.xlu0 %2406
        %2408 = vadd.xlane.f32.xlu0 %v2281
        %v2409 = vpop.xlane.xlu0 %2408
        %2410 = vadd.xlane.f32.xlu0 %v2283
        %v2411 = vpop.xlane.xlu0 %2410
        %2412 = vadd.xlane.f32.xlu0 %v2285
        %v2413 = vpop.xlane.xlu0 %2412
        %2414 = vadd.xlane.f32.xlu0 %v2287
        %v2415 = vpop.xlane.xlu0 %2414
        %2416 = vadd.xlane.f32.xlu0 %v2289
        %v2417 = vpop.xlane.xlu0 %2416
        %2418 = vadd.xlane.f32.xlu0 %v2291
        %v2419 = vpop.xlane.xlu0 %2418
        %2420 = vadd.xlane.f32.xlu0 %v2293
        %v2421 = vpop.xlane.xlu0 %2420
        %2422 = vadd.xlane.f32.xlu0 %v2295
        %v2423 = vpop.xlane.xlu0 %2422
        %2424 = vadd.xlane.f32.xlu0 %v2297
        %v2425 = vpop.xlane.xlu0 %2424
        %2426 = vadd.xlane.f32.xlu0 %v2299
        %v2427 = vpop.xlane.xlu0 %2426
        %2428 = vadd.xlane.f32.xlu0 %v2301
        %v2429 = vpop.xlane.xlu0 %2428
        %2430 = vadd.xlane.f32.xlu0 %v2303
        %v2431 = vpop.xlane.xlu0 %2430
        %2432 = vadd.xlane.f32.xlu0 %v2305
        %v2433 = vpop.xlane.xlu0 %2432
        %2434 = vadd.xlane.f32.xlu0 %v2307
        %v2435 = vpop.xlane.xlu0 %2434
        %2436 = vadd.xlane.f32.xlu0 %v2309
        %v2437 = vpop.xlane.xlu0 %2436
        %2438 = vadd.xlane.f32.xlu0 %v2311
        %v2439 = vpop.xlane.xlu0 %2438
        %2440 = vadd.xlane.f32.xlu0 %v2313
        %v2441 = vpop.xlane.xlu0 %2440
        %2442 = vadd.xlane.f32.xlu0 %v2315
        %v2443 = vpop.xlane.xlu0 %2442
        %2444 = vadd.xlane.f32.xlu0 %v2317
        %v2445 = vpop.xlane.xlu0 %2444
        %2446 = vadd.xlane.f32.xlu0 %v2319
        %v2447 = vpop.xlane.xlu0 %2446
        %2448 = vadd.xlane.f32.xlu0 %v2321
        %v2449 = vpop.xlane.xlu0 %2448
        %2450 = vadd.xlane.f32.xlu0 %v2323
        %v2451 = vpop.xlane.xlu0 %2450
        %2452 = vadd.xlane.f32.xlu0 %v2325
        %v2453 = vpop.xlane.xlu0 %2452
        %2454 = vadd.xlane.f32.xlu0 %v2327
        %v2455 = vpop.xlane.xlu0 %2454
        %2456 = vadd.xlane.f32.xlu0 %v2329
        %v2457 = vpop.xlane.xlu0 %2456
        %2458 = vadd.xlane.f32.xlu0 %v2331
        %v2459 = vpop.xlane.xlu0 %2458
        %2460 = vadd.xlane.f32.xlu0 %v2333
        %v2461 = vpop.xlane.xlu0 %2460
        %2462 = vadd.xlane.f32.xlu0 %v2335
        %v2463 = vpop.xlane.xlu0 %2462
        %2464 = vadd.xlane.f32.xlu0 %v2337
        %v2465 = vpop.xlane.xlu0 %2464
        %2466 = vadd.xlane.f32.xlu0 %v2339
        %v2467 = vpop.xlane.xlu0 %2466
        %2468 = vadd.xlane.f32.xlu0 %v2341
        %v2469 = vpop.xlane.xlu0 %2468
        %2470 = vadd.xlane.f32.xlu0 %v2343
        %v2471 = vpop.xlane.xlu0 %2470
        %2472 = vadd.xlane.f32.xlu0 %v2345
        %v2473 = vpop.xlane.xlu0 %2472
        %2474 = vadd.xlane.f32.xlu0 %v2347
        %v2475 = vpop.xlane.xlu0 %2474
        %2476 = vadd.xlane.f32.xlu0 %v2349
        %v2477 = vpop.xlane.xlu0 %2476
        %2478 = vadd.xlane.f32.xlu0 %v2351
        %v2479 = vpop.xlane.xlu0 %2478
        %2480 = vadd.xlane.f32.xlu0 %v2353
        %v2481 = vpop.xlane.xlu0 %2480
        %2482 = vadd.xlane.f32.xlu0 %v2355
        %v2483 = vpop.xlane.xlu0 %2482
        %2484 = vadd.xlane.f32.xlu0 %v2357
        %v2485 = vpop.xlane.xlu0 %2484
        %2486 = vadd.xlane.f32.xlu0 %v2359
        %v2487 = vpop.xlane.xlu0 %2486
        %2488 = vadd.xlane.f32.xlu0 %v2361
        %v2489 = vpop.xlane.xlu0 %2488
        %2490 = vadd.xlane.f32.xlu0 %v2363
        %v2491 = vpop.xlane.xlu0 %2490
        %2492 = vadd.xlane.f32.xlu0 %v2365
        %v2493 = vpop.xlane.xlu0 %2492
        %2494 = vadd.xlane.f32.xlu0 %v2367
        %v2495 = vpop.xlane.xlu0 %2494
        %2496 = vadd.xlane.f32.xlu0 %v2369
        %v2497 = vpop.xlane.xlu0 %2496
        %2498 = vadd.xlane.f32.xlu0 %v2371
        %v2499 = vpop.xlane.xlu0 %2498
        %v2500 = vrcp.pop %v2373
        %v2501 = vrcp.pop %v2375
        %v2502 = vrcp.pop %v2377
        %v2503 = vrcp.pop %v2379
        %v2504 = vrcp.pop %v2381
        %v2505 = vrcp.pop %v2383
        %v2506 = vrcp.pop %v2385
        %v2507 = vrcp.pop %v2387
        %v2508 = vrcp.pop %v2389
        %v2509 = vrcp.pop %v2391
        %v2510 = vrcp.pop %v2393
        %v2511 = vrcp.pop %v2395
        %v2512 = vrcp.pop %v2397
        %v2513 = vrcp.pop %v2399
        %v2514 = vrcp.pop %v2401
        %v2515 = vrcp.pop %v2403
        %v2516 = vrcp.pop %v2405
        %v2517 = vrcp.pop %v2407
        %v2518 = vrcp.pop %v2409
        %v2519 = vrcp.pop %v2411
        %v2520 = vrcp.pop %v2413
        %v2521 = vrcp.pop %v2415
        %v2522 = vrcp.pop %v2417
        %v2523 = vrcp.pop %v2419
        %v2524 = vrcp.pop %v2421
        %v2525 = vrcp.pop %v2423
        %v2526 = vrcp.pop %v2425
        %v2527 = vrcp.pop %v2427
        %v2528 = vrcp.pop %v2429
        %v2529 = vrcp.pop %v2431
        %v2530 = vrcp.pop %v2433
        %v2531 = vrcp.pop %v2435
        %v2532 = vrcp.pop %v2437
        %v2533 = vrcp.pop %v2439
        %v2534 = vrcp.pop %v2441
        %v2535 = vrcp.pop %v2443
        %v2536 = vrcp.pop %v2445
        %v2537 = vrcp.pop %v2447
        %v2538 = vrcp.pop %v2449
        %v2539 = vrcp.pop %v2451
        %v2540 = vrcp.pop %v2453
        %v2541 = vrcp.pop %v2455
        %v2542 = vrcp.pop %v2457
        %v2543 = vrcp.pop %v2459
        %v2544 = vrcp.pop %v2461
        %v2545 = vrcp.pop %v2463
        %v2546 = vrcp.pop %v2465
        %v2547 = vrcp.pop %v2467
        %v2548 = vrcp.pop %v2469
        %v2549 = vrcp.pop %v2471
        %v2550 = vrcp.pop %v2473
        %v2551 = vrcp.pop %v2475
        %v2552 = vrcp.pop %v2477
        %v2553 = vrcp.pop %v2479
        %v2554 = vrcp.pop %v2481
        %v2555 = vrcp.pop %v2483
        %v2556 = vrcp.pop %v2485
        %v2557 = vrcp.pop %v2487
        %v2558 = vrcp.pop %v2489
        %v2559 = vrcp.pop %v2491
        %v2560 = vrcp.pop %v2493
        %v2561 = vrcp.pop %v2495
        %v2562 = vrcp.pop %v2497
        %v2563 = vrcp.pop %v2499
        %v2564 = vmul.f32 %v2245, %v2500
        %v2565 = vmul.f32 %v2247, %v2501
        %v2566 = vmul.f32 %v2249, %v2502
        %v2567 = vmul.f32 %v2251, %v2503
        %v2568 = vmul.f32 %v2253, %v2504
        %v2569 = vmul.f32 %v2255, %v2505
        %v2570 = vmul.f32 %v2257, %v2506
        %v2571 = vmul.f32 %v2259, %v2507
        %v2572 = vmul.f32 %v2261, %v2508
        %v2573 = vmul.f32 %v2263, %v2509
        %v2574 = vmul.f32 %v2265, %v2510
        %v2575 = vmul.f32 %v2267, %v2511
        %v2576 = vmul.f32 %v2269, %v2512
        %v2577 = vmul.f32 %v2271, %v2513
        %v2578 = vmul.f32 %v2273, %v2514
        %v2579 = vmul.f32 %v2275, %v2515
        %v2580 = vmul.f32 %v2277, %v2516
        %v2581 = vmul.f32 %v2279, %v2517
        %v2582 = vmul.f32 %v2281, %v2518
        %v2583 = vmul.f32 %v2283, %v2519
        %v2584 = vmul.f32 %v2285, %v2520
        %v2585 = vmul.f32 %v2287, %v2521
        %v2586 = vmul.f32 %v2289, %v2522
        %v2587 = vmul.f32 %v2291, %v2523
        %v2588 = vmul.f32 %v2293, %v2524
        %v2589 = vmul.f32 %v2295, %v2525
        %v2590 = vmul.f32 %v2297, %v2526
        %v2591 = vmul.f32 %v2299, %v2527
        %v2592 = vmul.f32 %v2301, %v2528
        %v2593 = vmul.f32 %v2303, %v2529
        %v2594 = vmul.f32 %v2305, %v2530
        %v2595 = vmul.f32 %v2307, %v2531
        %v2596 = vmul.f32 %v2309, %v2532
        %v2597 = vmul.f32 %v2311, %v2533
        %v2598 = vmul.f32 %v2313, %v2534
        %v2599 = vmul.f32 %v2315, %v2535
        %v2600 = vmul.f32 %v2317, %v2536
        %v2601 = vmul.f32 %v2319, %v2537
        %v2602 = vmul.f32 %v2321, %v2538
        %v2603 = vmul.f32 %v2323, %v2539
        %v2604 = vmul.f32 %v2325, %v2540
        %v2605 = vmul.f32 %v2327, %v2541
        %v2606 = vmul.f32 %v2329, %v2542
        %v2607 = vmul.f32 %v2331, %v2543
        %v2608 = vmul.f32 %v2333, %v2544
        %v2609 = vmul.f32 %v2335, %v2545
        %v2610 = vmul.f32 %v2337, %v2546
        %v2611 = vmul.f32 %v2339, %v2547
        %v2612 = vmul.f32 %v2341, %v2548
        %v2613 = vmul.f32 %v2343, %v2549
        %v2614 = vmul.f32 %v2345, %v2550
        %v2615 = vmul.f32 %v2347, %v2551
        %v2616 = vmul.f32 %v2349, %v2552
        %v2617 = vmul.f32 %v2351, %v2553
        %v2618 = vmul.f32 %v2353, %v2554
        %v2619 = vmul.f32 %v2355, %v2555
        %v2620 = vmul.f32 %v2357, %v2556
        %v2621 = vmul.f32 %v2359, %v2557
        %v2622 = vmul.f32 %v2361, %v2558
        %v2623 = vmul.f32 %v2363, %v2559
        %v2624 = vmul.f32 %v2365, %v2560
        %v2625 = vmul.f32 %v2367, %v2561
        %v2626 = vmul.f32 %v2369, %v2562
        %v2627 = vmul.f32 %v2371, %v2563
        %v2628 = vpack.c.bf16 %v2565, %v2564
        %v2629 = vpack.c.bf16 %v2567, %v2566
        %v2630 = vpack.c.bf16 %v2569, %v2568
        %v2631 = vpack.c.bf16 %v2571, %v2570
        %v2632 = vpack.c.bf16 %v2573, %v2572
        %v2633 = vpack.c.bf16 %v2575, %v2574
        %v2634 = vpack.c.bf16 %v2577, %v2576
        %v2635 = vpack.c.bf16 %v2579, %v2578
        %v2636 = vpack.c.bf16 %v2581, %v2580
        %v2637 = vpack.c.bf16 %v2583, %v2582
        %v2638 = vpack.c.bf16 %v2585, %v2584
        %v2639 = vpack.c.bf16 %v2587, %v2586
        %v2640 = vpack.c.bf16 %v2589, %v2588
        %v2641 = vpack.c.bf16 %v2591, %v2590
        %v2642 = vpack.c.bf16 %v2593, %v2592
        %v2643 = vpack.c.bf16 %v2595, %v2594
        %v2644 = vpack.c.bf16 %v2597, %v2596
        %v2645 = vpack.c.bf16 %v2599, %v2598
        %v2646 = vpack.c.bf16 %v2601, %v2600
        %v2647 = vpack.c.bf16 %v2603, %v2602
        %v2648 = vpack.c.bf16 %v2605, %v2604
        %v2649 = vpack.c.bf16 %v2607, %v2606
        %v2650 = vpack.c.bf16 %v2609, %v2608
        %v2651 = vpack.c.bf16 %v2611, %v2610
        %v2652 = vpack.c.bf16 %v2613, %v2612
        %v2653 = vpack.c.bf16 %v2615, %v2614
        %v2654 = vpack.c.bf16 %v2617, %v2616
        %v2655 = vpack.c.bf16 %v2619, %v2618
        %v2656 = vpack.c.bf16 %v2621, %v2620
        %v2657 = vpack.c.bf16 %v2623, %v2622
        %v2658 = vpack.c.bf16 %v2625, %v2624
        %v2659 = vpack.c.bf16 %v2627, %v2626
        %2660 = vmatprep.subr.bf16.mxu0 0
        %2661 = vmatpush1.bf16.msra.mxu0 %v1315
        %2662 = vmatprep.subr.bf16.mxu0 0
        %2663 = vmatpush1.bf16.msra.mxu0 %v1314
        %2664 = vmatprep.subr.bf16.mxu0 0
        %2665 = vmatpush1.bf16.msra.mxu0 %v1313
        %2666 = vmatprep.subr.bf16.mxu0 0
        %2667 = vmatpush1.bf16.msra.mxu0 %v1312
        %2668 = vmatprep.subr.bf16.mxu0 0
        %2669 = vmatpush1.bf16.msra.mxu0 %v1311
        %2670 = vmatprep.subr.bf16.mxu0 0
        %2671 = vmatpush1.bf16.msra.mxu0 %v1310
        %2672 = vmatprep.subr.bf16.mxu0 0
        %2673 = vmatpush1.bf16.msra.mxu0 %v1309
        %2674 = vmatprep.subr.bf16.mxu0 0
        %2675 = vmatpush1.bf16.msra.mxu0 %v1308
        %2676 = vmatprep.subr.bf16.mxu0 0
        %2677 = vmatpush2.bf16.msra.mxu0 0
        %2678 = vmatprep.subr.bf16.mxu0 0
        %2679 = vmatpush2.bf16.msra.mxu0 0
        %2680 = vmatprep.subr.bf16.mxu0 0
        %2681 = vmatpush2.bf16.msra.mxu0 0
        %2682 = vmatprep.subr.bf16.mxu0 0
        %2683 = vmatpush2.bf16.msra.mxu0 0
        %2684 = vmatprep.subr.bf16.mxu0 0
        %2685 = vmatpush2.bf16.msra.mxu0 0
        %2686 = vmatprep.subr.bf16.mxu0 0
        %2687 = vmatpush2.bf16.msra.mxu0 0
        %2688 = vmatprep.subr.bf16.mxu0 0
        %2689 = vmatpush2.bf16.msra.mxu0 0
        %2690 = vmatprep.subr.bf16.mxu0 0
        %2691 = vmatpush2.bf16.msra.mxu0 0
        %2692 = vmatprep.mubr.bf16.mxu0 0
        %2693 = vmatmul.mubr.bf16.gmra.mxu0 %v2628
        %v2694 = vpop.f32.mrf.mxu0
        %v2695 = vadd.f32 0.0, %v2694
        %v2696 = vpop.f32.mrf.mxu0
        %v2697 = vpop.f32.mrf.mxu0
        %v2698 = vadd.f32 0.0, %v2697
        %v2699 = vpop.f32.mrf.mxu0
        %2700 = vmatprep.mubr.bf16.mxu0 0
        %2701 = vmatmul.mubr.bf16.gmra.mxu0 %v2629
        %v2702 = vpop.f32.mrf.mxu0
        %v2703 = vadd.f32 0.0, %v2702
        %v2704 = vpop.f32.mrf.mxu0
        %v2705 = vpop.f32.mrf.mxu0
        %v2706 = vadd.f32 0.0, %v2705
        %v2707 = vpop.f32.mrf.mxu0
        %2708 = vmatprep.mubr.bf16.mxu0 0
        %2709 = vmatmul.mubr.bf16.gmra.mxu0 %v2630
        %v2710 = vpop.f32.mrf.mxu0
        %v2711 = vadd.f32 0.0, %v2710
        %v2712 = vpop.f32.mrf.mxu0
        %v2713 = vpop.f32.mrf.mxu0
        %v2714 = vadd.f32 0.0, %v2713
        %v2715 = vpop.f32.mrf.mxu0
        %2716 = vmatprep.mubr.bf16.mxu0 0
        %2717 = vmatmul.mubr.bf16.gmra.mxu0 %v2631
        %v2718 = vpop.f32.mrf.mxu0
        %v2719 = vadd.f32 0.0, %v2718
        %v2720 = vpop.f32.mrf.mxu0
        %v2721 = vpop.f32.mrf.mxu0
        %v2722 = vadd.f32 0.0, %v2721
        %v2723 = vpop.f32.mrf.mxu0
        %2724 = vmatprep.mubr.bf16.mxu0 0
        %2725 = vmatmul.mubr.bf16.gmra.mxu0 %v2632
        %v2726 = vpop.f32.mrf.mxu0
        %v2727 = vadd.f32 0.0, %v2726
        %v2728 = vpop.f32.mrf.mxu0
        %v2729 = vpop.f32.mrf.mxu0
        %v2730 = vadd.f32 0.0, %v2729
        %v2731 = vpop.f32.mrf.mxu0
        %2732 = vmatprep.mubr.bf16.mxu0 0
        %2733 = vmatmul.mubr.bf16.gmra.mxu0 %v2633
        %v2734 = vpop.f32.mrf.mxu0
        %v2735 = vadd.f32 0.0, %v2734
        %v2736 = vpop.f32.mrf.mxu0
        %v2737 = vpop.f32.mrf.mxu0
        %v2738 = vadd.f32 0.0, %v2737
        %v2739 = vpop.f32.mrf.mxu0
        %2740 = vmatprep.mubr.bf16.mxu0 0
        %2741 = vmatmul.mubr.bf16.gmra.mxu0 %v2634
        %v2742 = vpop.f32.mrf.mxu0
        %v2743 = vadd.f32 0.0, %v2742
        %v2744 = vpop.f32.mrf.mxu0
        %v2745 = vpop.f32.mrf.mxu0
        %v2746 = vadd.f32 0.0, %v2745
        %v2747 = vpop.f32.mrf.mxu0
        %2748 = vmatprep.mubr.bf16.mxu0 0
        %2749 = vmatmul.mubr.bf16.gmra.mxu0 %v2635
        %v2750 = vpop.f32.mrf.mxu0
        %v2751 = vadd.f32 0.0, %v2750
        %v2752 = vpop.f32.mrf.mxu0
        %v2753 = vpop.f32.mrf.mxu0
        %v2754 = vadd.f32 0.0, %v2753
        %v2755 = vpop.f32.mrf.mxu0
        %2756 = vdwg.mxu0
        %2757 = vmatprep.subr.bf16.mxu0 0
        %2758 = vmatpush1.bf16.msra.mxu0 %v1323
        %2759 = vmatprep.subr.bf16.mxu0 0
        %2760 = vmatpush1.bf16.msra.mxu0 %v1322
        %2761 = vmatprep.subr.bf16.mxu0 0
        %2762 = vmatpush1.bf16.msra.mxu0 %v1321
        %2763 = vmatprep.subr.bf16.mxu0 0
        %2764 = vmatpush1.bf16.msra.mxu0 %v1320
        %2765 = vmatprep.subr.bf16.mxu0 0
        %2766 = vmatpush1.bf16.msra.mxu0 %v1319
        %2767 = vmatprep.subr.bf16.mxu0 0
        %2768 = vmatpush1.bf16.msra.mxu0 %v1318
        %2769 = vmatprep.subr.bf16.mxu0 0
        %2770 = vmatpush1.bf16.msra.mxu0 %v1317
        %2771 = vmatprep.subr.bf16.mxu0 0
        %2772 = vmatpush1.bf16.msra.mxu0 %v1316
        %2773 = vmatprep.subr.bf16.mxu0 0
        %2774 = vmatpush2.bf16.msra.mxu0 0
        %2775 = vmatprep.subr.bf16.mxu0 0
        %2776 = vmatpush2.bf16.msra.mxu0 0
        %2777 = vmatprep.subr.bf16.mxu0 0
        %2778 = vmatpush2.bf16.msra.mxu0 0
        %2779 = vmatprep.subr.bf16.mxu0 0
        %2780 = vmatpush2.bf16.msra.mxu0 0
        %2781 = vmatprep.subr.bf16.mxu0 0
        %2782 = vmatpush2.bf16.msra.mxu0 0
        %2783 = vmatprep.subr.bf16.mxu0 0
        %2784 = vmatpush2.bf16.msra.mxu0 0
        %2785 = vmatprep.subr.bf16.mxu0 0
        %2786 = vmatpush2.bf16.msra.mxu0 0
        %2787 = vmatprep.subr.bf16.mxu0 0
        %2788 = vmatpush2.bf16.msra.mxu0 0
        %2789 = vmatprep.mubr.bf16.mxu0 0
        %2790 = vmatmul.mubr.bf16.gmra.mxu0 %v2636
        %v2791 = vpop.f32.mrf.mxu0
        %v2792 = vadd.f32 0.0, %v2791
        %v2793 = vpop.f32.mrf.mxu0
        %v2794 = vpop.f32.mrf.mxu0
        %v2795 = vadd.f32 0.0, %v2794
        %v2796 = vpop.f32.mrf.mxu0
        %2797 = vmatprep.mubr.bf16.mxu0 0
        %2798 = vmatmul.mubr.bf16.gmra.mxu0 %v2637
        %v2799 = vpop.f32.mrf.mxu0
        %v2800 = vadd.f32 0.0, %v2799
        %v2801 = vpop.f32.mrf.mxu0
        %v2802 = vpop.f32.mrf.mxu0
        %v2803 = vadd.f32 0.0, %v2802
        %v2804 = vpop.f32.mrf.mxu0
        %2805 = vmatprep.mubr.bf16.mxu0 0
        %2806 = vmatmul.mubr.bf16.gmra.mxu0 %v2638
        %v2807 = vpop.f32.mrf.mxu0
        %v2808 = vadd.f32 0.0, %v2807
        %v2809 = vpop.f32.mrf.mxu0
        %v2810 = vpop.f32.mrf.mxu0
        %v2811 = vadd.f32 0.0, %v2810
        %v2812 = vpop.f32.mrf.mxu0
        %2813 = vmatprep.mubr.bf16.mxu0 0
        %2814 = vmatmul.mubr.bf16.gmra.mxu0 %v2639
        %v2815 = vpop.f32.mrf.mxu0
        %v2816 = vadd.f32 0.0, %v2815
        %v2817 = vpop.f32.mrf.mxu0
        %v2818 = vpop.f32.mrf.mxu0
        %v2819 = vadd.f32 0.0, %v2818
        %v2820 = vpop.f32.mrf.mxu0
        %2821 = vmatprep.mubr.bf16.mxu0 0
        %2822 = vmatmul.mubr.bf16.gmra.mxu0 %v2640
        %v2823 = vpop.f32.mrf.mxu0
        %v2824 = vadd.f32 0.0, %v2823
        %v2825 = vpop.f32.mrf.mxu0
        %v2826 = vpop.f32.mrf.mxu0
        %v2827 = vadd.f32 0.0, %v2826
        %v2828 = vpop.f32.mrf.mxu0
        %2829 = vmatprep.mubr.bf16.mxu0 0
        %2830 = vmatmul.mubr.bf16.gmra.mxu0 %v2641
        %v2831 = vpop.f32.mrf.mxu0
        %v2832 = vadd.f32 0.0, %v2831
        %v2833 = vpop.f32.mrf.mxu0
        %v2834 = vpop.f32.mrf.mxu0
        %v2835 = vadd.f32 0.0, %v2834
        %v2836 = vpop.f32.mrf.mxu0
        %2837 = vmatprep.mubr.bf16.mxu0 0
        %2838 = vmatmul.mubr.bf16.gmra.mxu0 %v2642
        %v2839 = vpop.f32.mrf.mxu0
        %v2840 = vadd.f32 0.0, %v2839
        %v2841 = vpop.f32.mrf.mxu0
        %v2842 = vpop.f32.mrf.mxu0
        %v2843 = vadd.f32 0.0, %v2842
        %v2844 = vpop.f32.mrf.mxu0
        %2845 = vmatprep.mubr.bf16.mxu0 0
        %2846 = vmatmul.mubr.bf16.gmra.mxu0 %v2643
        %v2847 = vpop.f32.mrf.mxu0
        %v2848 = vadd.f32 0.0, %v2847
        %v2849 = vpop.f32.mrf.mxu0
        %v2850 = vpop.f32.mrf.mxu0
        %v2851 = vadd.f32 0.0, %v2850
        %v2852 = vpop.f32.mrf.mxu0
        %2853 = vdwg.mxu0
        %2854 = vmatprep.subr.bf16.mxu0 0
        %2855 = vmatpush1.bf16.msra.mxu0 %v1331
        %2856 = vmatprep.subr.bf16.mxu0 0
        %2857 = vmatpush1.bf16.msra.mxu0 %v1330
        %2858 = vmatprep.subr.bf16.mxu0 0
        %2859 = vmatpush1.bf16.msra.mxu0 %v1329
        %2860 = vmatprep.subr.bf16.mxu0 0
        %2861 = vmatpush1.bf16.msra.mxu0 %v1328
        %2862 = vmatprep.subr.bf16.mxu0 0
        %2863 = vmatpush1.bf16.msra.mxu0 %v1327
        %2864 = vmatprep.subr.bf16.mxu0 0
        %2865 = vmatpush1.bf16.msra.mxu0 %v1326
        %2866 = vmatprep.subr.bf16.mxu0 0
        %2867 = vmatpush1.bf16.msra.mxu0 %v1325
        %2868 = vmatprep.subr.bf16.mxu0 0
        %2869 = vmatpush1.bf16.msra.mxu0 %v1324
        %2870 = vmatprep.subr.bf16.mxu0 0
        %2871 = vmatpush2.bf16.msra.mxu0 0
        %2872 = vmatprep.subr.bf16.mxu0 0
        %2873 = vmatpush2.bf16.msra.mxu0 0
        %2874 = vmatprep.subr.bf16.mxu0 0
        %2875 = vmatpush2.bf16.msra.mxu0 0
        %2876 = vmatprep.subr.bf16.mxu0 0
        %2877 = vmatpush2.bf16.msra.mxu0 0
        %2878 = vmatprep.subr.bf16.mxu0 0
        %2879 = vmatpush2.bf16.msra.mxu0 0
        %2880 = vmatprep.subr.bf16.mxu0 0
        %2881 = vmatpush2.bf16.msra.mxu0 0
        %2882 = vmatprep.subr.bf16.mxu0 0
        %2883 = vmatpush2.bf16.msra.mxu0 0
        %2884 = vmatprep.subr.bf16.mxu0 0
        %2885 = vmatpush2.bf16.msra.mxu0 0
        %2886 = vmatprep.mubr.bf16.mxu0 0
        %2887 = vmatmul.mubr.bf16.gmra.mxu0 %v2644
        %v2888 = vpop.f32.mrf.mxu0
        %v2889 = vadd.f32 0.0, %v2888
        %v2890 = vpop.f32.mrf.mxu0
        %v2891 = vpop.f32.mrf.mxu0
        %v2892 = vadd.f32 0.0, %v2891
        %v2893 = vpop.f32.mrf.mxu0
        %2894 = vmatprep.mubr.bf16.mxu0 0
        %2895 = vmatmul.mubr.bf16.gmra.mxu0 %v2645
        %v2896 = vpop.f32.mrf.mxu0
        %v2897 = vadd.f32 0.0, %v2896
        %v2898 = vpop.f32.mrf.mxu0
        %v2899 = vpop.f32.mrf.mxu0
        %v2900 = vadd.f32 0.0, %v2899
        %v2901 = vpop.f32.mrf.mxu0
        %2902 = vmatprep.mubr.bf16.mxu0 0
        %2903 = vmatmul.mubr.bf16.gmra.mxu0 %v2646
        %v2904 = vpop.f32.mrf.mxu0
        %v2905 = vadd.f32 0.0, %v2904
        %v2906 = vpop.f32.mrf.mxu0
        %v2907 = vpop.f32.mrf.mxu0
        %v2908 = vadd.f32 0.0, %v2907
        %v2909 = vpop.f32.mrf.mxu0
        %2910 = vmatprep.mubr.bf16.mxu0 0
        %2911 = vmatmul.mubr.bf16.gmra.mxu0 %v2647
        %v2912 = vpop.f32.mrf.mxu0
        %v2913 = vadd.f32 0.0, %v2912
        %v2914 = vpop.f32.mrf.mxu0
        %v2915 = vpop.f32.mrf.mxu0
        %v2916 = vadd.f32 0.0, %v2915
        %v2917 = vpop.f32.mrf.mxu0
        %2918 = vmatprep.mubr.bf16.mxu0 0
        %2919 = vmatmul.mubr.bf16.gmra.mxu0 %v2648
        %v2920 = vpop.f32.mrf.mxu0
        %v2921 = vadd.f32 0.0, %v2920
        %v2922 = vpop.f32.mrf.mxu0
        %v2923 = vpop.f32.mrf.mxu0
        %v2924 = vadd.f32 0.0, %v2923
        %v2925 = vpop.f32.mrf.mxu0
        %2926 = vmatprep.mubr.bf16.mxu0 0
        %2927 = vmatmul.mubr.bf16.gmra.mxu0 %v2649
        %v2928 = vpop.f32.mrf.mxu0
        %v2929 = vadd.f32 0.0, %v2928
        %v2930 = vpop.f32.mrf.mxu0
        %v2931 = vpop.f32.mrf.mxu0
        %v2932 = vadd.f32 0.0, %v2931
        %v2933 = vpop.f32.mrf.mxu0
        %2934 = vmatprep.mubr.bf16.mxu0 0
        %2935 = vmatmul.mubr.bf16.gmra.mxu0 %v2650
        %v2936 = vpop.f32.mrf.mxu0
        %v2937 = vadd.f32 0.0, %v2936
        %v2938 = vpop.f32.mrf.mxu0
        %v2939 = vpop.f32.mrf.mxu0
        %v2940 = vadd.f32 0.0, %v2939
        %v2941 = vpop.f32.mrf.mxu0
        %2942 = vmatprep.mubr.bf16.mxu0 0
        %2943 = vmatmul.mubr.bf16.gmra.mxu0 %v2651
        %v2944 = vpop.f32.mrf.mxu0
        %v2945 = vadd.f32 0.0, %v2944
        %v2946 = vpop.f32.mrf.mxu0
        %v2947 = vpop.f32.mrf.mxu0
        %v2948 = vadd.f32 0.0, %v2947
        %v2949 = vpop.f32.mrf.mxu0
        %2950 = vdwg.mxu0
        %2951 = vmatprep.subr.bf16.mxu0 0
        %2952 = vmatpush1.bf16.msra.mxu0 %v1339
        %2953 = vmatprep.subr.bf16.mxu0 0
        %2954 = vmatpush1.bf16.msra.mxu0 %v1338
        %2955 = vmatprep.subr.bf16.mxu0 0
        %2956 = vmatpush1.bf16.msra.mxu0 %v1337
        %2957 = vmatprep.subr.bf16.mxu0 0
        %2958 = vmatpush1.bf16.msra.mxu0 %v1336
        %2959 = vmatprep.subr.bf16.mxu0 0
        %2960 = vmatpush1.bf16.msra.mxu0 %v1335
        %2961 = vmatprep.subr.bf16.mxu0 0
        %2962 = vmatpush1.bf16.msra.mxu0 %v1334
        %2963 = vmatprep.subr.bf16.mxu0 0
        %2964 = vmatpush1.bf16.msra.mxu0 %v1333
        %2965 = vmatprep.subr.bf16.mxu0 0
        %2966 = vmatpush1.bf16.msra.mxu0 %v1332
        %2967 = vmatprep.subr.bf16.mxu0 0
        %2968 = vmatpush2.bf16.msra.mxu0 0
        %2969 = vmatprep.subr.bf16.mxu0 0
        %2970 = vmatpush2.bf16.msra.mxu0 0
        %2971 = vmatprep.subr.bf16.mxu0 0
        %2972 = vmatpush2.bf16.msra.mxu0 0
        %2973 = vmatprep.subr.bf16.mxu0 0
        %2974 = vmatpush2.bf16.msra.mxu0 0
        %2975 = vmatprep.subr.bf16.mxu0 0
        %2976 = vmatpush2.bf16.msra.mxu0 0
        %2977 = vmatprep.subr.bf16.mxu0 0
        %2978 = vmatpush2.bf16.msra.mxu0 0
        %2979 = vmatprep.subr.bf16.mxu0 0
        %2980 = vmatpush2.bf16.msra.mxu0 0
        %2981 = vmatprep.subr.bf16.mxu0 0
        %2982 = vmatpush2.bf16.msra.mxu0 0
        %2983 = vmatprep.mubr.bf16.mxu0 0
        %2984 = vmatmul.mubr.bf16.gmra.mxu0 %v2652
        %v2985 = vpop.f32.mrf.mxu0
        %v2986 = vadd.f32 0.0, %v2985
        %v2987 = vpop.f32.mrf.mxu0
        %v2988 = vpop.f32.mrf.mxu0
        %v2989 = vadd.f32 0.0, %v2988
        %v2990 = vpop.f32.mrf.mxu0
        %2991 = vmatprep.mubr.bf16.mxu0 0
        %2992 = vmatmul.mubr.bf16.gmra.mxu0 %v2653
        %v2993 = vpop.f32.mrf.mxu0
        %v2994 = vadd.f32 0.0, %v2993
        %v2995 = vpop.f32.mrf.mxu0
        %v2996 = vpop.f32.mrf.mxu0
        %v2997 = vadd.f32 0.0, %v2996
        %v2998 = vpop.f32.mrf.mxu0
        %2999 = vmatprep.mubr.bf16.mxu0 0
        %3000 = vmatmul.mubr.bf16.gmra.mxu0 %v2654
        %v3001 = vpop.f32.mrf.mxu0
        %v3002 = vadd.f32 0.0, %v3001
        %v3003 = vpop.f32.mrf.mxu0
        %v3004 = vpop.f32.mrf.mxu0
        %v3005 = vadd.f32 0.0, %v3004
        %v3006 = vpop.f32.mrf.mxu0
        %3007 = vmatprep.mubr.bf16.mxu0 0
        %3008 = vmatmul.mubr.bf16.gmra.mxu0 %v2655
        %v3009 = vpop.f32.mrf.mxu0
        %v3010 = vadd.f32 0.0, %v3009
        %v3011 = vpop.f32.mrf.mxu0
        %v3012 = vpop.f32.mrf.mxu0
        %v3013 = vadd.f32 0.0, %v3012
        %v3014 = vpop.f32.mrf.mxu0
        %3015 = vmatprep.mubr.bf16.mxu0 0
        %3016 = vmatmul.mubr.bf16.gmra.mxu0 %v2656
        %v3017 = vpop.f32.mrf.mxu0
        %v3018 = vadd.f32 0.0, %v3017
        %v3019 = vpop.f32.mrf.mxu0
        %v3020 = vpop.f32.mrf.mxu0
        %v3021 = vadd.f32 0.0, %v3020
        %v3022 = vpop.f32.mrf.mxu0
        %3023 = vmatprep.mubr.bf16.mxu0 0
        %3024 = vmatmul.mubr.bf16.gmra.mxu0 %v2657
        %v3025 = vpop.f32.mrf.mxu0
        %v3026 = vadd.f32 0.0, %v3025
        %v3027 = vpop.f32.mrf.mxu0
        %v3028 = vpop.f32.mrf.mxu0
        %v3029 = vadd.f32 0.0, %v3028
        %v3030 = vpop.f32.mrf.mxu0
        %3031 = vmatprep.mubr.bf16.mxu0 0
        %3032 = vmatmul.mubr.bf16.gmra.mxu0 %v2658
        %v3033 = vpop.f32.mrf.mxu0
        %v3034 = vadd.f32 0.0, %v3033
        %v3035 = vpop.f32.mrf.mxu0
        %v3036 = vpop.f32.mrf.mxu0
        %v3037 = vadd.f32 0.0, %v3036
        %v3038 = vpop.f32.mrf.mxu0
        %3039 = vmatprep.mubr.bf16.mxu0 0
        %3040 = vmatmul.mubr.bf16.gmra.mxu0 %v2659
        %v3041 = vpop.f32.mrf.mxu0
        %v3042 = vadd.f32 0.0, %v3041
        %v3043 = vpop.f32.mrf.mxu0
        %v3044 = vpop.f32.mrf.mxu0
        %v3045 = vadd.f32 0.0, %v3044
        %v3046 = vpop.f32.mrf.mxu0
        %3047 = vdwg.mxu0
        %3064 = vrot.lane.b32.xlu0 %v2792, 32
        %v3065 = vpop.permute.xlu0 %3064
        %3066 = vrot.lane.b32.xlu0 %v2795, 32
        %v3067 = vpop.permute.xlu0 %3066
        %3068 = vrot.lane.b32.xlu0 %v2800, 32
        %v3069 = vpop.permute.xlu0 %3068
        %3070 = vrot.lane.b32.xlu0 %v2803, 32
        %v3071 = vpop.permute.xlu0 %3070
        %3072 = vrot.lane.b32.xlu0 %v2808, 32
        %v3073 = vpop.permute.xlu0 %3072
        %3074 = vrot.lane.b32.xlu0 %v2811, 32
        %v3075 = vpop.permute.xlu0 %3074
        %3076 = vrot.lane.b32.xlu0 %v2816, 32
        %v3077 = vpop.permute.xlu0 %3076
        %3078 = vrot.lane.b32.xlu0 %v2819, 32
        %v3079 = vpop.permute.xlu0 %3078
        %3080 = vrot.lane.b32.xlu0 %v2824, 32
        %v3081 = vpop.permute.xlu0 %3080
        %3082 = vrot.lane.b32.xlu0 %v2827, 32
        %v3083 = vpop.permute.xlu0 %3082
        %3084 = vrot.lane.b32.xlu0 %v2832, 32
        %v3085 = vpop.permute.xlu0 %3084
        %3086 = vrot.lane.b32.xlu0 %v2835, 32
        %v3087 = vpop.permute.xlu0 %3086
        %3088 = vrot.lane.b32.xlu0 %v2840, 32
        %v3089 = vpop.permute.xlu0 %3088
        %3090 = vrot.lane.b32.xlu0 %v2843, 32
        %v3091 = vpop.permute.xlu0 %3090
        %3092 = vrot.lane.b32.xlu0 %v2848, 32
        %v3093 = vpop.permute.xlu0 %3092
        %3094 = vrot.lane.b32.xlu0 %v2851, 32
        %v3095 = vpop.permute.xlu0 %3094
        %3128 = vrot.lane.b32.xlu0 %v2889, 64
        %v3129 = vpop.permute.xlu0 %3128
        %3130 = vrot.lane.b32.xlu0 %v2892, 64
        %v3131 = vpop.permute.xlu0 %3130
        %3132 = vrot.lane.b32.xlu0 %v2897, 64
        %v3133 = vpop.permute.xlu0 %3132
        %3134 = vrot.lane.b32.xlu0 %v2900, 64
        %v3135 = vpop.permute.xlu0 %3134
        %3136 = vrot.lane.b32.xlu0 %v2905, 64
        %v3137 = vpop.permute.xlu0 %3136
        %3138 = vrot.lane.b32.xlu0 %v2908, 64
        %v3139 = vpop.permute.xlu0 %3138
        %3140 = vrot.lane.b32.xlu0 %v2913, 64
        %v3141 = vpop.permute.xlu0 %3140
        %3142 = vrot.lane.b32.xlu0 %v2916, 64
        %v3143 = vpop.permute.xlu0 %3142
        %3144 = vrot.lane.b32.xlu0 %v2921, 64
        %v3145 = vpop.permute.xlu0 %3144
        %3146 = vrot.lane.b32.xlu0 %v2924, 64
        %v3147 = vpop.permute.xlu0 %3146
        %3148 = vrot.lane.b32.xlu0 %v2929, 64
        %v3149 = vpop.permute.xlu0 %3148
        %3150 = vrot.lane.b32.xlu0 %v2932, 64
        %v3151 = vpop.permute.xlu0 %3150
        %3152 = vrot.lane.b32.xlu0 %v2937, 64
        %v3153 = vpop.permute.xlu0 %3152
        %3154 = vrot.lane.b32.xlu0 %v2940, 64
        %v3155 = vpop.permute.xlu0 %3154
        %3156 = vrot.lane.b32.xlu0 %v2945, 64
        %v3157 = vpop.permute.xlu0 %3156
        %3158 = vrot.lane.b32.xlu0 %v2948, 64
        %v3159 = vpop.permute.xlu0 %3158
        %3192 = vrot.lane.b32.xlu0 %v2986, 96
        %v3193 = vpop.permute.xlu0 %3192
        %3194 = vrot.lane.b32.xlu0 %v2989, 96
        %v3195 = vpop.permute.xlu0 %3194
        %3196 = vrot.lane.b32.xlu0 %v2994, 96
        %v3197 = vpop.permute.xlu0 %3196
        %3198 = vrot.lane.b32.xlu0 %v2997, 96
        %v3199 = vpop.permute.xlu0 %3198
        %3200 = vrot.lane.b32.xlu0 %v3002, 96
        %v3201 = vpop.permute.xlu0 %3200
        %3202 = vrot.lane.b32.xlu0 %v3005, 96
        %v3203 = vpop.permute.xlu0 %3202
        %3204 = vrot.lane.b32.xlu0 %v3010, 96
        %v3205 = vpop.permute.xlu0 %3204
        %3206 = vrot.lane.b32.xlu0 %v3013, 96
        %v3207 = vpop.permute.xlu0 %3206
        %3208 = vrot.lane.b32.xlu0 %v3018, 96
        %v3209 = vpop.permute.xlu0 %3208
        %3210 = vrot.lane.b32.xlu0 %v3021, 96
        %v3211 = vpop.permute.xlu0 %3210
        %3212 = vrot.lane.b32.xlu0 %v3026, 96
        %v3213 = vpop.permute.xlu0 %3212
        %3214 = vrot.lane.b32.xlu0 %v3029, 96
        %v3215 = vpop.permute.xlu0 %3214
        %3216 = vrot.lane.b32.xlu0 %v3034, 96
        %v3217 = vpop.permute.xlu0 %3216
        %3218 = vrot.lane.b32.xlu0 %v3037, 96
        %v3219 = vpop.permute.xlu0 %3218
        %3220 = vrot.lane.b32.xlu0 %v3042, 96
        %v3221 = vpop.permute.xlu0 %3220
        %3222 = vrot.lane.b32.xlu0 %v3045, 96
        %v3223 = vpop.permute.xlu0 %3222
        %v3240 = vsel %vm1340, %v2695, %v3065
        %v3241 = vsel %vm1340, %v2698, %v3067
        %v3242 = vsel %vm1340, %v2703, %v3069
        %v3243 = vsel %vm1340, %v2706, %v3071
        %v3244 = vsel %vm1340, %v2711, %v3073
        %v3245 = vsel %vm1340, %v2714, %v3075
        %v3246 = vsel %vm1340, %v2719, %v3077
        %v3247 = vsel %vm1340, %v2722, %v3079
        %v3248 = vsel %vm1340, %v2727, %v3081
        %v3249 = vsel %vm1340, %v2730, %v3083
        %v3250 = vsel %vm1340, %v2735, %v3085
        %v3251 = vsel %vm1340, %v2738, %v3087
        %v3252 = vsel %vm1340, %v2743, %v3089
        %v3253 = vsel %vm1340, %v2746, %v3091
        %v3254 = vsel %vm1340, %v2751, %v3093
        %v3255 = vsel %vm1340, %v2754, %v3095
        %vm3256 = vcmask 523264
        %v3257 = vsel %vm3256, %v3240, %v3129
        %v3258 = vsel %vm3256, %v3241, %v3131
        %v3259 = vsel %vm3256, %v3242, %v3133
        %v3260 = vsel %vm3256, %v3243, %v3135
        %v3261 = vsel %vm3256, %v3244, %v3137
        %v3262 = vsel %vm3256, %v3245, %v3139
        %v3263 = vsel %vm3256, %v3246, %v3141
        %v3264 = vsel %vm3256, %v3247, %v3143
        %v3265 = vsel %vm3256, %v3248, %v3145
        %v3266 = vsel %vm3256, %v3249, %v3147
        %v3267 = vsel %vm3256, %v3250, %v3149
        %v3268 = vsel %vm3256, %v3251, %v3151
        %v3269 = vsel %vm3256, %v3252, %v3153
        %v3270 = vsel %vm3256, %v3253, %v3155
        %v3271 = vsel %vm3256, %v3254, %v3157
        %v3272 = vsel %vm3256, %v3255, %v3159
        %vm3273 = vcmask 785408
        %v3274 = vsel %vm3273, %v3257, %v3193
        %v3275 = vsel %vm3273, %v3258, %v3195
        %v3276 = vsel %vm3273, %v3259, %v3197
        %v3277 = vsel %vm3273, %v3260, %v3199
        %v3278 = vsel %vm3273, %v3261, %v3201
        %v3279 = vsel %vm3273, %v3262, %v3203
        %v3280 = vsel %vm3273, %v3263, %v3205
        %v3281 = vsel %vm3273, %v3264, %v3207
        %v3282 = vsel %vm3273, %v3265, %v3209
        %v3283 = vsel %vm3273, %v3266, %v3211
        %v3284 = vsel %vm3273, %v3267, %v3213
        %v3285 = vsel %vm3273, %v3268, %v3215
        %v3286 = vsel %vm3273, %v3269, %v3217
        %v3287 = vsel %vm3273, %v3270, %v3219
        %v3288 = vsel %vm3273, %v3271, %v3221
        %v3289 = vsel %vm3273, %v3272, %v3223
        %v3290 = vpack.c.bf16 %v3275, %v3274
        %v3291 = vpack.c.bf16 %v3277, %v3276
        %v3292 = vpack.c.bf16 %v3279, %v3278
        %v3293 = vpack.c.bf16 %v3281, %v3280
        %v3294 = vpack.c.bf16 %v3283, %v3282
        %v3295 = vpack.c.bf16 %v3285, %v3284
        %v3296 = vpack.c.bf16 %v3287, %v3286
        %v3297 = vpack.c.bf16 %v3289, %v3288
        %v3298 = vld [vmem:[%s302] sm:$0xf]
        %v3299 = vld [vmem:[%s302 + $0x4] sm:$0xf]
        %v3300 = vld [vmem:[%s302 + $0x8] sm:$0xf]
        %v3301 = vld [vmem:[%s302 + $0xc] sm:$0xf]
        %v3302 = vld [vmem:[%s302 + $0x10] sm:$0xf]
        %v3303 = vld [vmem:[%s302 + $0x14] sm:$0xf]
        %v3304 = vld [vmem:[%s302 + $0x18] sm:$0xf]
        %v3305 = vld [vmem:[%s302 + $0x1c] sm:$0xf]
        %v3306 = vld [vmem:[%s302 + $0x20] sm:$0xf]
        %v3307 = vld [vmem:[%s302 + $0x24] sm:$0xf]
        %v3308 = vld [vmem:[%s302 + $0x28] sm:$0xf]
        %v3309 = vld [vmem:[%s302 + $0x2c] sm:$0xf]
        %v3310 = vld [vmem:[%s302 + $0x30] sm:$0xf]
        %v3311 = vld [vmem:[%s302 + $0x34] sm:$0xf]
        %v3312 = vld [vmem:[%s302 + $0x38] sm:$0xf]
        %v3313 = vld [vmem:[%s302 + $0x3c] sm:$0xf]
        %v3314 = vlaneseq
        %v3315 = vshrl.u32 %v3314, 7
        %v3316 = vsub.s32 1, %v3315
        %v3317 = vrot.slane %v371, %v3316
        %v3334 = vunpack.c.l.b16 %v3298
        %v3335 = vunpack.c.l.b16 %v3299
        %v3336 = vunpack.c.l.b16 %v3300
        %v3337 = vunpack.c.l.b16 %v3301
        %v3338 = vunpack.c.l.b16 %v3302
        %v3339 = vunpack.c.l.b16 %v3303
        %v3340 = vunpack.c.l.b16 %v3304
        %v3341 = vunpack.c.l.b16 %v3305
        %v3342 = vunpack.c.l.b16 %v3306
        %v3343 = vunpack.c.l.b16 %v3307
        %v3344 = vunpack.c.l.b16 %v3308
        %v3345 = vunpack.c.l.b16 %v3309
        %v3346 = vunpack.c.l.b16 %v3310
        %v3347 = vunpack.c.l.b16 %v3311
        %v3348 = vunpack.c.l.b16 %v3312
        %v3349 = vunpack.c.l.b16 %v3313
        %v3350 = vpack.c.b16 %v3335, %v3334
        %v3351 = vpack.c.b16 %v3337, %v3336
        %v3352 = vpack.c.b16 %v3339, %v3338
        %v3353 = vpack.c.b16 %v3341, %v3340
        %v3354 = vpack.c.b16 %v3343, %v3342
        %v3355 = vpack.c.b16 %v3345, %v3344
        %v3356 = vpack.c.b16 %v3347, %v3346
        %v3357 = vpack.c.b16 %v3349, %v3348
        %3366 = vmatprep.subr.bf16.mxu0 0
        %3367 = vmatpush1.bf16.msra.mxu0 %v3357
        %3368 = vmatprep.subr.bf16.mxu0 0
        %3369 = vmatpush1.bf16.msra.mxu0 %v3356
        %3370 = vmatprep.subr.bf16.mxu0 0
        %3371 = vmatpush1.bf16.msra.mxu0 %v3355
        %3372 = vmatprep.subr.bf16.mxu0 0
        %3373 = vmatpush1.bf16.msra.mxu0 %v3354
        %3374 = vmatprep.subr.bf16.mxu0 0
        %3375 = vmatpush1.bf16.msra.mxu0 %v3353
        %3376 = vmatprep.subr.bf16.mxu0 0
        %3377 = vmatpush1.bf16.msra.mxu0 %v3352
        %3378 = vmatprep.subr.bf16.mxu0 0
        %3379 = vmatpush1.bf16.msra.mxu0 %v3351
        %3380 = vmatprep.subr.bf16.mxu0 0
        %3381 = vmatpush1.bf16.msra.mxu0 %v3350
        %3382 = vmatprep.subr.bf16.mxu0 0
        %3383 = vmatpush2.bf16.msra.mxu0 0
        %3384 = vmatprep.subr.bf16.mxu0 0
        %3385 = vmatpush2.bf16.msra.mxu0 0
        %3386 = vmatprep.subr.bf16.mxu0 0
        %3387 = vmatpush2.bf16.msra.mxu0 0
        %3388 = vmatprep.subr.bf16.mxu0 0
        %3389 = vmatpush2.bf16.msra.mxu0 0
        %3390 = vmatprep.subr.bf16.mxu0 0
        %3391 = vmatpush2.bf16.msra.mxu0 0
        %3392 = vmatprep.subr.bf16.mxu0 0
        %3393 = vmatpush2.bf16.msra.mxu0 0
        %3394 = vmatprep.subr.bf16.mxu0 0
        %3395 = vmatpush2.bf16.msra.mxu0 0
        %3396 = vmatprep.subr.bf16.mxu0 0
        %3397 = vmatpush2.bf16.msra.mxu0 0
        %3398 = vmatprep.mubr.bf16.mxu0 0
        %3399 = vmatmul.mubr.bf16.gmra.mxu0 %v3290
        %v3400 = vpop.f32.mrf.mxu0
        %v3401 = vadd.f32 %v3317, %v3400
        %v3402 = vpop.f32.mrf.mxu0
        %v3403 = vpop.f32.mrf.mxu0
        %v3404 = vadd.f32 %v3317, %v3403
        %v3405 = vpop.f32.mrf.mxu0
        %3406 = vmatprep.mubr.bf16.mxu0 0
        %3407 = vmatmul.mubr.bf16.gmra.mxu0 %v3291
        %v3408 = vpop.f32.mrf.mxu0
        %v3409 = vadd.f32 %v3317, %v3408
        %v3410 = vpop.f32.mrf.mxu0
        %v3411 = vpop.f32.mrf.mxu0
        %v3412 = vadd.f32 %v3317, %v3411
        %v3413 = vpop.f32.mrf.mxu0
        %3414 = vmatprep.mubr.bf16.mxu0 0
        %3415 = vmatmul.mubr.bf16.gmra.mxu0 %v3292
        %v3416 = vpop.f32.mrf.mxu0
        %v3417 = vadd.f32 %v3317, %v3416
        %v3418 = vpop.f32.mrf.mxu0
        %v3419 = vpop.f32.mrf.mxu0
        %v3420 = vadd.f32 %v3317, %v3419
        %v3421 = vpop.f32.mrf.mxu0
        %3422 = vmatprep.mubr.bf16.mxu0 0
        %3423 = vmatmul.mubr.bf16.gmra.mxu0 %v3293
        %v3424 = vpop.f32.mrf.mxu0
        %v3425 = vadd.f32 %v3317, %v3424
        %v3426 = vpop.f32.mrf.mxu0
        %v3427 = vpop.f32.mrf.mxu0
        %v3428 = vadd.f32 %v3317, %v3427
        %v3429 = vpop.f32.mrf.mxu0
        %3430 = vmatprep.mubr.bf16.mxu0 0
        %3431 = vmatmul.mubr.bf16.gmra.mxu0 %v3294
        %v3432 = vpop.f32.mrf.mxu0
        %v3433 = vadd.f32 %v3317, %v3432
        %v3434 = vpop.f32.mrf.mxu0
        %v3435 = vpop.f32.mrf.mxu0
        %v3436 = vadd.f32 %v3317, %v3435
        %v3437 = vpop.f32.mrf.mxu0
        %3438 = vmatprep.mubr.bf16.mxu0 0
        %3439 = vmatmul.mubr.bf16.gmra.mxu0 %v3295
        %v3440 = vpop.f32.mrf.mxu0
        %v3441 = vadd.f32 %v3317, %v3440
        %v3442 = vpop.f32.mrf.mxu0
        %v3443 = vpop.f32.mrf.mxu0
        %v3444 = vadd.f32 %v3317, %v3443
        %v3445 = vpop.f32.mrf.mxu0
        %3446 = vmatprep.mubr.bf16.mxu0 0
        %3447 = vmatmul.mubr.bf16.gmra.mxu0 %v3296
        %v3448 = vpop.f32.mrf.mxu0
        %v3449 = vadd.f32 %v3317, %v3448
        %v3450 = vpop.f32.mrf.mxu0
        %v3451 = vpop.f32.mrf.mxu0
        %v3452 = vadd.f32 %v3317, %v3451
        %v3453 = vpop.f32.mrf.mxu0
        %3454 = vmatprep.mubr.bf16.mxu0 0
        %3455 = vmatmul.mubr.bf16.gmra.mxu0 %v3297
        %v3456 = vpop.f32.mrf.mxu0
        %v3457 = vadd.f32 %v3317, %v3456
        %v3458 = vpop.f32.mrf.mxu0
        %v3459 = vpop.f32.mrf.mxu0
        %v3460 = vadd.f32 %v3317, %v3459
        %v3461 = vpop.f32.mrf.mxu0
        %3462 = vdwg.mxu0
        %v3463 = vadd.f32 %v355, %v3401
        %v3464 = vadd.f32 %v356, %v3404
        %v3465 = vadd.f32 %v357, %v3409
        %v3466 = vadd.f32 %v358, %v3412
        %v3467 = vadd.f32 %v359, %v3417
        %v3468 = vadd.f32 %v360, %v3420
        %v3469 = vadd.f32 %v361, %v3425
        %v3470 = vadd.f32 %v362, %v3428
        %v3471 = vadd.f32 %v363, %v3433
        %v3472 = vadd.f32 %v364, %v3436
        %v3473 = vadd.f32 %v365, %v3441
        %v3474 = vadd.f32 %v366, %v3444
        %v3475 = vadd.f32 %v367, %v3449
        %v3476 = vadd.f32 %v368, %v3452
        %v3477 = vadd.f32 %v369, %v3457
        %v3478 = vadd.f32 %v370, %v3460
        %3479 = vadd.xlane.f32.xlu0 %v3463
        %v3480 = vpop.xlane.xlu0 %3479
        %3481 = vadd.xlane.f32.xlu0 %v3464
        %v3482 = vpop.xlane.xlu0 %3481
        %3483 = vadd.xlane.f32.xlu0 %v3465
        %v3484 = vpop.xlane.xlu0 %3483
        %3485 = vadd.xlane.f32.xlu0 %v3466
        %v3486 = vpop.xlane.xlu0 %3485
        %3487 = vadd.xlane.f32.xlu0 %v3467
        %v3488 = vpop.xlane.xlu0 %3487
        %3489 = vadd.xlane.f32.xlu0 %v3468
        %v3490 = vpop.xlane.xlu0 %3489
        %3491 = vadd.xlane.f32.xlu0 %v3469
        %v3492 = vpop.xlane.xlu0 %3491
        %3493 = vadd.xlane.f32.xlu0 %v3470
        %v3494 = vpop.xlane.xlu0 %3493
        %3495 = vadd.xlane.f32.xlu0 %v3471
        %v3496 = vpop.xlane.xlu0 %3495
        %3497 = vadd.xlane.f32.xlu0 %v3472
        %v3498 = vpop.xlane.xlu0 %3497
        %3499 = vadd.xlane.f32.xlu0 %v3473
        %v3500 = vpop.xlane.xlu0 %3499
        %3501 = vadd.xlane.f32.xlu0 %v3474
        %v3502 = vpop.xlane.xlu0 %3501
        %3503 = vadd.xlane.f32.xlu0 %v3475
        %v3504 = vpop.xlane.xlu0 %3503
        %3505 = vadd.xlane.f32.xlu0 %v3476
        %v3506 = vpop.xlane.xlu0 %3505
        %3507 = vadd.xlane.f32.xlu0 %v3477
        %v3508 = vpop.xlane.xlu0 %3507
        %3509 = vadd.xlane.f32.xlu0 %v3478
        %v3510 = vpop.xlane.xlu0 %3509
        %v3511 = vrcp.pop 128.0
        %v3512 = vmul.f32 %v3480, %v3511
        %v3513 = vmul.f32 %v3482, %v3511
        %v3514 = vmul.f32 %v3484, %v3511
        %v3515 = vmul.f32 %v3486, %v3511
        %v3516 = vmul.f32 %v3488, %v3511
        %v3517 = vmul.f32 %v3490, %v3511
        %v3518 = vmul.f32 %v3492, %v3511
        %v3519 = vmul.f32 %v3494, %v3511
        %v3520 = vmul.f32 %v3496, %v3511
        %v3521 = vmul.f32 %v3498, %v3511
        %v3522 = vmul.f32 %v3500, %v3511
        %v3523 = vmul.f32 %v3502, %v3511
        %v3524 = vmul.f32 %v3504, %v3511
        %v3525 = vmul.f32 %v3506, %v3511
        %v3526 = vmul.f32 %v3508, %v3511
        %v3527 = vmul.f32 %v3510, %v3511
        %v3528 = vsub.f32 %v3463, %v3512
        %v3529 = vsub.f32 %v3464, %v3513
        %v3530 = vsub.f32 %v3465, %v3514
        %v3531 = vsub.f32 %v3466, %v3515
        %v3532 = vsub.f32 %v3467, %v3516
        %v3533 = vsub.f32 %v3468, %v3517
        %v3534 = vsub.f32 %v3469, %v3518
        %v3535 = vsub.f32 %v3470, %v3519
        %v3536 = vsub.f32 %v3471, %v3520
        %v3537 = vsub.f32 %v3472, %v3521
        %v3538 = vsub.f32 %v3473, %v3522
        %v3539 = vsub.f32 %v3474, %v3523
        %v3540 = vsub.f32 %v3475, %v3524
        %v3541 = vsub.f32 %v3476, %v3525
        %v3542 = vsub.f32 %v3477, %v3526
        %v3543 = vsub.f32 %v3478, %v3527
        %v3544 = vmul.f32 %v3528, %v3528
        %v3545 = vmul.f32 %v3529, %v3529
        %v3546 = vmul.f32 %v3530, %v3530
        %v3547 = vmul.f32 %v3531, %v3531
        %v3548 = vmul.f32 %v3532, %v3532
        %v3549 = vmul.f32 %v3533, %v3533
        %v3550 = vmul.f32 %v3534, %v3534
        %v3551 = vmul.f32 %v3535, %v3535
        %v3552 = vmul.f32 %v3536, %v3536
        %v3553 = vmul.f32 %v3537, %v3537
        %v3554 = vmul.f32 %v3538, %v3538
        %v3555 = vmul.f32 %v3539, %v3539
        %v3556 = vmul.f32 %v3540, %v3540
        %v3557 = vmul.f32 %v3541, %v3541
        %v3558 = vmul.f32 %v3542, %v3542
        %v3559 = vmul.f32 %v3543, %v3543
        %3560 = vadd.xlane.f32.xlu0 %v3544
        %v3561 = vpop.xlane.xlu0 %3560
        %3562 = vadd.xlane.f32.xlu0 %v3545
        %v3563 = vpop.xlane.xlu0 %3562
        %3564 = vadd.xlane.f32.xlu0 %v3546
        %v3565 = vpop.xlane.xlu0 %3564
        %3566 = vadd.xlane.f32.xlu0 %v3547
        %v3567 = vpop.xlane.xlu0 %3566
        %3568 = vadd.xlane.f32.xlu0 %v3548
        %v3569 = vpop.xlane.xlu0 %3568
        %3570 = vadd.xlane.f32.xlu0 %v3549
        %v3571 = vpop.xlane.xlu0 %3570
        %3572 = vadd.xlane.f32.xlu0 %v3550
        %v3573 = vpop.xlane.xlu0 %3572
        %3574 = vadd.xlane.f32.xlu0 %v3551
        %v3575 = vpop.xlane.xlu0 %3574
        %3576 = vadd.xlane.f32.xlu0 %v3552
        %v3577 = vpop.xlane.xlu0 %3576
        %3578 = vadd.xlane.f32.xlu0 %v3553
        %v3579 = vpop.xlane.xlu0 %3578
        %3580 = vadd.xlane.f32.xlu0 %v3554
        %v3581 = vpop.xlane.xlu0 %3580
        %3582 = vadd.xlane.f32.xlu0 %v3555
        %v3583 = vpop.xlane.xlu0 %3582
        %3584 = vadd.xlane.f32.xlu0 %v3556
        %v3585 = vpop.xlane.xlu0 %3584
        %3586 = vadd.xlane.f32.xlu0 %v3557
        %v3587 = vpop.xlane.xlu0 %3586
        %3588 = vadd.xlane.f32.xlu0 %v3558
        %v3589 = vpop.xlane.xlu0 %3588
        %3590 = vadd.xlane.f32.xlu0 %v3559
        %v3591 = vpop.xlane.xlu0 %3590
        %v3592 = vmul.f32 %v3561, %v3511
        %v3593 = vmul.f32 %v3563, %v3511
        %v3594 = vmul.f32 %v3565, %v3511
        %v3595 = vmul.f32 %v3567, %v3511
        %v3596 = vmul.f32 %v3569, %v3511
        %v3597 = vmul.f32 %v3571, %v3511
        %v3598 = vmul.f32 %v3573, %v3511
        %v3599 = vmul.f32 %v3575, %v3511
        %v3600 = vmul.f32 %v3577, %v3511
        %v3601 = vmul.f32 %v3579, %v3511
        %v3602 = vmul.f32 %v3581, %v3511
        %v3603 = vmul.f32 %v3583, %v3511
        %v3604 = vmul.f32 %v3585, %v3511
        %v3605 = vmul.f32 %v3587, %v3511
        %v3606 = vmul.f32 %v3589, %v3511
        %v3607 = vmul.f32 %v3591, %v3511
        %v3608 = vadd.f32 %v3592, 1e-05
        %v3609 = vadd.f32 %v3593, 1e-05
        %v3610 = vadd.f32 %v3594, 1e-05
        %v3611 = vadd.f32 %v3595, 1e-05
        %v3612 = vadd.f32 %v3596, 1e-05
        %v3613 = vadd.f32 %v3597, 1e-05
        %v3614 = vadd.f32 %v3598, 1e-05
        %v3615 = vadd.f32 %v3599, 1e-05
        %v3616 = vadd.f32 %v3600, 1e-05
        %v3617 = vadd.f32 %v3601, 1e-05
        %v3618 = vadd.f32 %v3602, 1e-05
        %v3619 = vadd.f32 %v3603, 1e-05
        %v3620 = vadd.f32 %v3604, 1e-05
        %v3621 = vadd.f32 %v3605, 1e-05
        %v3622 = vadd.f32 %v3606, 1e-05
        %v3623 = vadd.f32 %v3607, 1e-05
        %v3624 = vrsqrt.pop %v3608
        %v3625 = vrsqrt.pop %v3609
        %v3626 = vrsqrt.pop %v3610
        %v3627 = vrsqrt.pop %v3611
        %v3628 = vrsqrt.pop %v3612
        %v3629 = vrsqrt.pop %v3613
        %v3630 = vrsqrt.pop %v3614
        %v3631 = vrsqrt.pop %v3615
        %v3632 = vrsqrt.pop %v3616
        %v3633 = vrsqrt.pop %v3617
        %v3634 = vrsqrt.pop %v3618
        %v3635 = vrsqrt.pop %v3619
        %v3636 = vrsqrt.pop %v3620
        %v3637 = vrsqrt.pop %v3621
        %v3638 = vrsqrt.pop %v3622
        %v3639 = vrsqrt.pop %v3623
        %v3640 = vmul.f32 %v3528, %v3624
        %v3641 = vmul.f32 %v3529, %v3625
        %v3642 = vmul.f32 %v3530, %v3626
        %v3643 = vmul.f32 %v3531, %v3627
        %v3644 = vmul.f32 %v3532, %v3628
        %v3645 = vmul.f32 %v3533, %v3629
        %v3646 = vmul.f32 %v3534, %v3630
        %v3647 = vmul.f32 %v3535, %v3631
        %v3648 = vmul.f32 %v3536, %v3632
        %v3649 = vmul.f32 %v3537, %v3633
        %v3650 = vmul.f32 %v3538, %v3634
        %v3651 = vmul.f32 %v3539, %v3635
        %v3652 = vmul.f32 %v3540, %v3636
        %v3653 = vmul.f32 %v3541, %v3637
        %v3654 = vmul.f32 %v3542, %v3638
        %v3655 = vmul.f32 %v3543, %v3639
        %v3656 = vlaneseq
        %v3657 = vshrl.u32 %v3656, 7
        %v3658 = vsub.s32 4, %v3657
        %v3659 = vrot.slane %v371, %v3658
        %v3660 = vmul.f32 %v3640, %v3659
        %v3661 = vmul.f32 %v3641, %v3659
        %v3662 = vmul.f32 %v3642, %v3659
        %v3663 = vmul.f32 %v3643, %v3659
        %v3664 = vmul.f32 %v3644, %v3659
        %v3665 = vmul.f32 %v3645, %v3659
        %v3666 = vmul.f32 %v3646, %v3659
        %v3667 = vmul.f32 %v3647, %v3659
        %v3668 = vmul.f32 %v3648, %v3659
        %v3669 = vmul.f32 %v3649, %v3659
        %v3670 = vmul.f32 %v3650, %v3659
        %v3671 = vmul.f32 %v3651, %v3659
        %v3672 = vmul.f32 %v3652, %v3659
        %v3673 = vmul.f32 %v3653, %v3659
        %v3674 = vmul.f32 %v3654, %v3659
        %v3675 = vmul.f32 %v3655, %v3659
        %v3676 = vlaneseq
        %v3677 = vshrl.u32 %v3676, 7
        %v3678 = vsub.s32 5, %v3677
        %v3679 = vrot.slane %v371, %v3678
        %v3680 = vadd.f32 %v3660, %v3679
        %v3681 = vadd.f32 %v3661, %v3679
        %v3682 = vadd.f32 %v3662, %v3679
        %v3683 = vadd.f32 %v3663, %v3679
        %v3684 = vadd.f32 %v3664, %v3679
        %v3685 = vadd.f32 %v3665, %v3679
        %v3686 = vadd.f32 %v3666, %v3679
        %v3687 = vadd.f32 %v3667, %v3679
        %v3688 = vadd.f32 %v3668, %v3679
        %v3689 = vadd.f32 %v3669, %v3679
        %v3690 = vadd.f32 %v3670, %v3679
        %v3691 = vadd.f32 %v3671, %v3679
        %v3692 = vadd.f32 %v3672, %v3679
        %v3693 = vadd.f32 %v3673, %v3679
        %v3694 = vadd.f32 %v3674, %v3679
        %v3695 = vadd.f32 %v3675, %v3679
        %v3696 = vpack.c.bf16 %v3681, %v3680
        %v3697 = vpack.c.bf16 %v3683, %v3682
        %v3698 = vpack.c.bf16 %v3685, %v3684
        %v3699 = vpack.c.bf16 %v3687, %v3686
        %v3700 = vpack.c.bf16 %v3689, %v3688
        %v3701 = vpack.c.bf16 %v3691, %v3690
        %v3702 = vpack.c.bf16 %v3693, %v3692
        %v3703 = vpack.c.bf16 %v3695, %v3694
        %v3704 = vld [vmem:[%s307] sm:$0xff]
        %v3705 = vld [vmem:[%s307 + $0x8] sm:$0xff]
        %v3706 = vld [vmem:[%s307 + $0x10] sm:$0xff]
        %v3707 = vld [vmem:[%s307 + $0x18] sm:$0xff]
        %v3708 = vld [vmem:[%s307 + $0x20] sm:$0xff]
        %v3709 = vld [vmem:[%s307 + $0x28] sm:$0xff]
        %v3710 = vld [vmem:[%s307 + $0x30] sm:$0xff]
        %v3711 = vld [vmem:[%s307 + $0x38] sm:$0xff]
        %v3712 = vld [vmem:[%s307 + $0x40] sm:$0xff]
        %v3713 = vld [vmem:[%s307 + $0x48] sm:$0xff]
        %v3714 = vld [vmem:[%s307 + $0x50] sm:$0xff]
        %v3715 = vld [vmem:[%s307 + $0x58] sm:$0xff]
        %v3716 = vld [vmem:[%s307 + $0x60] sm:$0xff]
        %v3717 = vld [vmem:[%s307 + $0x68] sm:$0xff]
        %v3718 = vld [vmem:[%s307 + $0x70] sm:$0xff]
        %v3719 = vld [vmem:[%s307 + $0x78] sm:$0xff]
        %v3720 = vlaneseq
        %v3721 = vshrl.u32 %v3720, 7
        %v3722 = vsub.s32 2, %v3721
        %v3723 = vrot.slane %v371, %v3722
        %v3724 = vlaneseq
        %v3725 = vshrl.u32 %v3724, 7
        %v3726 = vsub.s32 2, %v3725
        %v3727 = vrot.slane %v372, %v3726
        %v3744 = vunpack.c.l.b16 %v3704
        %v3745 = vunpack.c.h.b16 %v3704
        %v3746 = vunpack.c.l.b16 %v3705
        %v3747 = vunpack.c.h.b16 %v3705
        %v3748 = vunpack.c.l.b16 %v3706
        %v3749 = vunpack.c.h.b16 %v3706
        %v3750 = vunpack.c.l.b16 %v3707
        %v3751 = vunpack.c.h.b16 %v3707
        %v3752 = vunpack.c.l.b16 %v3708
        %v3753 = vunpack.c.h.b16 %v3708
        %v3754 = vunpack.c.l.b16 %v3709
        %v3755 = vunpack.c.h.b16 %v3709
        %v3756 = vunpack.c.l.b16 %v3710
        %v3757 = vunpack.c.h.b16 %v3710
        %v3758 = vunpack.c.l.b16 %v3711
        %v3759 = vunpack.c.h.b16 %v3711
        %v3760 = vunpack.c.l.b16 %v3712
        %v3761 = vunpack.c.h.b16 %v3712
        %v3762 = vunpack.c.l.b16 %v3713
        %v3763 = vunpack.c.h.b16 %v3713
        %v3764 = vunpack.c.l.b16 %v3714
        %v3765 = vunpack.c.h.b16 %v3714
        %v3766 = vunpack.c.l.b16 %v3715
        %v3767 = vunpack.c.h.b16 %v3715
        %v3768 = vunpack.c.l.b16 %v3716
        %v3769 = vunpack.c.h.b16 %v3716
        %v3770 = vunpack.c.l.b16 %v3717
        %v3771 = vunpack.c.h.b16 %v3717
        %v3772 = vunpack.c.l.b16 %v3718
        %v3773 = vunpack.c.h.b16 %v3718
        %v3774 = vunpack.c.l.b16 %v3719
        %v3775 = vunpack.c.h.b16 %v3719
        %v3776 = vpack.c.b16 %v3746, %v3744
        %v3777 = vpack.c.b16 %v3747, %v3745
        %v3778 = vpack.c.b16 %v3750, %v3748
        %v3779 = vpack.c.b16 %v3751, %v3749
        %v3780 = vpack.c.b16 %v3754, %v3752
        %v3781 = vpack.c.b16 %v3755, %v3753
        %v3782 = vpack.c.b16 %v3758, %v3756
        %v3783 = vpack.c.b16 %v3759, %v3757
        %v3784 = vpack.c.b16 %v3762, %v3760
        %v3785 = vpack.c.b16 %v3763, %v3761
        %v3786 = vpack.c.b16 %v3766, %v3764
        %v3787 = vpack.c.b16 %v3767, %v3765
        %v3788 = vpack.c.b16 %v3770, %v3768
        %v3789 = vpack.c.b16 %v3771, %v3769
        %v3790 = vpack.c.b16 %v3774, %v3772
        %v3791 = vpack.c.b16 %v3775, %v3773
        %3808 = vmatprep.subr.bf16.mxu0 %v3791
        %3809 = vmatpush1.bf16.msra.mxu0 %v3790
        %3810 = vmatprep.subr.bf16.mxu0 %v3789
        %3811 = vmatpush1.bf16.msra.mxu0 %v3788
        %3812 = vmatprep.subr.bf16.mxu0 %v3787
        %3813 = vmatpush1.bf16.msra.mxu0 %v3786
        %3814 = vmatprep.subr.bf16.mxu0 %v3785
        %3815 = vmatpush1.bf16.msra.mxu0 %v3784
        %3816 = vmatprep.subr.bf16.mxu0 %v3783
        %3817 = vmatpush1.bf16.msra.mxu0 %v3782
        %3818 = vmatprep.subr.bf16.mxu0 %v3781
        %3819 = vmatpush1.bf16.msra.mxu0 %v3780
        %3820 = vmatprep.subr.bf16.mxu0 %v3779
        %3821 = vmatpush1.bf16.msra.mxu0 %v3778
        %3822 = vmatprep.subr.bf16.mxu0 %v3777
        %3823 = vmatpush1.bf16.msra.mxu0 %v3776
        %3824 = vmatprep.subr.bf16.mxu0 0
        %3825 = vmatpush2.bf16.msra.mxu0 0
        %3826 = vmatprep.subr.bf16.mxu0 0
        %3827 = vmatpush2.bf16.msra.mxu0 0
        %3828 = vmatprep.subr.bf16.mxu0 0
        %3829 = vmatpush2.bf16.msra.mxu0 0
        %3830 = vmatprep.subr.bf16.mxu0 0
        %3831 = vmatpush2.bf16.msra.mxu0 0
        %3832 = vmatprep.subr.bf16.mxu0 0
        %3833 = vmatpush2.bf16.msra.mxu0 0
        %3834 = vmatprep.subr.bf16.mxu0 0
        %3835 = vmatpush2.bf16.msra.mxu0 0
        %3836 = vmatprep.subr.bf16.mxu0 0
        %3837 = vmatpush2.bf16.msra.mxu0 0
        %3838 = vmatprep.subr.bf16.mxu0 0
        %3839 = vmatpush2.bf16.msra.mxu0 0
        %3840 = vmatprep.mubr.bf16.mxu0 0
        %3841 = vmatmul.mubr.bf16.gmra.mxu0 %v3696
        %v3842 = vpop.f32.mrf.mxu0
        %v3843 = vadd.f32 %v3723, %v3842
        %v3844 = vpop.f32.mrf.mxu0
        %v3845 = vadd.f32 %v3727, %v3844
        %v3846 = vpop.f32.mrf.mxu0
        %v3847 = vadd.f32 %v3723, %v3846
        %v3848 = vpop.f32.mrf.mxu0
        %v3849 = vadd.f32 %v3727, %v3848
        %3850 = vmatprep.mubr.bf16.mxu0 0
        %3851 = vmatmul.mubr.bf16.gmra.mxu0 %v3697
        %v3852 = vpop.f32.mrf.mxu0
        %v3853 = vadd.f32 %v3723, %v3852
        %v3854 = vpop.f32.mrf.mxu0
        %v3855 = vadd.f32 %v3727, %v3854
        %v3856 = vpop.f32.mrf.mxu0
        %v3857 = vadd.f32 %v3723, %v3856
        %v3858 = vpop.f32.mrf.mxu0
        %v3859 = vadd.f32 %v3727, %v3858
        %3860 = vmatprep.mubr.bf16.mxu0 0
        %3861 = vmatmul.mubr.bf16.gmra.mxu0 %v3698
        %v3862 = vpop.f32.mrf.mxu0
        %v3863 = vadd.f32 %v3723, %v3862
        %v3864 = vpop.f32.mrf.mxu0
        %v3865 = vadd.f32 %v3727, %v3864
        %v3866 = vpop.f32.mrf.mxu0
        %v3867 = vadd.f32 %v3723, %v3866
        %v3868 = vpop.f32.mrf.mxu0
        %v3869 = vadd.f32 %v3727, %v3868
        %3870 = vmatprep.mubr.bf16.mxu0 0
        %3871 = vmatmul.mubr.bf16.gmra.mxu0 %v3699
        %v3872 = vpop.f32.mrf.mxu0
        %v3873 = vadd.f32 %v3723, %v3872
        %v3874 = vpop.f32.mrf.mxu0
        %v3875 = vadd.f32 %v3727, %v3874
        %v3876 = vpop.f32.mrf.mxu0
        %v3877 = vadd.f32 %v3723, %v3876
        %v3878 = vpop.f32.mrf.mxu0
        %v3879 = vadd.f32 %v3727, %v3878
        %3880 = vmatprep.mubr.bf16.mxu0 0
        %3881 = vmatmul.mubr.bf16.gmra.mxu0 %v3700
        %v3882 = vpop.f32.mrf.mxu0
        %v3883 = vadd.f32 %v3723, %v3882
        %v3884 = vpop.f32.mrf.mxu0
        %v3885 = vadd.f32 %v3727, %v3884
        %v3886 = vpop.f32.mrf.mxu0
        %v3887 = vadd.f32 %v3723, %v3886
        %v3888 = vpop.f32.mrf.mxu0
        %v3889 = vadd.f32 %v3727, %v3888
        %3890 = vmatprep.mubr.bf16.mxu0 0
        %3891 = vmatmul.mubr.bf16.gmra.mxu0 %v3701
        %v3892 = vpop.f32.mrf.mxu0
        %v3893 = vadd.f32 %v3723, %v3892
        %v3894 = vpop.f32.mrf.mxu0
        %v3895 = vadd.f32 %v3727, %v3894
        %v3896 = vpop.f32.mrf.mxu0
        %v3897 = vadd.f32 %v3723, %v3896
        %v3898 = vpop.f32.mrf.mxu0
        %v3899 = vadd.f32 %v3727, %v3898
        %3900 = vmatprep.mubr.bf16.mxu0 0
        %3901 = vmatmul.mubr.bf16.gmra.mxu0 %v3702
        %v3902 = vpop.f32.mrf.mxu0
        %v3903 = vadd.f32 %v3723, %v3902
        %v3904 = vpop.f32.mrf.mxu0
        %v3905 = vadd.f32 %v3727, %v3904
        %v3906 = vpop.f32.mrf.mxu0
        %v3907 = vadd.f32 %v3723, %v3906
        %v3908 = vpop.f32.mrf.mxu0
        %v3909 = vadd.f32 %v3727, %v3908
        %3910 = vmatprep.mubr.bf16.mxu0 0
        %3911 = vmatmul.mubr.bf16.gmra.mxu0 %v3703
        %v3912 = vpop.f32.mrf.mxu0
        %v3913 = vadd.f32 %v3723, %v3912
        %v3914 = vpop.f32.mrf.mxu0
        %v3915 = vadd.f32 %v3727, %v3914
        %v3916 = vpop.f32.mrf.mxu0
        %v3917 = vadd.f32 %v3723, %v3916
        %v3918 = vpop.f32.mrf.mxu0
        %v3919 = vadd.f32 %v3727, %v3918
        %3920 = vdwg.mxu0
        %v3921 = vmax.f32 %v3843, 0.0
        %v3922 = vmax.f32 %v3845, 0.0
        %v3923 = vmax.f32 %v3847, 0.0
        %v3924 = vmax.f32 %v3849, 0.0
        %v3925 = vmax.f32 %v3853, 0.0
        %v3926 = vmax.f32 %v3855, 0.0
        %v3927 = vmax.f32 %v3857, 0.0
        %v3928 = vmax.f32 %v3859, 0.0
        %v3929 = vmax.f32 %v3863, 0.0
        %v3930 = vmax.f32 %v3865, 0.0
        %v3931 = vmax.f32 %v3867, 0.0
        %v3932 = vmax.f32 %v3869, 0.0
        %v3933 = vmax.f32 %v3873, 0.0
        %v3934 = vmax.f32 %v3875, 0.0
        %v3935 = vmax.f32 %v3877, 0.0
        %v3936 = vmax.f32 %v3879, 0.0
        %v3937 = vmax.f32 %v3883, 0.0
        %v3938 = vmax.f32 %v3885, 0.0
        %v3939 = vmax.f32 %v3887, 0.0
        %v3940 = vmax.f32 %v3889, 0.0
        %v3941 = vmax.f32 %v3893, 0.0
        %v3942 = vmax.f32 %v3895, 0.0
        %v3943 = vmax.f32 %v3897, 0.0
        %v3944 = vmax.f32 %v3899, 0.0
        %v3945 = vmax.f32 %v3903, 0.0
        %v3946 = vmax.f32 %v3905, 0.0
        %v3947 = vmax.f32 %v3907, 0.0
        %v3948 = vmax.f32 %v3909, 0.0
        %v3949 = vmax.f32 %v3913, 0.0
        %v3950 = vmax.f32 %v3915, 0.0
        %v3951 = vmax.f32 %v3917, 0.0
        %v3952 = vmax.f32 %v3919, 0.0
        %v3953 = vpack.c.bf16 %v3923, %v3921
        %v3954 = vpack.c.bf16 %v3924, %v3922
        %v3955 = vpack.c.bf16 %v3927, %v3925
        %v3956 = vpack.c.bf16 %v3928, %v3926
        %v3957 = vpack.c.bf16 %v3931, %v3929
        %v3958 = vpack.c.bf16 %v3932, %v3930
        %v3959 = vpack.c.bf16 %v3935, %v3933
        %v3960 = vpack.c.bf16 %v3936, %v3934
        %v3961 = vpack.c.bf16 %v3939, %v3937
        %v3962 = vpack.c.bf16 %v3940, %v3938
        %v3963 = vpack.c.bf16 %v3943, %v3941
        %v3964 = vpack.c.bf16 %v3944, %v3942
        %v3965 = vpack.c.bf16 %v3947, %v3945
        %v3966 = vpack.c.bf16 %v3948, %v3946
        %v3967 = vpack.c.bf16 %v3951, %v3949
        %v3968 = vpack.c.bf16 %v3952, %v3950
        %v3969 = vld [vmem:[%s312] sm:$0xf]
        %v3970 = vld [vmem:[%s312 + $0x4] sm:$0xf]
        %v3971 = vld [vmem:[%s312 + $0x8] sm:$0xf]
        %v3972 = vld [vmem:[%s312 + $0xc] sm:$0xf]
        %v3973 = vld [vmem:[%s312 + $0x10] sm:$0xf]
        %v3974 = vld [vmem:[%s312 + $0x14] sm:$0xf]
        %v3975 = vld [vmem:[%s312 + $0x18] sm:$0xf]
        %v3976 = vld [vmem:[%s312 + $0x1c] sm:$0xf]
        %v3977 = vld [vmem:[%s312 + $0x20] sm:$0xf]
        %v3978 = vld [vmem:[%s312 + $0x24] sm:$0xf]
        %v3979 = vld [vmem:[%s312 + $0x28] sm:$0xf]
        %v3980 = vld [vmem:[%s312 + $0x2c] sm:$0xf]
        %v3981 = vld [vmem:[%s312 + $0x30] sm:$0xf]
        %v3982 = vld [vmem:[%s312 + $0x34] sm:$0xf]
        %v3983 = vld [vmem:[%s312 + $0x38] sm:$0xf]
        %v3984 = vld [vmem:[%s312 + $0x3c] sm:$0xf]
        %v3985 = vld [vmem:[%s312 + $0x40] sm:$0xf]
        %v3986 = vld [vmem:[%s312 + $0x44] sm:$0xf]
        %v3987 = vld [vmem:[%s312 + $0x48] sm:$0xf]
        %v3988 = vld [vmem:[%s312 + $0x4c] sm:$0xf]
        %v3989 = vld [vmem:[%s312 + $0x50] sm:$0xf]
        %v3990 = vld [vmem:[%s312 + $0x54] sm:$0xf]
        %v3991 = vld [vmem:[%s312 + $0x58] sm:$0xf]
        %v3992 = vld [vmem:[%s312 + $0x5c] sm:$0xf]
        %v3993 = vld [vmem:[%s312 + $0x60] sm:$0xf]
        %v3994 = vld [vmem:[%s312 + $0x64] sm:$0xf]
        %v3995 = vld [vmem:[%s312 + $0x68] sm:$0xf]
        %v3996 = vld [vmem:[%s312 + $0x6c] sm:$0xf]
        %v3997 = vld [vmem:[%s312 + $0x70] sm:$0xf]
        %v3998 = vld [vmem:[%s312 + $0x74] sm:$0xf]
        %v3999 = vld [vmem:[%s312 + $0x78] sm:$0xf]
        %v4000 = vld [vmem:[%s312 + $0x7c] sm:$0xf]
        %v4001 = vlaneseq
        %v4002 = vshrl.u32 %v4001, 7
        %v4003 = vsub.s32 3, %v4002
        %v4004 = vrot.slane %v371, %v4003
        %v4037 = vunpack.c.l.b16 %v3969
        %v4038 = vunpack.c.l.b16 %v3970
        %v4039 = vunpack.c.l.b16 %v3971
        %v4040 = vunpack.c.l.b16 %v3972
        %v4041 = vunpack.c.l.b16 %v3973
        %v4042 = vunpack.c.l.b16 %v3974
        %v4043 = vunpack.c.l.b16 %v3975
        %v4044 = vunpack.c.l.b16 %v3976
        %v4045 = vunpack.c.l.b16 %v3977
        %v4046 = vunpack.c.l.b16 %v3978
        %v4047 = vunpack.c.l.b16 %v3979
        %v4048 = vunpack.c.l.b16 %v3980
        %v4049 = vunpack.c.l.b16 %v3981
        %v4050 = vunpack.c.l.b16 %v3982
        %v4051 = vunpack.c.l.b16 %v3983
        %v4052 = vunpack.c.l.b16 %v3984
        %v4053 = vunpack.c.l.b16 %v3985
        %v4054 = vunpack.c.l.b16 %v3986
        %v4055 = vunpack.c.l.b16 %v3987
        %v4056 = vunpack.c.l.b16 %v3988
        %v4057 = vunpack.c.l.b16 %v3989
        %v4058 = vunpack.c.l.b16 %v3990
        %v4059 = vunpack.c.l.b16 %v3991
        %v4060 = vunpack.c.l.b16 %v3992
        %v4061 = vunpack.c.l.b16 %v3993
        %v4062 = vunpack.c.l.b16 %v3994
        %v4063 = vunpack.c.l.b16 %v3995
        %v4064 = vunpack.c.l.b16 %v3996
        %v4065 = vunpack.c.l.b16 %v3997
        %v4066 = vunpack.c.l.b16 %v3998
        %v4067 = vunpack.c.l.b16 %v3999
        %v4068 = vunpack.c.l.b16 %v4000
        %v4069 = vpack.c.b16 %v4038, %v4037
        %v4070 = vpack.c.b16 %v4040, %v4039
        %v4071 = vpack.c.b16 %v4042, %v4041
        %v4072 = vpack.c.b16 %v4044, %v4043
        %v4073 = vpack.c.b16 %v4046, %v4045
        %v4074 = vpack.c.b16 %v4048, %v4047
        %v4075 = vpack.c.b16 %v4050, %v4049
        %v4076 = vpack.c.b16 %v4052, %v4051
        %v4077 = vpack.c.b16 %v4054, %v4053
        %v4078 = vpack.c.b16 %v4056, %v4055
        %v4079 = vpack.c.b16 %v4058, %v4057
        %v4080 = vpack.c.b16 %v4060, %v4059
        %v4081 = vpack.c.b16 %v4062, %v4061
        %v4082 = vpack.c.b16 %v4064, %v4063
        %v4083 = vpack.c.b16 %v4066, %v4065
        %v4084 = vpack.c.b16 %v4068, %v4067
        %4101 = vmatprep.subr.bf16.mxu0 0
        %4102 = vmatpush1.bf16.msra.mxu0 %v4076
        %4103 = vmatprep.subr.bf16.mxu0 0
        %4104 = vmatpush1.bf16.msra.mxu0 %v4075
        %4105 = vmatprep.subr.bf16.mxu0 0
        %4106 = vmatpush1.bf16.msra.mxu0 %v4074
        %4107 = vmatprep.subr.bf16.mxu0 0
        %4108 = vmatpush1.bf16.msra.mxu0 %v4073
        %4109 = vmatprep.subr.bf16.mxu0 0
        %4110 = vmatpush1.bf16.msra.mxu0 %v4072
        %4111 = vmatprep.subr.bf16.mxu0 0
        %4112 = vmatpush1.bf16.msra.mxu0 %v4071
        %4113 = vmatprep.subr.bf16.mxu0 0
        %4114 = vmatpush1.bf16.msra.mxu0 %v4070
        %4115 = vmatprep.subr.bf16.mxu0 0
        %4116 = vmatpush1.bf16.msra.mxu0 %v4069
        %4117 = vmatprep.subr.bf16.mxu0 0
        %4118 = vmatpush2.bf16.msra.mxu0 %v4084
        %4119 = vmatprep.subr.bf16.mxu0 0
        %4120 = vmatpush2.bf16.msra.mxu0 %v4083
        %4121 = vmatprep.subr.bf16.mxu0 0
        %4122 = vmatpush2.bf16.msra.mxu0 %v4082
        %4123 = vmatprep.subr.bf16.mxu0 0
        %4124 = vmatpush2.bf16.msra.mxu0 %v4081
        %4125 = vmatprep.subr.bf16.mxu0 0
        %4126 = vmatpush2.bf16.msra.mxu0 %v4080
        %4127 = vmatprep.subr.bf16.mxu0 0
        %4128 = vmatpush2.bf16.msra.mxu0 %v4079
        %4129 = vmatprep.subr.bf16.mxu0 0
        %4130 = vmatpush2.bf16.msra.mxu0 %v4078
        %4131 = vmatprep.subr.bf16.mxu0 0
        %4132 = vmatpush2.bf16.msra.mxu0 %v4077
        %4133 = vmatprep.mubr.bf16.mxu0 %v3954
        %4134 = vmatmul.mubr.bf16.gmra.mxu0 %v3953
        %v4135 = vpop.f32.mrf.mxu0
        %v4136 = vadd.f32 %v4004, %v4135
        %v4137 = vpop.f32.mrf.mxu0
        %v4138 = vpop.f32.mrf.mxu0
        %v4139 = vadd.f32 %v4004, %v4138
        %v4140 = vpop.f32.mrf.mxu0
        %4141 = vmatprep.mubr.bf16.mxu0 %v3956
        %4142 = vmatmul.mubr.bf16.gmra.mxu0 %v3955
        %v4143 = vpop.f32.mrf.mxu0
        %v4144 = vadd.f32 %v4004, %v4143
        %v4145 = vpop.f32.mrf.mxu0
        %v4146 = vpop.f32.mrf.mxu0
        %v4147 = vadd.f32 %v4004, %v4146
        %v4148 = vpop.f32.mrf.mxu0
        %4149 = vmatprep.mubr.bf16.mxu0 %v3958
        %4150 = vmatmul.mubr.bf16.gmra.mxu0 %v3957
        %v4151 = vpop.f32.mrf.mxu0
        %v4152 = vadd.f32 %v4004, %v4151
        %v4153 = vpop.f32.mrf.mxu0
        %v4154 = vpop.f32.mrf.mxu0
        %v4155 = vadd.f32 %v4004, %v4154
        %v4156 = vpop.f32.mrf.mxu0
        %4157 = vmatprep.mubr.bf16.mxu0 %v3960
        %4158 = vmatmul.mubr.bf16.gmra.mxu0 %v3959
        %v4159 = vpop.f32.mrf.mxu0
        %v4160 = vadd.f32 %v4004, %v4159
        %v4161 = vpop.f32.mrf.mxu0
        %v4162 = vpop.f32.mrf.mxu0
        %v4163 = vadd.f32 %v4004, %v4162
        %v4164 = vpop.f32.mrf.mxu0
        %4165 = vmatprep.mubr.bf16.mxu0 %v3962
        %4166 = vmatmul.mubr.bf16.gmra.mxu0 %v3961
        %v4167 = vpop.f32.mrf.mxu0
        %v4168 = vadd.f32 %v4004, %v4167
        %v4169 = vpop.f32.mrf.mxu0
        %v4170 = vpop.f32.mrf.mxu0
        %v4171 = vadd.f32 %v4004, %v4170
        %v4172 = vpop.f32.mrf.mxu0
        %4173 = vmatprep.mubr.bf16.mxu0 %v3964
        %4174 = vmatmul.mubr.bf16.gmra.mxu0 %v3963
        %v4175 = vpop.f32.mrf.mxu0
        %v4176 = vadd.f32 %v4004, %v4175
        %v4177 = vpop.f32.mrf.mxu0
        %v4178 = vpop.f32.mrf.mxu0
        %v4179 = vadd.f32 %v4004, %v4178
        %v4180 = vpop.f32.mrf.mxu0
        %4181 = vmatprep.mubr.bf16.mxu0 %v3966
        %4182 = vmatmul.mubr.bf16.gmra.mxu0 %v3965
        %v4183 = vpop.f32.mrf.mxu0
        %v4184 = vadd.f32 %v4004, %v4183
        %v4185 = vpop.f32.mrf.mxu0
        %v4186 = vpop.f32.mrf.mxu0
        %v4187 = vadd.f32 %v4004, %v4186
        %v4188 = vpop.f32.mrf.mxu0
        %4189 = vmatprep.mubr.bf16.mxu0 %v3968
        %4190 = vmatmul.mubr.bf16.gmra.mxu0 %v3967
        %v4191 = vpop.f32.mrf.mxu0
        %v4192 = vadd.f32 %v4004, %v4191
        %v4193 = vpop.f32.mrf.mxu0
        %v4194 = vpop.f32.mrf.mxu0
        %v4195 = vadd.f32 %v4004, %v4194
        %v4196 = vpop.f32.mrf.mxu0
        %4197 = vdwg.mxu0
        %v4198 = vadd.f32 %v3680, %v4136
        %v4199 = vadd.f32 %v3681, %v4139
        %v4200 = vadd.f32 %v3682, %v4144
        %v4201 = vadd.f32 %v3683, %v4147
        %v4202 = vadd.f32 %v3684, %v4152
        %v4203 = vadd.f32 %v3685, %v4155
        %v4204 = vadd.f32 %v3686, %v4160
        %v4205 = vadd.f32 %v3687, %v4163
        %v4206 = vadd.f32 %v3688, %v4168
        %v4207 = vadd.f32 %v3689, %v4171
        %v4208 = vadd.f32 %v3690, %v4176
        %v4209 = vadd.f32 %v3691, %v4179
        %v4210 = vadd.f32 %v3692, %v4184
        %v4211 = vadd.f32 %v3693, %v4187
        %v4212 = vadd.f32 %v3694, %v4192
        %v4213 = vadd.f32 %v3695, %v4195
        %4214 = vadd.xlane.f32.xlu0 %v4198
        %v4215 = vpop.xlane.xlu0 %4214
        %4216 = vadd.xlane.f32.xlu0 %v4199
        %v4217 = vpop.xlane.xlu0 %4216
        %4218 = vadd.xlane.f32.xlu0 %v4200
        %v4219 = vpop.xlane.xlu0 %4218
        %4220 = vadd.xlane.f32.xlu0 %v4201
        %v4221 = vpop.xlane.xlu0 %4220
        %4222 = vadd.xlane.f32.xlu0 %v4202
        %v4223 = vpop.xlane.xlu0 %4222
        %4224 = vadd.xlane.f32.xlu0 %v4203
        %v4225 = vpop.xlane.xlu0 %4224
        %4226 = vadd.xlane.f32.xlu0 %v4204
        %v4227 = vpop.xlane.xlu0 %4226
        %4228 = vadd.xlane.f32.xlu0 %v4205
        %v4229 = vpop.xlane.xlu0 %4228
        %4230 = vadd.xlane.f32.xlu0 %v4206
        %v4231 = vpop.xlane.xlu0 %4230
        %4232 = vadd.xlane.f32.xlu0 %v4207
        %v4233 = vpop.xlane.xlu0 %4232
        %4234 = vadd.xlane.f32.xlu0 %v4208
        %v4235 = vpop.xlane.xlu0 %4234
        %4236 = vadd.xlane.f32.xlu0 %v4209
        %v4237 = vpop.xlane.xlu0 %4236
        %4238 = vadd.xlane.f32.xlu0 %v4210
        %v4239 = vpop.xlane.xlu0 %4238
        %4240 = vadd.xlane.f32.xlu0 %v4211
        %v4241 = vpop.xlane.xlu0 %4240
        %4242 = vadd.xlane.f32.xlu0 %v4212
        %v4243 = vpop.xlane.xlu0 %4242
        %4244 = vadd.xlane.f32.xlu0 %v4213
        %v4245 = vpop.xlane.xlu0 %4244
        %v4246 = vmul.f32 %v4215, %v3511
        %v4247 = vmul.f32 %v4217, %v3511
        %v4248 = vmul.f32 %v4219, %v3511
        %v4249 = vmul.f32 %v4221, %v3511
        %v4250 = vmul.f32 %v4223, %v3511
        %v4251 = vmul.f32 %v4225, %v3511
        %v4252 = vmul.f32 %v4227, %v3511
        %v4253 = vmul.f32 %v4229, %v3511
        %v4254 = vmul.f32 %v4231, %v3511
        %v4255 = vmul.f32 %v4233, %v3511
        %v4256 = vmul.f32 %v4235, %v3511
        %v4257 = vmul.f32 %v4237, %v3511
        %v4258 = vmul.f32 %v4239, %v3511
        %v4259 = vmul.f32 %v4241, %v3511
        %v4260 = vmul.f32 %v4243, %v3511
        %v4261 = vmul.f32 %v4245, %v3511
        %v4262 = vsub.f32 %v4198, %v4246
        %v4263 = vsub.f32 %v4199, %v4247
        %v4264 = vsub.f32 %v4200, %v4248
        %v4265 = vsub.f32 %v4201, %v4249
        %v4266 = vsub.f32 %v4202, %v4250
        %v4267 = vsub.f32 %v4203, %v4251
        %v4268 = vsub.f32 %v4204, %v4252
        %v4269 = vsub.f32 %v4205, %v4253
        %v4270 = vsub.f32 %v4206, %v4254
        %v4271 = vsub.f32 %v4207, %v4255
        %v4272 = vsub.f32 %v4208, %v4256
        %v4273 = vsub.f32 %v4209, %v4257
        %v4274 = vsub.f32 %v4210, %v4258
        %v4275 = vsub.f32 %v4211, %v4259
        %v4276 = vsub.f32 %v4212, %v4260
        %v4277 = vsub.f32 %v4213, %v4261
        %v4278 = vmul.f32 %v4262, %v4262
        %v4279 = vmul.f32 %v4263, %v4263
        %v4280 = vmul.f32 %v4264, %v4264
        %v4281 = vmul.f32 %v4265, %v4265
        %v4282 = vmul.f32 %v4266, %v4266
        %v4283 = vmul.f32 %v4267, %v4267
        %v4284 = vmul.f32 %v4268, %v4268
        %v4285 = vmul.f32 %v4269, %v4269
        %v4286 = vmul.f32 %v4270, %v4270
        %v4287 = vmul.f32 %v4271, %v4271
        %v4288 = vmul.f32 %v4272, %v4272
        %v4289 = vmul.f32 %v4273, %v4273
        %v4290 = vmul.f32 %v4274, %v4274
        %v4291 = vmul.f32 %v4275, %v4275
        %v4292 = vmul.f32 %v4276, %v4276
        %v4293 = vmul.f32 %v4277, %v4277
        %4294 = vadd.xlane.f32.xlu0 %v4278
        %v4295 = vpop.xlane.xlu0 %4294
        %4296 = vadd.xlane.f32.xlu0 %v4279
        %v4297 = vpop.xlane.xlu0 %4296
        %4298 = vadd.xlane.f32.xlu0 %v4280
        %v4299 = vpop.xlane.xlu0 %4298
        %4300 = vadd.xlane.f32.xlu0 %v4281
        %v4301 = vpop.xlane.xlu0 %4300
        %4302 = vadd.xlane.f32.xlu0 %v4282
        %v4303 = vpop.xlane.xlu0 %4302
        %4304 = vadd.xlane.f32.xlu0 %v4283
        %v4305 = vpop.xlane.xlu0 %4304
        %4306 = vadd.xlane.f32.xlu0 %v4284
        %v4307 = vpop.xlane.xlu0 %4306
        %4308 = vadd.xlane.f32.xlu0 %v4285
        %v4309 = vpop.xlane.xlu0 %4308
        %4310 = vadd.xlane.f32.xlu0 %v4286
        %v4311 = vpop.xlane.xlu0 %4310
        %4312 = vadd.xlane.f32.xlu0 %v4287
        %v4313 = vpop.xlane.xlu0 %4312
        %4314 = vadd.xlane.f32.xlu0 %v4288
        %v4315 = vpop.xlane.xlu0 %4314
        %4316 = vadd.xlane.f32.xlu0 %v4289
        %v4317 = vpop.xlane.xlu0 %4316
        %4318 = vadd.xlane.f32.xlu0 %v4290
        %v4319 = vpop.xlane.xlu0 %4318
        %4320 = vadd.xlane.f32.xlu0 %v4291
        %v4321 = vpop.xlane.xlu0 %4320
        %4322 = vadd.xlane.f32.xlu0 %v4292
        %v4323 = vpop.xlane.xlu0 %4322
        %4324 = vadd.xlane.f32.xlu0 %v4293
        %v4325 = vpop.xlane.xlu0 %4324
        %v4326 = vmul.f32 %v4295, %v3511
        %v4327 = vmul.f32 %v4297, %v3511
        %v4328 = vmul.f32 %v4299, %v3511
        %v4329 = vmul.f32 %v4301, %v3511
        %v4330 = vmul.f32 %v4303, %v3511
        %v4331 = vmul.f32 %v4305, %v3511
        %v4332 = vmul.f32 %v4307, %v3511
        %v4333 = vmul.f32 %v4309, %v3511
        %v4334 = vmul.f32 %v4311, %v3511
        %v4335 = vmul.f32 %v4313, %v3511
        %v4336 = vmul.f32 %v4315, %v3511
        %v4337 = vmul.f32 %v4317, %v3511
        %v4338 = vmul.f32 %v4319, %v3511
        %v4339 = vmul.f32 %v4321, %v3511
        %v4340 = vmul.f32 %v4323, %v3511
        %v4341 = vmul.f32 %v4325, %v3511
        %v4342 = vadd.f32 %v4326, 1e-05
        %v4343 = vadd.f32 %v4327, 1e-05
        %v4344 = vadd.f32 %v4328, 1e-05
        %v4345 = vadd.f32 %v4329, 1e-05
        %v4346 = vadd.f32 %v4330, 1e-05
        %v4347 = vadd.f32 %v4331, 1e-05
        %v4348 = vadd.f32 %v4332, 1e-05
        %v4349 = vadd.f32 %v4333, 1e-05
        %v4350 = vadd.f32 %v4334, 1e-05
        %v4351 = vadd.f32 %v4335, 1e-05
        %v4352 = vadd.f32 %v4336, 1e-05
        %v4353 = vadd.f32 %v4337, 1e-05
        %v4354 = vadd.f32 %v4338, 1e-05
        %v4355 = vadd.f32 %v4339, 1e-05
        %v4356 = vadd.f32 %v4340, 1e-05
        %v4357 = vadd.f32 %v4341, 1e-05
        %v4358 = vrsqrt.pop %v4342
        %v4359 = vrsqrt.pop %v4343
        %v4360 = vrsqrt.pop %v4344
        %v4361 = vrsqrt.pop %v4345
        %v4362 = vrsqrt.pop %v4346
        %v4363 = vrsqrt.pop %v4347
        %v4364 = vrsqrt.pop %v4348
        %v4365 = vrsqrt.pop %v4349
        %v4366 = vrsqrt.pop %v4350
        %v4367 = vrsqrt.pop %v4351
        %v4368 = vrsqrt.pop %v4352
        %v4369 = vrsqrt.pop %v4353
        %v4370 = vrsqrt.pop %v4354
        %v4371 = vrsqrt.pop %v4355
        %v4372 = vrsqrt.pop %v4356
        %v4373 = vrsqrt.pop %v4357
        %v4374 = vmul.f32 %v4262, %v4358
        %v4375 = vmul.f32 %v4263, %v4359
        %v4376 = vmul.f32 %v4264, %v4360
        %v4377 = vmul.f32 %v4265, %v4361
        %v4378 = vmul.f32 %v4266, %v4362
        %v4379 = vmul.f32 %v4267, %v4363
        %v4380 = vmul.f32 %v4268, %v4364
        %v4381 = vmul.f32 %v4269, %v4365
        %v4382 = vmul.f32 %v4270, %v4366
        %v4383 = vmul.f32 %v4271, %v4367
        %v4384 = vmul.f32 %v4272, %v4368
        %v4385 = vmul.f32 %v4273, %v4369
        %v4386 = vmul.f32 %v4274, %v4370
        %v4387 = vmul.f32 %v4275, %v4371
        %v4388 = vmul.f32 %v4276, %v4372
        %v4389 = vmul.f32 %v4277, %v4373
        %v4390 = vlaneseq
        %v4391 = vshrl.u32 %v4390, 7
        %v4392 = vsub.s32 6, %v4391
        %v4393 = vrot.slane %v371, %v4392
        %v4394 = vmul.f32 %v4374, %v4393
        %v4395 = vmul.f32 %v4375, %v4393
        %v4396 = vmul.f32 %v4376, %v4393
        %v4397 = vmul.f32 %v4377, %v4393
        %v4398 = vmul.f32 %v4378, %v4393
        %v4399 = vmul.f32 %v4379, %v4393
        %v4400 = vmul.f32 %v4380, %v4393
        %v4401 = vmul.f32 %v4381, %v4393
        %v4402 = vmul.f32 %v4382, %v4393
        %v4403 = vmul.f32 %v4383, %v4393
        %v4404 = vmul.f32 %v4384, %v4393
        %v4405 = vmul.f32 %v4385, %v4393
        %v4406 = vmul.f32 %v4386, %v4393
        %v4407 = vmul.f32 %v4387, %v4393
        %v4408 = vmul.f32 %v4388, %v4393
        %v4409 = vmul.f32 %v4389, %v4393
        %v4410 = vlaneseq
        %v4411 = vshrl.u32 %v4410, 7
        %v4412 = vsub.s32 7, %v4411
        %v4413 = vrot.slane %v371, %v4412
        %v4414 = vadd.f32 %v4394, %v4413
        %v4415 = vadd.f32 %v4395, %v4413
        %v4416 = vadd.f32 %v4396, %v4413
        %v4417 = vadd.f32 %v4397, %v4413
        %v4418 = vadd.f32 %v4398, %v4413
        %v4419 = vadd.f32 %v4399, %v4413
        %v4420 = vadd.f32 %v4400, %v4413
        %v4421 = vadd.f32 %v4401, %v4413
        %v4422 = vadd.f32 %v4402, %v4413
        %v4423 = vadd.f32 %v4403, %v4413
        %v4424 = vadd.f32 %v4404, %v4413
        %v4425 = vadd.f32 %v4405, %v4413
        %v4426 = vadd.f32 %v4406, %v4413
        %v4427 = vadd.f32 %v4407, %v4413
        %v4428 = vadd.f32 %v4408, %v4413
        %v4429 = vadd.f32 %v4409, %v4413
        %4430 = vst [vmem:[#allocation2] sm:$0xff] %v4414
        %4431 = vst [vmem:[#allocation2 + $0x8] sm:$0xff] %v4415
        %4432 = vst [vmem:[#allocation2 + $0x10] sm:$0xff] %v4416
        %4433 = vst [vmem:[#allocation2 + $0x18] sm:$0xff] %v4417
        %4434 = vst [vmem:[#allocation2 + $0x20] sm:$0xff] %v4418
        %4435 = vst [vmem:[#allocation2 + $0x28] sm:$0xff] %v4419
        %4436 = vst [vmem:[#allocation2 + $0x30] sm:$0xff] %v4420
        %4437 = vst [vmem:[#allocation2 + $0x38] sm:$0xff] %v4421
        %4438 = vst [vmem:[#allocation2 + $0x40] sm:$0xff] %v4422
        %4439 = vst [vmem:[#allocation2 + $0x48] sm:$0xff] %v4423
        %4440 = vst [vmem:[#allocation2 + $0x50] sm:$0xff] %v4424
        %4441 = vst [vmem:[#allocation2 + $0x58] sm:$0xff] %v4425
        %4442 = vst [vmem:[#allocation2 + $0x60] sm:$0xff] %v4426
        %4443 = vst [vmem:[#allocation2 + $0x68] sm:$0xff] %v4427
        %4444 = vst [vmem:[#allocation2 + $0x70] sm:$0xff] %v4428
        %4445 = vst [vmem:[#allocation2 + $0x78] sm:$0xff] %v4429
        // Predicated region
        $region49: #{trans_encoder_forward.1} parent=43 // pred_check
          %p4446 = pneg %p182
        $region50: #{trans_encoder_forward.1} parent=43 // pred_check_branch
          %4448 = sbr.rel (%p4446) target = $region52
        $region51: #{trans_encoder_forward.1} parent=43 // pred_region
          %s4450 = ssub.s32 2048, 2048
          %4451 = vsyncadd [#allocation3], %s4450
          %s4452 = sshll.u32 [#allocation2], 4
          %s4453 = int_to_ptr.vmem [resolvable:$true] %s4452
          %4458 = dma.vmem_to_hbm [thread:$0]  %s4453, 2048, %s6, [#allocation3], 128, 128, 8
        $region52: #{trans_encoder_forward.1} parent=43 // pred_fallthru
          _
        // Predicated region
        $region53: #{trans_encoder_forward.1} parent=43 // pred_check
          %p4459 = pneg %p182
        $region54: #{trans_encoder_forward.1} parent=43 // pred_check_branch
          %4461 = sbr.rel (%p4459) target = $region56
        $region55: #{trans_encoder_forward.1} parent=43 // pred_region
          %4462 = dma.done [#allocation3], 2048
        $region56: #{trans_encoder_forward.1} parent=43 // pred_fallthru
          _
      $region44: #{trans_encoder_forward.1} parent=5 // pred_fallthru
        _
      %p4463 = scmp.le.s32.totalorder 2, %s13
      // Predicated region
      $region57: #{trans_encoder_forward.1} parent=5 // pred_check
        %p4464 = pneg %p4463
      $region58: #{trans_encoder_forward.1} parent=5 // pred_check_branch
        %4466 = sbr.rel (%p4464) target = $region60
      $region59: #{trans_encoder_forward.1} parent=5 // pred_region
        %s4467 = ssub.s32 %s13, 2
      $region60: #{trans_encoder_forward.1} parent=5 // pred_fallthru
        _
    $region6: #{trans_encoder_forward.1} parent=1 // loop_footer
      %s17 = sadd.s32 1, %s13
    $region7: #{trans_encoder_forward.1} parent=1 // loop_footer_branch
      %12 = sbr.rel target = $region3
    $region8: #{trans_encoder_forward.1} parent=1 // loop_exit
      _
    %4468 = vsyncpa [#allocation3], 1
    %s4469 = scalar_lea.sflag [#allocation3], 1
    %4470 = vsyncpa %s4469, 1

</llo_original>
